<compile_context>
chip_gen: v5e
topology: v5e:2x2
jax: 0.10.0
libtpu: 0.0.40
codegen_flags: <defaults>
</compile_context>

<pallas_src>
import math

import numpy as np
import jax
import jax.numpy as jnp
from jax.experimental import pallas as pl
from jax.experimental.pallas import tpu as pltpu  # noqa: F401  (TPU backend)

# bf16 operands / f32 accumulation on the MXU (recommended on v5e/v6e/v7x).
# Set to jnp.float32 for bit-level parity with the f32 PyTorch reference.
MXU_INPUT_DTYPE = jnp.bfloat16
NEG = -1e30  # finite "minus infinity" -> exp underflows to exactly 0, no NaNs


def _mm(a, b):
    """Plain (m,k)x(k,n) MXU matmul, f32 accumulation."""
    return jnp.dot(a.astype(MXU_INPUT_DTYPE), b.astype(MXU_INPUT_DTYPE),
                   preferred_element_type=jnp.float32)


def _layernorm(y, gamma, beta, eps=1e-5):
    # biased variance + eps inside rsqrt: matches nn.LayerNorm defaults.
    mu = jnp.mean(y, axis=-1, keepdims=True)
    c = y - mu
    var = jnp.mean(c * c, axis=-1, keepdims=True)
    return c * jax.lax.rsqrt(var + eps) * gamma + beta


# ------------------------------ the fused kernel -----------------------------

def _translator_kernel(
    x_enc_ref, x_dec_ref,                       # (B*T, E) embedded inputs
    bias_plain_ref, bias_causal_ref,            # (g*B*T, g*B*T) additive masks
    ewc_ref, ewo_ref, ew1_ref, ew2_ref, evE_ref, evH_ref,              # encoder
    dwc1_ref, dwo1_ref, dwc2_ref, dwo2_ref, dw1_ref, dw2_ref,          # decoder
    dvE_ref, dvH_ref,
    wfw_ref, fold_mask_ref, fold_sum_ref, batch_sel_ref, bfin_ref,     # final
    out_ref,                                    # (B, dec_vocab)
):
    n_blocks, g, _, hs = ewc_ref.shape          # g = n_heads, hs = head_size
    bt = x_enc_ref.shape[0]                     # B*T rows
    inv_scale = 1.0 / math.sqrt(hs)
    bias_plain = bias_plain_ref[...]
    bias_causal = bias_causal_ref[...]

    def split_proj(x2, wc):
        # Shared bias-free core projection fused with the quirky
        # `.view(B, nh, T, hs)` head split: row c*BT + q of the result holds
        # column block c of (x2 @ Wc^T)[q, :] -- the "vstack" head layout.
        return jnp.concatenate([_mm(x2, wc[c]) for c in range(g)], axis=0)

    def attention(z_q, z_kv, bias):
        # All batches & heads in one matmul; `bias` keeps only same-batch,
        # same-head (and causal) score entries, everything else -> -1e30.
        s = jnp.einsum("md,nd->mn",
                       z_q.astype(MXU_INPUT_DTYPE), z_kv.astype(MXU_INPUT_DTYPE),
                       preferred_element_type=jnp.float32)
        s = s * inv_scale + bias
        s = s - jnp.max(s, axis=-1, keepdims=True)
        p = jnp.exp(s)
        p = p * pl.reciprocal(jnp.sum(p, axis=-1, keepdims=True), approx=True)
        return _mm(p, z_kv)

    def out_proj(o_z, wo, b_out):
        # Head merge (`.view(B, T, E)`) folded into the output Linear:
        # merged[:, c*hs:(c+1)*hs] == o_z[c*BT:(c+1)*BT, :], so
        # merged @ Wo^T == sum_c o_z[c-block] @ Wo^T[c*hs:(c+1)*hs, :].
        acc = _mm(o_z[0:bt, :], wo[0])
        for c in range(1, g):
            acc = acc + _mm(o_z[c * bt:(c + 1) * bt, :], wo[c])
        return acc + b_out

    def feed_forward(x2, w1, b1, w2, b2):
        h = jnp.maximum(_mm(x2, w1) + b1, 0.0)
        return _mm(h, w2) + b2

    # --------------------------------- encoder --------------------------------
    x = x_enc_ref[...]
    for n in range(n_blocks):
        wc, wo = ewc_ref[n], ewo_ref[n]
        vE, b1 = evE_ref[n], evH_ref[n]         # vE rows: [bo, g1, b1, b2f, g2, b2]
        z = split_proj(x, wc)                   # V = K = Q = core(x)
        att = attention(z, z, bias_plain)
        x1 = _layernorm(out_proj(att, wo, vE[0:1, :]) + x, vE[1:2, :], vE[2:3, :])
        f = feed_forward(x1, ew1_ref[n], b1, ew2_ref[n], vE[3:4, :])
        x = _layernorm(f + x1, vE[4:5, :], vE[5:6, :])
    enc_out = x

    # --------------------------------- decoder --------------------------------
    x = x_dec_ref[...]
    for n in range(n_blocks):
        vE, b1 = dvE_ref[n], dvH_ref[n]
        # masked self-attention
        z = split_proj(x, dwc1_ref[n])
        att = attention(z, z, bias_causal)
        x1 = _layernorm(out_proj(att, dwo1_ref[n], vE[0:1, :]) + x,
                        vE[1:2, :], vE[2:3, :])
        # cross-attention: shared bias-free core applied to [x1; enc_out] in one
        # matmul per column block -> Q = core(x1), V = K = core(enc_out).
        wc2 = dwc2_ref[n]
        xx = jnp.concatenate([x1, enc_out], axis=0)          # (2*BT, E)
        zq_parts, zkv_parts = [], []
        for c in range(g):
            zb = _mm(xx, wc2[c])                             # (2*BT, hs)
            zq_parts.append(zb[0:bt, :])
            zkv_parts.append(zb[bt:2 * bt, :])
        att = attention(jnp.concatenate(zq_parts, axis=0),
                        jnp.concatenate(zkv_parts, axis=0), bias_plain)
        x2 = _layernorm(out_proj(att, dwo2_ref[n], vE[3:4, :]) + x1,
                        vE[4:5, :], vE[5:6, :])
        # feed-forward
        f = feed_forward(x2, dw1_ref[n], b1, dw2_ref[n], vE[6:7, :])
        x = _layernorm(f + x2, vE[7:8, :], vE[8:9, :])

    # ---------------- final Linear on the row-major (B, T*E) flatten ----------
    # No in-kernel reshape: R = x @ Wf_wide gives every (time-block, vocab)
    # product for every row; a 0/1 mask keeps each row's own time block, a
    # constant "fold" matrix collapses the T*V columns back to V, and a
    # constant batch selector sums the T rows of each batch element.
    r = _mm(x, wfw_ref[...]) * fold_mask_ref[...]            # (BT, T*V)
    f = _mm(r, fold_sum_ref[...])                            # (BT, V)
    out = _mm(batch_sel_ref[...], f) + bfin_ref[...]         # (B, V)
    out_ref[...] = out.astype(out_ref.dtype)


# ------------------------------ host-side helpers -----------------------------

def _attn_bias(batch, time, g, masked):
    """Additive score mask for the 'vstack' head layout (row m = c*B*T + b*T + u)."""
    m = np.arange(g * batch * time)
    c, w = m // (batch * time), m % (batch * time)
    b, u = w // time, w % time
    p = u * g + c                       # flat (head*T + head_time) index
    h, i = p // time, p % time          # head, head-time of the quirky .view
    ok = (b[:, None] == b[None, :]) & (h[:, None] == h[None, :])
    if masked:
        ok &= i[:, None] >= i[None, :]
    return np.where(ok, 0.0, NEG).astype(np.float32)


def _final_consts(batch, time, vocab):
    q = np.arange(batch * time)
    col = np.arange(time * vocab)
    fold_mask = ((q[:, None] % time) == (col[None, :] // vocab)).astype(np.float32)
    fold_sum = np.tile(np.eye(vocab, dtype=np.float32), (time, 1))
    batch_sel = (q[None, :] // time == np.arange(batch)[:, None]).astype(np.float32)
    return fold_mask, fold_sum, batch_sel


def attentive_translator(packed, x_ids, target_ids):
    """Full forward pass: XLA does the two embedding gathers, one fused Pallas
    kernel does everything else."""
    B, T_in = x_ids.shape
    _, T_out = target_ids.shape
    assert T_in == T_out, "shared-core cross-attention requires equal block sizes"
    T = T_in
    E = packed["enc_emb"].shape[-1]
    g = packed["ewc"].shape[1]                   # n_heads
    V = packed["final_b"].shape[-1]
    BT = B * T

    # TODO(synk): nn.Embedding lookups are data-dependent gathers; they stay in
    # XLA (jnp.take) rather than a manual in-kernel DMA gather.
    x_enc = (jnp.take(packed["enc_emb"], x_ids, axis=0)
             + packed["enc_pos"]).reshape(BT, E).astype(jnp.float32)
    x_dec = (jnp.take(packed["dec_emb"], target_ids, axis=0)
             + packed["dec_pos"]).reshape(BT, E).astype(jnp.float32)

    bias_plain = _attn_bias(B, T, g, masked=False)
    bias_causal = _attn_bias(B, T, g, masked=True)
    fold_mask, fold_sum, batch_sel = _final_consts(B, T, V)

    # No grid / BlockSpecs: every operand is a full-array VMEM block (total
    # footprint ~0.25 MiB, far below any scoped-VMEM limit on v5e/v6e/v7x).
    return pl.pallas_call(
        _translator_kernel,
        out_shape=jax.ShapeDtypeStruct((B, V), jnp.float32),
    )(x_enc, x_dec, bias_plain, bias_causal,
      packed["ewc"], packed["ewo"], packed["ew1"], packed["ew2"],
      packed["evE"], packed["evH"],
      packed["dwc1"], packed["dwo1"], packed["dwc2"], packed["dwo2"],
      packed["dw1"], packed["dw2"], packed["dvE"], packed["dvH"],
      packed["wf_wide"], fold_mask, fold_sum, batch_sel, packed["final_b"])


# ----------------------- deterministic torch-style init -----------------------

def init_params(key, n_blocks, vocab_size, decoder_vocab_size, n_embeddings,
                n_heads, input_block_size, output_block_size,
                encoder_ff_scale, decoder_ff_scale):
    """Raw parameters in PyTorch layout ((out, in) weights, 1-D biases)."""
    del n_heads  # attention shapes are derived at pack time
    E = n_embeddings
    keys = iter(jax.random.split(key, 512))
    nk = lambda: next(keys)
    ones = jnp.ones((E,), jnp.float32)
    zeros = jnp.zeros((E,), jnp.float32)

    def linear(out_dim, in_dim, bias=True):
        k1, k2 = jax.random.split(nk())
        bound = 1.0 / math.sqrt(in_dim)
        w = jax.random.uniform(k1, (out_dim, in_dim), jnp.float32, -bound, bound)
        b = (jax.random.uniform(k2, (out_dim,), jnp.float32, -bound, bound)
             if bias else None)
        return w, b

    def enc_block():
        core_w, _ = linear(E, E, bias=False)
        out_w, out_b = linear(E, E)
        ff_w1, ff_b1 = linear(E * encoder_ff_scale, E)
        ff_w2, ff_b2 = linear(E, E * encoder_ff_scale)
        return dict(core_w=core_w, out_w=out_w, out_b=out_b,
                    ln1_g=ones, ln1_b=zeros,
                    ff_w1=ff_w1, ff_b1=ff_b1, ff_w2=ff_w2, ff_b2=ff_b2,
                    ln2_g=ones, ln2_b=zeros)

    def dec_block():
        s_core_w, _ = linear(E, E, bias=False)
        s_out_w, s_out_b = linear(E, E)
        c_core_w, _ = linear(E, E, bias=False)
        c_out_w, c_out_b = linear(E, E)
        ff_w1, ff_b1 = linear(E * decoder_ff_scale, E)
        ff_w2, ff_b2 = linear(E, E * decoder_ff_scale)
        return dict(self_core_w=s_core_w, self_out_w=s_out_w, self_out_b=s_out_b,
                    ln1_g=ones, ln1_b=zeros,
                    cross_core_w=c_core_w, cross_out_w=c_out_w, cross_out_b=c_out_b,
                    ln2_g=ones, ln2_b=zeros,
                    ff_w1=ff_w1, ff_b1=ff_b1, ff_w2=ff_w2, ff_b2=ff_b2,
                    ln3_g=ones, ln3_b=zeros)

    final_w, final_b = linear(decoder_vocab_size, E * output_block_size)
    return {
        "enc_emb": jax.random.normal(nk(), (vocab_size, E), jnp.float32),
        "enc_pos": jax.random.normal(nk(), (input_block_size, E), jnp.float32),
        "dec_emb": jax.random.normal(nk(), (decoder_vocab_size, E), jnp.float32),
        "dec_pos": jax.random.normal(nk(), (output_block_size, E), jnp.float32),
        "enc_blocks": [enc_block() for _ in range(n_blocks)],
        "dec_blocks": [dec_block() for _ in range(n_blocks)],
        "final_w": final_w, "final_b": final_b,
    }


def pack_params(raw, *, n_heads):
    """Pre-arrange raw torch-layout weights into the kernel's resident form."""
    E = raw["enc_emb"].shape[-1]
    assert E % n_heads == 0
    hs = E // n_heads
    g = n_heads
    T_out = raw["dec_pos"].shape[0]
    V = raw["final_b"].shape[0]

    def core_split(w):   # (out,in) -> (g, E, hs): [c] = W^T[:, c*hs:(c+1)*hs]
        return w.T.reshape(E, g, hs).transpose(1, 0, 2)

    def out_split(w):    # (out,in) -> (g, hs, E): [c] = W^T[c*hs:(c+1)*hs, :]
        return w.T.reshape(g, hs, E)

    def stack(blocks, fn):
        return jnp.stack([fn(b) for b in blocks])

    enc, dec = raw["enc_blocks"], raw["dec_blocks"]
    wf_t = raw["final_w"].T                                      # (T*E, V)
    wf_wide = wf_t.reshape(T_out, E, V).transpose(1, 0, 2).reshape(E, T_out * V)

    return {
        "enc_emb": raw["enc_emb"], "enc_pos": raw["enc_pos"],
        "dec_emb": raw["dec_emb"], "dec_pos": raw["dec_pos"],
        "ewc": stack(enc, lambda b: core_split(b["core_w"])),
        "ewo": stack(enc, lambda b: out_split(b["out_w"])),
        "ew1": stack(enc, lambda b: b["ff_w1"].T),
        "ew2": stack(enc, lambda b: b["ff_w2"].T),
        "evE": stack(enc, lambda b: jnp.stack([b["out_b"], b["ln1_g"], b["ln1_b"],
                                               b["ff_b2"], b["ln2_g"], b["ln2_b"]])),
        "evH": stack(enc, lambda b: b["ff_b1"][None, :]),
        "dwc1": stack(dec, lambda b: core_split(b["self_core_w"])),
        "dwo1": stack(dec, lambda b: out_split(b["self_out_w"])),
        "dwc2": stack(dec, lambda b: core_split(b["cross_core_w"])),
        "dwo2": stack(dec, lambda b: out_split(b["cross_out_w"])),
        "dw1": stack(dec, lambda b: b["ff_w1"].T),
        "dw2": stack(dec, lambda b: b["ff_w2"].T),
        "dvE": stack(dec, lambda b: jnp.stack([b["self_out_b"], b["ln1_g"], b["ln1_b"],
                                               b["cross_out_b"], b["ln2_g"], b["ln2_b"],
                                               b["ff_b2"], b["ln3_g"], b["ln3_b"]])),
        "dvH": stack(dec, lambda b: b["ff_b1"][None, :]),
        "wf_wide": wf_wide,
        "final_b": raw["final_b"][None, :],
    }


# ------------------- pure-JAX mirror of the PyTorch reference -----------------

def reference_forward(raw, x_ids, target_ids, *, n_heads):
    E = raw["enc_emb"].shape[-1]
    hs = E // n_heads
    nh = n_heads

    def layernorm(x, g, b):
        mu = jnp.mean(x, axis=-1, keepdims=True)
        var = jnp.mean((x - mu) ** 2, axis=-1, keepdims=True)
        return (x - mu) * jax.lax.rsqrt(var + 1e-5) * g + b

    def mha(core_w, out_w, out_b, V, K, Q, masked):
        B, T, _ = Q.shape
        Vc, Kc, Qc = (t @ core_w.T for t in (V, K, Q))     # shared bias-free core
        Vh, Kh, Qh = (t.reshape(B, nh, T, hs) for t in (Vc, Kc, Qc))  # quirky .view
        s = jnp.einsum("bhqd,bhkd->bhqk", Qh, Kh) / math.sqrt(hs)
        if masked:
            tril = jnp.tril(jnp.ones((T, T), jnp.float32))
            s = jnp.where(tril == 0, -jnp.inf, s)
        p = jax.nn.softmax(s, axis=-1)
        o = jnp.einsum("bhqk,bhkd->bhqd", p, Vh).reshape(B, T, E)
        return o @ out_w.T + out_b

    def ff(w1, b1, w2, b2, x):
        return jnp.maximum(x @ w1.T + b1, 0.0) @ w2.T + b2

    x = raw["enc_emb"][x_ids] + raw["enc_pos"]
    for blk in raw["enc_blocks"]:
        a = mha(blk["core_w"], blk["out_w"], blk["out_b"], x, x, x, False)
        x = layernorm(a + x, blk["ln1_g"], blk["ln1_b"])
        x = layernorm(ff(blk["ff_w1"], blk["ff_b1"], blk["ff_w2"], blk["ff_b2"], x) + x,
                      blk["ln2_g"], blk["ln2_b"])
    enc = x

    x = raw["dec_emb"][target_ids] + raw["dec_pos"]
    for blk in raw["dec_blocks"]:
        a = mha(blk["self_core_w"], blk["self_out_w"], blk["self_out_b"], x, x, x, True)
        x = layernorm(a + x, blk["ln1_g"], blk["ln1_b"])
        a = mha(blk["cross_core_w"], blk["cross_out_w"], blk["cross_out_b"],
                enc, enc, x, False)
        x = layernorm(a + x, blk["ln2_g"], blk["ln2_b"])
        x = layernorm(ff(blk["ff_w1"], blk["ff_b1"], blk["ff_w2"], blk["ff_b2"], x) + x,
                      blk["ln3_g"], blk["ln3_b"])

    B = x.shape[0]
    return x.reshape(B, -1) @ raw["final_w"].T + raw["final_b"]


# ------------------------------------ main ------------------------------------

if __name__ == "__main__":
    # Small config consistent with AttentiveTranslator.__init__
    N = 2
    vocab_size = 50
    decoder_vocab_size = 40
    n_embeddings = 32
    n_heads = 4
    input_block_size = 8
    output_block_size = 8            # must equal input_block_size (shared-core cross-attn)
    encoder_ff_scale = 2
    decoder_ff_scale = 2
    B = 2

    root = jax.random.PRNGKey(0)
    kp, kx, kt = jax.random.split(root, 3)

    raw = init_params(kp, N, vocab_size, decoder_vocab_size, n_embeddings,
                      n_heads, input_block_size, output_block_size,
                      encoder_ff_scale, decoder_ff_scale)
    packed = pack_params(raw, n_heads=n_heads)

    x_ids = jax.random.randint(kx, (B, input_block_size), 0, vocab_size,
                               dtype=jnp.int32)
    tgt_ids = jax.random.randint(kt, (B, output_block_size), 0, decoder_vocab_size,
                                 dtype=jnp.int32)

    fwd = jax.jit(attentive_translator)
    out = jax.block_until_ready(fwd(packed, x_ids, tgt_ids))

    assert out.shape == (B, decoder_vocab_size), out.shape
    assert out.dtype == jnp.float32
    assert bool(jnp.all(jnp.isfinite(out)))

    # Sanity check against a pure-JAX mirror of the PyTorch module.  Loose
    # tolerance covers the bf16 MXU operands + approx reciprocal; with
    # MXU_INPUT_DTYPE = jnp.float32 the match is ~1e-5.
    ref = np.asarray(reference_forward(raw, x_ids, tgt_ids, n_heads=n_heads))
    np.testing.assert_allclose(np.asarray(out), ref, rtol=1e-1, atol=2e-1)

    print("KERNEL_OK")
</pallas_src>

<mosaic_0001>
module attributes {stable_mosaic.version = 11 : i64} {
  func.func @_translator_kernel(%arg0: memref<16x32xf32, #tpu.memory_space<vmem>>, %arg1: memref<16x32xf32, #tpu.memory_space<vmem>>, %arg2: memref<64x64xf32, #tpu.memory_space<vmem>>, %arg3: memref<64x64xf32, #tpu.memory_space<vmem>>, %arg4: memref<2x4x32x8xf32, #tpu.memory_space<vmem>>, %arg5: memref<2x4x8x32xf32, #tpu.memory_space<vmem>>, %arg6: memref<2x32x64xf32, #tpu.memory_space<vmem>>, %arg7: memref<2x64x32xf32, #tpu.memory_space<vmem>>, %arg8: memref<2x6x32xf32, #tpu.memory_space<vmem>>, %arg9: memref<2x1x64xf32, #tpu.memory_space<vmem>>, %arg10: memref<2x4x32x8xf32, #tpu.memory_space<vmem>>, %arg11: memref<2x4x8x32xf32, #tpu.memory_space<vmem>>, %arg12: memref<2x4x32x8xf32, #tpu.memory_space<vmem>>, %arg13: memref<2x4x8x32xf32, #tpu.memory_space<vmem>>, %arg14: memref<2x32x64xf32, #tpu.memory_space<vmem>>, %arg15: memref<2x64x32xf32, #tpu.memory_space<vmem>>, %arg16: memref<2x9x32xf32, #tpu.memory_space<vmem>>, %arg17: memref<2x1x64xf32, #tpu.memory_space<vmem>>, %arg18: memref<32x320xf32, #tpu.memory_space<vmem>>, %arg19: memref<16x320xf32, #tpu.memory_space<vmem>>, %arg20: memref<320x40xf32, #tpu.memory_space<vmem>>, %arg21: memref<2x16xf32, #tpu.memory_space<vmem>>, %arg22: memref<1x40xf32, #tpu.memory_space<vmem>>, %arg23: memref<2x40xf32, #tpu.memory_space<vmem>>) attributes {dimension_semantics = [], scalar_prefetch = 0 : i64, scratch_operands = 0 : i64, tpu.core_type = #tpu.core_type<tc>} {
    %c0 = arith.constant 0 : index
    %c0_0 = arith.constant 0 : index
    %0 = vector.load %arg2[%c0, %c0_0] : memref<64x64xf32, #tpu.memory_space<vmem>>, vector<64x64xf32>
    %c0_1 = arith.constant 0 : index
    %c0_2 = arith.constant 0 : index
    %1 = vector.load %arg3[%c0_1, %c0_2] : memref<64x64xf32, #tpu.memory_space<vmem>>, vector<64x64xf32>
    %c0_3 = arith.constant 0 : index
    %c0_4 = arith.constant 0 : index
    %2 = vector.load %arg0[%c0_3, %c0_4] : memref<16x32xf32, #tpu.memory_space<vmem>>, vector<16x32xf32>
    %c0_5 = arith.constant 0 : index
    %c0_6 = arith.constant 0 : index
    %c0_7 = arith.constant 0 : index
    %c0_8 = arith.constant 0 : index
    %3 = vector.load %arg4[%c0_5, %c0_6, %c0_7, %c0_8] : memref<2x4x32x8xf32, #tpu.memory_space<vmem>>, vector<1x4x32x8xf32>
    %4 = vector.shape_cast %3 : vector<1x4x32x8xf32> to vector<4x32x8xf32>
    %c0_9 = arith.constant 0 : index
    %c0_10 = arith.constant 0 : index
    %c0_11 = arith.constant 0 : index
    %c0_12 = arith.constant 0 : index
    %5 = vector.load %arg5[%c0_9, %c0_10, %c0_11, %c0_12] : memref<2x4x8x32xf32, #tpu.memory_space<vmem>>, vector<1x4x8x32xf32>
    %6 = vector.shape_cast %5 : vector<1x4x8x32xf32> to vector<4x8x32xf32>
    %c0_13 = arith.constant 0 : index
    %c0_14 = arith.constant 0 : index
    %c0_15 = arith.constant 0 : index
    %7 = vector.load %arg8[%c0_13, %c0_14, %c0_15] : memref<2x6x32xf32, #tpu.memory_space<vmem>>, vector<1x6x32xf32>
    %8 = vector.shape_cast %7 : vector<1x6x32xf32> to vector<6x32xf32>
    %c0_16 = arith.constant 0 : index
    %c0_17 = arith.constant 0 : index
    %c0_18 = arith.constant 0 : index
    %9 = vector.load %arg9[%c0_16, %c0_17, %c0_18] : memref<2x1x64xf32, #tpu.memory_space<vmem>>, vector<1x1x64xf32>
    %10 = vector.shape_cast %9 : vector<1x1x64xf32> to vector<1x64xf32>
    %11 = vector.extract_strided_slice %4 {offsets = [0, 0, 0], sizes = [1, 32, 8], strides = [1, 1, 1]} : vector<4x32x8xf32> to vector<1x32x8xf32>
    %12 = vector.shape_cast %11 : vector<1x32x8xf32> to vector<32x8xf32>
    %13 = arith.truncf %2 : vector<16x32xf32> to vector<16x32xbf16>
    %14 = arith.truncf %12 : vector<32x8xf32> to vector<32x8xbf16>
    %cst = arith.constant dense<0.000000e+00> : vector<16x8xf32>
    %15 = tpu.matmul %13, %14, %cst {dimension_numbers = #tpu.dot_dimension_numbers<[1], [0], [0], [1], [0, 0, 1, 1], [], []>} : vector<16x32xbf16>, vector<32x8xbf16>, vector<16x8xf32> -> vector<16x8xf32>
    %16 = vector.extract_strided_slice %4 {offsets = [1, 0, 0], sizes = [1, 32, 8], strides = [1, 1, 1]} : vector<4x32x8xf32> to vector<1x32x8xf32>
    %17 = vector.shape_cast %16 : vector<1x32x8xf32> to vector<32x8xf32>
    %18 = arith.truncf %2 : vector<16x32xf32> to vector<16x32xbf16>
    %19 = arith.truncf %17 : vector<32x8xf32> to vector<32x8xbf16>
    %cst_19 = arith.constant dense<0.000000e+00> : vector<16x8xf32>
    %20 = tpu.matmul %18, %19, %cst_19 {dimension_numbers = #tpu.dot_dimension_numbers<[1], [0], [0], [1], [0, 0, 1, 1], [], []>} : vector<16x32xbf16>, vector<32x8xbf16>, vector<16x8xf32> -> vector<16x8xf32>
    %21 = vector.extract_strided_slice %4 {offsets = [2, 0, 0], sizes = [1, 32, 8], strides = [1, 1, 1]} : vector<4x32x8xf32> to vector<1x32x8xf32>
    %22 = vector.shape_cast %21 : vector<1x32x8xf32> to vector<32x8xf32>
    %23 = arith.truncf %2 : vector<16x32xf32> to vector<16x32xbf16>
    %24 = arith.truncf %22 : vector<32x8xf32> to vector<32x8xbf16>
    %cst_20 = arith.constant dense<0.000000e+00> : vector<16x8xf32>
    %25 = tpu.matmul %23, %24, %cst_20 {dimension_numbers = #tpu.dot_dimension_numbers<[1], [0], [0], [1], [0, 0, 1, 1], [], []>} : vector<16x32xbf16>, vector<32x8xbf16>, vector<16x8xf32> -> vector<16x8xf32>
    %26 = vector.extract_strided_slice %4 {offsets = [3, 0, 0], sizes = [1, 32, 8], strides = [1, 1, 1]} : vector<4x32x8xf32> to vector<1x32x8xf32>
    %27 = vector.shape_cast %26 : vector<1x32x8xf32> to vector<32x8xf32>
    %28 = arith.truncf %2 : vector<16x32xf32> to vector<16x32xbf16>
    %29 = arith.truncf %27 : vector<32x8xf32> to vector<32x8xbf16>
    %cst_21 = arith.constant dense<0.000000e+00> : vector<16x8xf32>
    %30 = tpu.matmul %28, %29, %cst_21 {dimension_numbers = #tpu.dot_dimension_numbers<[1], [0], [0], [1], [0, 0, 1, 1], [], []>} : vector<16x32xbf16>, vector<32x8xbf16>, vector<16x8xf32> -> vector<16x8xf32>
    %31 = tpu.concatenate %15, %20, %25, %30 in 0 : vector<16x8xf32>, vector<16x8xf32>, vector<16x8xf32>, vector<16x8xf32> -> vector<64x8xf32>
    %32 = arith.truncf %31 : vector<64x8xf32> to vector<64x8xbf16>
    %33 = arith.truncf %31 : vector<64x8xf32> to vector<64x8xbf16>
    "tpu.trace_start"() <{level = 10 : i32, message = "md,nd->mn"}> : () -> ()
    %cst_22 = arith.constant dense<0.000000e+00> : vector<64x64xf32>
    %34 = tpu.matmul %32, %33, %cst_22 {dimension_numbers = #tpu.dot_dimension_numbers<[1], [1], [0], [0], [0, 0, 1, 0], [], []>} : vector<64x8xbf16>, vector<64x8xbf16>, vector<64x64xf32> -> vector<64x64xf32>
    "tpu.trace_stop"() : () -> ()
    %cst_23 = arith.constant 0.353553385 : f32
    %35 = vector.broadcast %cst_23 : f32 to vector<64x64xf32>
    %36 = arith.mulf %34, %35 : vector<64x64xf32>
    %37 = arith.addf %36, %0 : vector<64x64xf32>
    %cst_24 = arith.constant dense<0xFF800000> : vector<64xf32>
    %38 = vector.multi_reduction <maximumf>, %37, %cst_24 [1] : vector<64x64xf32> to vector<64xf32>
    %39 = vector.shape_cast %38 : vector<64xf32> to vector<64x1xf32>
    %40 = vector.broadcast %39 : vector<64x1xf32> to vector<64x64xf32>
    %41 = arith.subf %37, %40 : vector<64x64xf32>
    %42 = math.exp %41 : vector<64x64xf32>
    %cst_25 = arith.constant dense<0.000000e+00> : vector<64xf32>
    %43 = vector.multi_reduction <add>, %42, %cst_25 [1] : vector<64x64xf32> to vector<64xf32>
    %44 = vector.shape_cast %43 : vector<64xf32> to vector<64x1xf32>
    %45 = tpu.reciprocal %44 {approx = true} : vector<64x1xf32> -> vector<64x1xf32>
    %46 = vector.broadcast %45 : vector<64x1xf32> to vector<64x64xf32>
    %47 = arith.mulf %42, %46 : vector<64x64xf32>
    %48 = arith.truncf %47 : vector<64x64xf32> to vector<64x64xbf16>
    %49 = arith.truncf %31 : vector<64x8xf32> to vector<64x8xbf16>
    %cst_26 = arith.constant dense<0.000000e+00> : vector<64x8xf32>
    %50 = tpu.matmul %48, %49, %cst_26 {dimension_numbers = #tpu.dot_dimension_numbers<[1], [0], [0], [1], [0, 0, 1, 1], [], []>} : vector<64x64xbf16>, vector<64x8xbf16>, vector<64x8xf32> -> vector<64x8xf32>
    %51 = vector.extract_strided_slice %8 {offsets = [0, 0], sizes = [1, 32], strides = [1, 1]} : vector<6x32xf32> to vector<1x32xf32>
    %52 = vector.extract_strided_slice %50 {offsets = [0, 0], sizes = [16, 8], strides = [1, 1]} : vector<64x8xf32> to vector<16x8xf32>
    %53 = vector.extract_strided_slice %6 {offsets = [0, 0, 0], sizes = [1, 8, 32], strides = [1, 1, 1]} : vector<4x8x32xf32> to vector<1x8x32xf32>
    %54 = vector.shape_cast %53 : vector<1x8x32xf32> to vector<8x32xf32>
    %55 = arith.truncf %52 : vector<16x8xf32> to vector<16x8xbf16>
    %56 = arith.truncf %54 : vector<8x32xf32> to vector<8x32xbf16>
    %cst_27 = arith.constant dense<0.000000e+00> : vector<16x32xf32>
    %57 = tpu.matmul %55, %56, %cst_27 {dimension_numbers = #tpu.dot_dimension_numbers<[1], [0], [0], [1], [0, 0, 1, 1], [], []>} : vector<16x8xbf16>, vector<8x32xbf16>, vector<16x32xf32> -> vector<16x32xf32>
    %58 = vector.extract_strided_slice %50 {offsets = [16, 0], sizes = [16, 8], strides = [1, 1]} : vector<64x8xf32> to vector<16x8xf32>
    %59 = vector.extract_strided_slice %6 {offsets = [1, 0, 0], sizes = [1, 8, 32], strides = [1, 1, 1]} : vector<4x8x32xf32> to vector<1x8x32xf32>
    %60 = vector.shape_cast %59 : vector<1x8x32xf32> to vector<8x32xf32>
    %61 = arith.truncf %58 : vector<16x8xf32> to vector<16x8xbf16>
    %62 = arith.truncf %60 : vector<8x32xf32> to vector<8x32xbf16>
    %cst_28 = arith.constant dense<0.000000e+00> : vector<16x32xf32>
    %63 = tpu.matmul %61, %62, %cst_28 {dimension_numbers = #tpu.dot_dimension_numbers<[1], [0], [0], [1], [0, 0, 1, 1], [], []>} : vector<16x8xbf16>, vector<8x32xbf16>, vector<16x32xf32> -> vector<16x32xf32>
    %64 = arith.addf %57, %63 : vector<16x32xf32>
    %65 = vector.extract_strided_slice %50 {offsets = [32, 0], sizes = [16, 8], strides = [1, 1]} : vector<64x8xf32> to vector<16x8xf32>
    %66 = vector.extract_strided_slice %6 {offsets = [2, 0, 0], sizes = [1, 8, 32], strides = [1, 1, 1]} : vector<4x8x32xf32> to vector<1x8x32xf32>
    %67 = vector.shape_cast %66 : vector<1x8x32xf32> to vector<8x32xf32>
    %68 = arith.truncf %65 : vector<16x8xf32> to vector<16x8xbf16>
    %69 = arith.truncf %67 : vector<8x32xf32> to vector<8x32xbf16>
    %cst_29 = arith.constant dense<0.000000e+00> : vector<16x32xf32>
    %70 = tpu.matmul %68, %69, %cst_29 {dimension_numbers = #tpu.dot_dimension_numbers<[1], [0], [0], [1], [0, 0, 1, 1], [], []>} : vector<16x8xbf16>, vector<8x32xbf16>, vector<16x32xf32> -> vector<16x32xf32>
    %71 = arith.addf %64, %70 : vector<16x32xf32>
    %72 = vector.extract_strided_slice %50 {offsets = [48, 0], sizes = [16, 8], strides = [1, 1]} : vector<64x8xf32> to vector<16x8xf32>
    %73 = vector.extract_strided_slice %6 {offsets = [3, 0, 0], sizes = [1, 8, 32], strides = [1, 1, 1]} : vector<4x8x32xf32> to vector<1x8x32xf32>
    %74 = vector.shape_cast %73 : vector<1x8x32xf32> to vector<8x32xf32>
    %75 = arith.truncf %72 : vector<16x8xf32> to vector<16x8xbf16>
    %76 = arith.truncf %74 : vector<8x32xf32> to vector<8x32xbf16>
    %cst_30 = arith.constant dense<0.000000e+00> : vector<16x32xf32>
    %77 = tpu.matmul %75, %76, %cst_30 {dimension_numbers = #tpu.dot_dimension_numbers<[1], [0], [0], [1], [0, 0, 1, 1], [], []>} : vector<16x8xbf16>, vector<8x32xbf16>, vector<16x32xf32> -> vector<16x32xf32>
    %78 = arith.addf %71, %77 : vector<16x32xf32>
    %79 = vector.broadcast %51 : vector<1x32xf32> to vector<16x32xf32>
    %80 = arith.addf %78, %79 : vector<16x32xf32>
    %81 = arith.addf %80, %2 : vector<16x32xf32>
    %82 = vector.extract_strided_slice %8 {offsets = [1, 0], sizes = [1, 32], strides = [1, 1]} : vector<6x32xf32> to vector<1x32xf32>
    %83 = vector.extract_strided_slice %8 {offsets = [2, 0], sizes = [1, 32], strides = [1, 1]} : vector<6x32xf32> to vector<1x32xf32>
    %cst_31 = arith.constant dense<0.000000e+00> : vector<16xf32>
    %84 = vector.multi_reduction <add>, %81, %cst_31 [1] : vector<16x32xf32> to vector<16xf32>
    %85 = vector.shape_cast %84 : vector<16xf32> to vector<16x1xf32>
    %cst_32 = arith.constant 3.200000e+01 : f32
    %86 = vector.broadcast %cst_32 : f32 to vector<16x1xf32>
    %87 = arith.divf %85, %86 : vector<16x1xf32>
    %88 = vector.broadcast %87 : vector<16x1xf32> to vector<16x32xf32>
    %89 = arith.subf %81, %88 : vector<16x32xf32>
    %90 = arith.mulf %89, %89 : vector<16x32xf32>
    %cst_33 = arith.constant dense<0.000000e+00> : vector<16xf32>
    %91 = vector.multi_reduction <add>, %90, %cst_33 [1] : vector<16x32xf32> to vector<16xf32>
    %92 = vector.shape_cast %91 : vector<16xf32> to vector<16x1xf32>
    %cst_34 = arith.constant 3.200000e+01 : f32
    %93 = vector.broadcast %cst_34 : f32 to vector<16x1xf32>
    %94 = arith.divf %92, %93 : vector<16x1xf32>
    %cst_35 = arith.constant 9.99999974E-6 : f32
    %95 = vector.broadcast %cst_35 : f32 to vector<16x1xf32>
    %96 = arith.addf %94, %95 : vector<16x1xf32>
    %97 = math.rsqrt %96 : vector<16x1xf32>
    %98 = vector.broadcast %97 : vector<16x1xf32> to vector<16x32xf32>
    %99 = arith.mulf %89, %98 : vector<16x32xf32>
    %100 = vector.broadcast %82 : vector<1x32xf32> to vector<16x32xf32>
    %101 = arith.mulf %99, %100 : vector<16x32xf32>
    %102 = vector.broadcast %83 : vector<1x32xf32> to vector<16x32xf32>
    %103 = arith.addf %101, %102 : vector<16x32xf32>
    %c0_36 = arith.constant 0 : index
    %c0_37 = arith.constant 0 : index
    %c0_38 = arith.constant 0 : index
    %104 = vector.load %arg6[%c0_36, %c0_37, %c0_38] : memref<2x32x64xf32, #tpu.memory_space<vmem>>, vector<1x32x64xf32>
    %105 = vector.shape_cast %104 : vector<1x32x64xf32> to vector<32x64xf32>
    %c0_39 = arith.constant 0 : index
    %c0_40 = arith.constant 0 : index
    %c0_41 = arith.constant 0 : index
    %106 = vector.load %arg7[%c0_39, %c0_40, %c0_41] : memref<2x64x32xf32, #tpu.memory_space<vmem>>, vector<1x64x32xf32>
    %107 = vector.shape_cast %106 : vector<1x64x32xf32> to vector<64x32xf32>
    %108 = vector.extract_strided_slice %8 {offsets = [3, 0], sizes = [1, 32], strides = [1, 1]} : vector<6x32xf32> to vector<1x32xf32>
    %109 = arith.truncf %103 : vector<16x32xf32> to vector<16x32xbf16>
    %110 = arith.truncf %105 : vector<32x64xf32> to vector<32x64xbf16>
    %cst_42 = arith.constant dense<0.000000e+00> : vector<16x64xf32>
    %111 = tpu.matmul %109, %110, %cst_42 {dimension_numbers = #tpu.dot_dimension_numbers<[1], [0], [0], [1], [0, 0, 1, 1], [], []>} : vector<16x32xbf16>, vector<32x64xbf16>, vector<16x64xf32> -> vector<16x64xf32>
    %112 = vector.broadcast %10 : vector<1x64xf32> to vector<16x64xf32>
    %113 = arith.addf %111, %112 : vector<16x64xf32>
    %cst_43 = arith.constant 0.000000e+00 : f32
    %114 = vector.broadcast %cst_43 : f32 to vector<16x64xf32>
    %115 = arith.maximumf %113, %114 : vector<16x64xf32>
    %116 = arith.truncf %115 : vector<16x64xf32> to vector<16x64xbf16>
    %117 = arith.truncf %107 : vector<64x32xf32> to vector<64x32xbf16>
    %cst_44 = arith.constant dense<0.000000e+00> : vector<16x32xf32>
    %118 = tpu.matmul %116, %117, %cst_44 {dimension_numbers = #tpu.dot_dimension_numbers<[1], [0], [0], [1], [0, 0, 1, 1], [], []>} : vector<16x64xbf16>, vector<64x32xbf16>, vector<16x32xf32> -> vector<16x32xf32>
    %119 = vector.broadcast %108 : vector<1x32xf32> to vector<16x32xf32>
    %120 = arith.addf %118, %119 : vector<16x32xf32>
    %121 = arith.addf %120, %103 : vector<16x32xf32>
    %122 = vector.extract_strided_slice %8 {offsets = [4, 0], sizes = [1, 32], strides = [1, 1]} : vector<6x32xf32> to vector<1x32xf32>
    %123 = vector.extract_strided_slice %8 {offsets = [5, 0], sizes = [1, 32], strides = [1, 1]} : vector<6x32xf32> to vector<1x32xf32>
    %cst_45 = arith.constant dense<0.000000e+00> : vector<16xf32>
    %124 = vector.multi_reduction <add>, %121, %cst_45 [1] : vector<16x32xf32> to vector<16xf32>
    %125 = vector.shape_cast %124 : vector<16xf32> to vector<16x1xf32>
    %cst_46 = arith.constant 3.200000e+01 : f32
    %126 = vector.broadcast %cst_46 : f32 to vector<16x1xf32>
    %127 = arith.divf %125, %126 : vector<16x1xf32>
    %128 = vector.broadcast %127 : vector<16x1xf32> to vector<16x32xf32>
    %129 = arith.subf %121, %128 : vector<16x32xf32>
    %130 = arith.mulf %129, %129 : vector<16x32xf32>
    %cst_47 = arith.constant dense<0.000000e+00> : vector<16xf32>
    %131 = vector.multi_reduction <add>, %130, %cst_47 [1] : vector<16x32xf32> to vector<16xf32>
    %132 = vector.shape_cast %131 : vector<16xf32> to vector<16x1xf32>
    %cst_48 = arith.constant 3.200000e+01 : f32
    %133 = vector.broadcast %cst_48 : f32 to vector<16x1xf32>
    %134 = arith.divf %132, %133 : vector<16x1xf32>
    %cst_49 = arith.constant 9.99999974E-6 : f32
    %135 = vector.broadcast %cst_49 : f32 to vector<16x1xf32>
    %136 = arith.addf %134, %135 : vector<16x1xf32>
    %137 = math.rsqrt %136 : vector<16x1xf32>
    %138 = vector.broadcast %137 : vector<16x1xf32> to vector<16x32xf32>
    %139 = arith.mulf %129, %138 : vector<16x32xf32>
    %140 = vector.broadcast %122 : vector<1x32xf32> to vector<16x32xf32>
    %141 = arith.mulf %139, %140 : vector<16x32xf32>
    %142 = vector.broadcast %123 : vector<1x32xf32> to vector<16x32xf32>
    %143 = arith.addf %141, %142 : vector<16x32xf32>
    %c1 = arith.constant 1 : index
    %c0_50 = arith.constant 0 : index
    %c0_51 = arith.constant 0 : index
    %c0_52 = arith.constant 0 : index
    %144 = vector.load %arg4[%c1, %c0_50, %c0_51, %c0_52] : memref<2x4x32x8xf32, #tpu.memory_space<vmem>>, vector<1x4x32x8xf32>
    %145 = vector.shape_cast %144 : vector<1x4x32x8xf32> to vector<4x32x8xf32>
    %c1_53 = arith.constant 1 : index
    %c0_54 = arith.constant 0 : index
    %c0_55 = arith.constant 0 : index
    %c0_56 = arith.constant 0 : index
    %146 = vector.load %arg5[%c1_53, %c0_54, %c0_55, %c0_56] : memref<2x4x8x32xf32, #tpu.memory_space<vmem>>, vector<1x4x8x32xf32>
    %147 = vector.shape_cast %146 : vector<1x4x8x32xf32> to vector<4x8x32xf32>
    %c1_57 = arith.constant 1 : index
    %c0_58 = arith.constant 0 : index
    %c0_59 = arith.constant 0 : index
    %148 = vector.load %arg8[%c1_57, %c0_58, %c0_59] : memref<2x6x32xf32, #tpu.memory_space<vmem>>, vector<1x6x32xf32>
    %149 = vector.shape_cast %148 : vector<1x6x32xf32> to vector<6x32xf32>
    %c1_60 = arith.constant 1 : index
    %c0_61 = arith.constant 0 : index
    %c0_62 = arith.constant 0 : index
    %150 = vector.load %arg9[%c1_60, %c0_61, %c0_62] : memref<2x1x64xf32, #tpu.memory_space<vmem>>, vector<1x1x64xf32>
    %151 = vector.shape_cast %150 : vector<1x1x64xf32> to vector<1x64xf32>
    %152 = vector.extract_strided_slice %145 {offsets = [0, 0, 0], sizes = [1, 32, 8], strides = [1, 1, 1]} : vector<4x32x8xf32> to vector<1x32x8xf32>
    %153 = vector.shape_cast %152 : vector<1x32x8xf32> to vector<32x8xf32>
    %154 = arith.truncf %143 : vector<16x32xf32> to vector<16x32xbf16>
    %155 = arith.truncf %153 : vector<32x8xf32> to vector<32x8xbf16>
    %cst_63 = arith.constant dense<0.000000e+00> : vector<16x8xf32>
    %156 = tpu.matmul %154, %155, %cst_63 {dimension_numbers = #tpu.dot_dimension_numbers<[1], [0], [0], [1], [0, 0, 1, 1], [], []>} : vector<16x32xbf16>, vector<32x8xbf16>, vector<16x8xf32> -> vector<16x8xf32>
    %157 = vector.extract_strided_slice %145 {offsets = [1, 0, 0], sizes = [1, 32, 8], strides = [1, 1, 1]} : vector<4x32x8xf32> to vector<1x32x8xf32>
    %158 = vector.shape_cast %157 : vector<1x32x8xf32> to vector<32x8xf32>
    %159 = arith.truncf %143 : vector<16x32xf32> to vector<16x32xbf16>
    %160 = arith.truncf %158 : vector<32x8xf32> to vector<32x8xbf16>
    %cst_64 = arith.constant dense<0.000000e+00> : vector<16x8xf32>
    %161 = tpu.matmul %159, %160, %cst_64 {dimension_numbers = #tpu.dot_dimension_numbers<[1], [0], [0], [1], [0, 0, 1, 1], [], []>} : vector<16x32xbf16>, vector<32x8xbf16>, vector<16x8xf32> -> vector<16x8xf32>
    %162 = vector.extract_strided_slice %145 {offsets = [2, 0, 0], sizes = [1, 32, 8], strides = [1, 1, 1]} : vector<4x32x8xf32> to vector<1x32x8xf32>
    %163 = vector.shape_cast %162 : vector<1x32x8xf32> to vector<32x8xf32>
    %164 = arith.truncf %143 : vector<16x32xf32> to vector<16x32xbf16>
    %165 = arith.truncf %163 : vector<32x8xf32> to vector<32x8xbf16>
    %cst_65 = arith.constant dense<0.000000e+00> : vector<16x8xf32>
    %166 = tpu.matmul %164, %165, %cst_65 {dimension_numbers = #tpu.dot_dimension_numbers<[1], [0], [0], [1], [0, 0, 1, 1], [], []>} : vector<16x32xbf16>, vector<32x8xbf16>, vector<16x8xf32> -> vector<16x8xf32>
    %167 = vector.extract_strided_slice %145 {offsets = [3, 0, 0], sizes = [1, 32, 8], strides = [1, 1, 1]} : vector<4x32x8xf32> to vector<1x32x8xf32>
    %168 = vector.shape_cast %167 : vector<1x32x8xf32> to vector<32x8xf32>
    %169 = arith.truncf %143 : vector<16x32xf32> to vector<16x32xbf16>
    %170 = arith.truncf %168 : vector<32x8xf32> to vector<32x8xbf16>
    %cst_66 = arith.constant dense<0.000000e+00> : vector<16x8xf32>
    %171 = tpu.matmul %169, %170, %cst_66 {dimension_numbers = #tpu.dot_dimension_numbers<[1], [0], [0], [1], [0, 0, 1, 1], [], []>} : vector<16x32xbf16>, vector<32x8xbf16>, vector<16x8xf32> -> vector<16x8xf32>
    %172 = tpu.concatenate %156, %161, %166, %171 in 0 : vector<16x8xf32>, vector<16x8xf32>, vector<16x8xf32>, vector<16x8xf32> -> vector<64x8xf32>
    %173 = arith.truncf %172 : vector<64x8xf32> to vector<64x8xbf16>
    %174 = arith.truncf %172 : vector<64x8xf32> to vector<64x8xbf16>
    "tpu.trace_start"() <{level = 10 : i32, message = "md,nd->mn"}> : () -> ()
    %cst_67 = arith.constant dense<0.000000e+00> : vector<64x64xf32>
    %175 = tpu.matmul %173, %174, %cst_67 {dimension_numbers = #tpu.dot_dimension_numbers<[1], [1], [0], [0], [0, 0, 1, 0], [], []>} : vector<64x8xbf16>, vector<64x8xbf16>, vector<64x64xf32> -> vector<64x64xf32>
    "tpu.trace_stop"() : () -> ()
    %cst_68 = arith.constant 0.353553385 : f32
    %176 = vector.broadcast %cst_68 : f32 to vector<64x64xf32>
    %177 = arith.mulf %175, %176 : vector<64x64xf32>
    %178 = arith.addf %177, %0 : vector<64x64xf32>
    %cst_69 = arith.constant dense<0xFF800000> : vector<64xf32>
    %179 = vector.multi_reduction <maximumf>, %178, %cst_69 [1] : vector<64x64xf32> to vector<64xf32>
    %180 = vector.shape_cast %179 : vector<64xf32> to vector<64x1xf32>
    %181 = vector.broadcast %180 : vector<64x1xf32> to vector<64x64xf32>
    %182 = arith.subf %178, %181 : vector<64x64xf32>
    %183 = math.exp %182 : vector<64x64xf32>
    %cst_70 = arith.constant dense<0.000000e+00> : vector<64xf32>
    %184 = vector.multi_reduction <add>, %183, %cst_70 [1] : vector<64x64xf32> to vector<64xf32>
    %185 = vector.shape_cast %184 : vector<64xf32> to vector<64x1xf32>
    %186 = tpu.reciprocal %185 {approx = true} : vector<64x1xf32> -> vector<64x1xf32>
    %187 = vector.broadcast %186 : vector<64x1xf32> to vector<64x64xf32>
    %188 = arith.mulf %183, %187 : vector<64x64xf32>
    %189 = arith.truncf %188 : vector<64x64xf32> to vector<64x64xbf16>
    %190 = arith.truncf %172 : vector<64x8xf32> to vector<64x8xbf16>
    %cst_71 = arith.constant dense<0.000000e+00> : vector<64x8xf32>
    %191 = tpu.matmul %189, %190, %cst_71 {dimension_numbers = #tpu.dot_dimension_numbers<[1], [0], [0], [1], [0, 0, 1, 1], [], []>} : vector<64x64xbf16>, vector<64x8xbf16>, vector<64x8xf32> -> vector<64x8xf32>
    %192 = vector.extract_strided_slice %149 {offsets = [0, 0], sizes = [1, 32], strides = [1, 1]} : vector<6x32xf32> to vector<1x32xf32>
    %193 = vector.extract_strided_slice %191 {offsets = [0, 0], sizes = [16, 8], strides = [1, 1]} : vector<64x8xf32> to vector<16x8xf32>
    %194 = vector.extract_strided_slice %147 {offsets = [0, 0, 0], sizes = [1, 8, 32], strides = [1, 1, 1]} : vector<4x8x32xf32> to vector<1x8x32xf32>
    %195 = vector.shape_cast %194 : vector<1x8x32xf32> to vector<8x32xf32>
    %196 = arith.truncf %193 : vector<16x8xf32> to vector<16x8xbf16>
    %197 = arith.truncf %195 : vector<8x32xf32> to vector<8x32xbf16>
    %cst_72 = arith.constant dense<0.000000e+00> : vector<16x32xf32>
    %198 = tpu.matmul %196, %197, %cst_72 {dimension_numbers = #tpu.dot_dimension_numbers<[1], [0], [0], [1], [0, 0, 1, 1], [], []>} : vector<16x8xbf16>, vector<8x32xbf16>, vector<16x32xf32> -> vector<16x32xf32>
    %199 = vector.extract_strided_slice %191 {offsets = [16, 0], sizes = [16, 8], strides = [1, 1]} : vector<64x8xf32> to vector<16x8xf32>
    %200 = vector.extract_strided_slice %147 {offsets = [1, 0, 0], sizes = [1, 8, 32], strides = [1, 1, 1]} : vector<4x8x32xf32> to vector<1x8x32xf32>
    %201 = vector.shape_cast %200 : vector<1x8x32xf32> to vector<8x32xf32>
    %202 = arith.truncf %199 : vector<16x8xf32> to vector<16x8xbf16>
    %203 = arith.truncf %201 : vector<8x32xf32> to vector<8x32xbf16>
    %cst_73 = arith.constant dense<0.000000e+00> : vector<16x32xf32>
    %204 = tpu.matmul %202, %203, %cst_73 {dimension_numbers = #tpu.dot_dimension_numbers<[1], [0], [0], [1], [0, 0, 1, 1], [], []>} : vector<16x8xbf16>, vector<8x32xbf16>, vector<16x32xf32> -> vector<16x32xf32>
    %205 = arith.addf %198, %204 : vector<16x32xf32>
    %206 = vector.extract_strided_slice %191 {offsets = [32, 0], sizes = [16, 8], strides = [1, 1]} : vector<64x8xf32> to vector<16x8xf32>
    %207 = vector.extract_strided_slice %147 {offsets = [2, 0, 0], sizes = [1, 8, 32], strides = [1, 1, 1]} : vector<4x8x32xf32> to vector<1x8x32xf32>
    %208 = vector.shape_cast %207 : vector<1x8x32xf32> to vector<8x32xf32>
    %209 = arith.truncf %206 : vector<16x8xf32> to vector<16x8xbf16>
    %210 = arith.truncf %208 : vector<8x32xf32> to vector<8x32xbf16>
    %cst_74 = arith.constant dense<0.000000e+00> : vector<16x32xf32>
    %211 = tpu.matmul %209, %210, %cst_74 {dimension_numbers = #tpu.dot_dimension_numbers<[1], [0], [0], [1], [0, 0, 1, 1], [], []>} : vector<16x8xbf16>, vector<8x32xbf16>, vector<16x32xf32> -> vector<16x32xf32>
    %212 = arith.addf %205, %211 : vector<16x32xf32>
    %213 = vector.extract_strided_slice %191 {offsets = [48, 0], sizes = [16, 8], strides = [1, 1]} : vector<64x8xf32> to vector<16x8xf32>
    %214 = vector.extract_strided_slice %147 {offsets = [3, 0, 0], sizes = [1, 8, 32], strides = [1, 1, 1]} : vector<4x8x32xf32> to vector<1x8x32xf32>
    %215 = vector.shape_cast %214 : vector<1x8x32xf32> to vector<8x32xf32>
    %216 = arith.truncf %213 : vector<16x8xf32> to vector<16x8xbf16>
    %217 = arith.truncf %215 : vector<8x32xf32> to vector<8x32xbf16>
    %cst_75 = arith.constant dense<0.000000e+00> : vector<16x32xf32>
    %218 = tpu.matmul %216, %217, %cst_75 {dimension_numbers = #tpu.dot_dimension_numbers<[1], [0], [0], [1], [0, 0, 1, 1], [], []>} : vector<16x8xbf16>, vector<8x32xbf16>, vector<16x32xf32> -> vector<16x32xf32>
    %219 = arith.addf %212, %218 : vector<16x32xf32>
    %220 = vector.broadcast %192 : vector<1x32xf32> to vector<16x32xf32>
    %221 = arith.addf %219, %220 : vector<16x32xf32>
    %222 = arith.addf %221, %143 : vector<16x32xf32>
    %223 = vector.extract_strided_slice %149 {offsets = [1, 0], sizes = [1, 32], strides = [1, 1]} : vector<6x32xf32> to vector<1x32xf32>
    %224 = vector.extract_strided_slice %149 {offsets = [2, 0], sizes = [1, 32], strides = [1, 1]} : vector<6x32xf32> to vector<1x32xf32>
    %cst_76 = arith.constant dense<0.000000e+00> : vector<16xf32>
    %225 = vector.multi_reduction <add>, %222, %cst_76 [1] : vector<16x32xf32> to vector<16xf32>
    %226 = vector.shape_cast %225 : vector<16xf32> to vector<16x1xf32>
    %cst_77 = arith.constant 3.200000e+01 : f32
    %227 = vector.broadcast %cst_77 : f32 to vector<16x1xf32>
    %228 = arith.divf %226, %227 : vector<16x1xf32>
    %229 = vector.broadcast %228 : vector<16x1xf32> to vector<16x32xf32>
    %230 = arith.subf %222, %229 : vector<16x32xf32>
    %231 = arith.mulf %230, %230 : vector<16x32xf32>
    %cst_78 = arith.constant dense<0.000000e+00> : vector<16xf32>
    %232 = vector.multi_reduction <add>, %231, %cst_78 [1] : vector<16x32xf32> to vector<16xf32>
    %233 = vector.shape_cast %232 : vector<16xf32> to vector<16x1xf32>
    %cst_79 = arith.constant 3.200000e+01 : f32
    %234 = vector.broadcast %cst_79 : f32 to vector<16x1xf32>
    %235 = arith.divf %233, %234 : vector<16x1xf32>
    %cst_80 = arith.constant 9.99999974E-6 : f32
    %236 = vector.broadcast %cst_80 : f32 to vector<16x1xf32>
    %237 = arith.addf %235, %236 : vector<16x1xf32>
    %238 = math.rsqrt %237 : vector<16x1xf32>
    %239 = vector.broadcast %238 : vector<16x1xf32> to vector<16x32xf32>
    %240 = arith.mulf %230, %239 : vector<16x32xf32>
    %241 = vector.broadcast %223 : vector<1x32xf32> to vector<16x32xf32>
    %242 = arith.mulf %240, %241 : vector<16x32xf32>
    %243 = vector.broadcast %224 : vector<1x32xf32> to vector<16x32xf32>
    %244 = arith.addf %242, %243 : vector<16x32xf32>
    %c1_81 = arith.constant 1 : index
    %c0_82 = arith.constant 0 : index
    %c0_83 = arith.constant 0 : index
    %245 = vector.load %arg6[%c1_81, %c0_82, %c0_83] : memref<2x32x64xf32, #tpu.memory_space<vmem>>, vector<1x32x64xf32>
    %246 = vector.shape_cast %245 : vector<1x32x64xf32> to vector<32x64xf32>
    %c1_84 = arith.constant 1 : index
    %c0_85 = arith.constant 0 : index
    %c0_86 = arith.constant 0 : index
    %247 = vector.load %arg7[%c1_84, %c0_85, %c0_86] : memref<2x64x32xf32, #tpu.memory_space<vmem>>, vector<1x64x32xf32>
    %248 = vector.shape_cast %247 : vector<1x64x32xf32> to vector<64x32xf32>
    %249 = vector.extract_strided_slice %149 {offsets = [3, 0], sizes = [1, 32], strides = [1, 1]} : vector<6x32xf32> to vector<1x32xf32>
    %250 = arith.truncf %244 : vector<16x32xf32> to vector<16x32xbf16>
    %251 = arith.truncf %246 : vector<32x64xf32> to vector<32x64xbf16>
    %cst_87 = arith.constant dense<0.000000e+00> : vector<16x64xf32>
    %252 = tpu.matmul %250, %251, %cst_87 {dimension_numbers = #tpu.dot_dimension_numbers<[1], [0], [0], [1], [0, 0, 1, 1], [], []>} : vector<16x32xbf16>, vector<32x64xbf16>, vector<16x64xf32> -> vector<16x64xf32>
    %253 = vector.broadcast %151 : vector<1x64xf32> to vector<16x64xf32>
    %254 = arith.addf %252, %253 : vector<16x64xf32>
    %cst_88 = arith.constant 0.000000e+00 : f32
    %255 = vector.broadcast %cst_88 : f32 to vector<16x64xf32>
    %256 = arith.maximumf %254, %255 : vector<16x64xf32>
    %257 = arith.truncf %256 : vector<16x64xf32> to vector<16x64xbf16>
    %258 = arith.truncf %248 : vector<64x32xf32> to vector<64x32xbf16>
    %cst_89 = arith.constant dense<0.000000e+00> : vector<16x32xf32>
    %259 = tpu.matmul %257, %258, %cst_89 {dimension_numbers = #tpu.dot_dimension_numbers<[1], [0], [0], [1], [0, 0, 1, 1], [], []>} : vector<16x64xbf16>, vector<64x32xbf16>, vector<16x32xf32> -> vector<16x32xf32>
    %260 = vector.broadcast %249 : vector<1x32xf32> to vector<16x32xf32>
    %261 = arith.addf %259, %260 : vector<16x32xf32>
    %262 = arith.addf %261, %244 : vector<16x32xf32>
    %263 = vector.extract_strided_slice %149 {offsets = [4, 0], sizes = [1, 32], strides = [1, 1]} : vector<6x32xf32> to vector<1x32xf32>
    %264 = vector.extract_strided_slice %149 {offsets = [5, 0], sizes = [1, 32], strides = [1, 1]} : vector<6x32xf32> to vector<1x32xf32>
    %cst_90 = arith.constant dense<0.000000e+00> : vector<16xf32>
    %265 = vector.multi_reduction <add>, %262, %cst_90 [1] : vector<16x32xf32> to vector<16xf32>
    %266 = vector.shape_cast %265 : vector<16xf32> to vector<16x1xf32>
    %cst_91 = arith.constant 3.200000e+01 : f32
    %267 = vector.broadcast %cst_91 : f32 to vector<16x1xf32>
    %268 = arith.divf %266, %267 : vector<16x1xf32>
    %269 = vector.broadcast %268 : vector<16x1xf32> to vector<16x32xf32>
    %270 = arith.subf %262, %269 : vector<16x32xf32>
    %271 = arith.mulf %270, %270 : vector<16x32xf32>
    %cst_92 = arith.constant dense<0.000000e+00> : vector<16xf32>
    %272 = vector.multi_reduction <add>, %271, %cst_92 [1] : vector<16x32xf32> to vector<16xf32>
    %273 = vector.shape_cast %272 : vector<16xf32> to vector<16x1xf32>
    %cst_93 = arith.constant 3.200000e+01 : f32
    %274 = vector.broadcast %cst_93 : f32 to vector<16x1xf32>
    %275 = arith.divf %273, %274 : vector<16x1xf32>
    %cst_94 = arith.constant 9.99999974E-6 : f32
    %276 = vector.broadcast %cst_94 : f32 to vector<16x1xf32>
    %277 = arith.addf %275, %276 : vector<16x1xf32>
    %278 = math.rsqrt %277 : vector<16x1xf32>
    %279 = vector.broadcast %278 : vector<16x1xf32> to vector<16x32xf32>
    %280 = arith.mulf %270, %279 : vector<16x32xf32>
    %281 = vector.broadcast %263 : vector<1x32xf32> to vector<16x32xf32>
    %282 = arith.mulf %280, %281 : vector<16x32xf32>
    %283 = vector.broadcast %264 : vector<1x32xf32> to vector<16x32xf32>
    %284 = arith.addf %282, %283 : vector<16x32xf32>
    %c0_95 = arith.constant 0 : index
    %c0_96 = arith.constant 0 : index
    %285 = vector.load %arg1[%c0_95, %c0_96] : memref<16x32xf32, #tpu.memory_space<vmem>>, vector<16x32xf32>
    %c0_97 = arith.constant 0 : index
    %c0_98 = arith.constant 0 : index
    %c0_99 = arith.constant 0 : index
    %286 = vector.load %arg16[%c0_97, %c0_98, %c0_99] : memref<2x9x32xf32, #tpu.memory_space<vmem>>, vector<1x9x32xf32>
    %287 = vector.shape_cast %286 : vector<1x9x32xf32> to vector<9x32xf32>
    %c0_100 = arith.constant 0 : index
    %c0_101 = arith.constant 0 : index
    %c0_102 = arith.constant 0 : index
    %288 = vector.load %arg17[%c0_100, %c0_101, %c0_102] : memref<2x1x64xf32, #tpu.memory_space<vmem>>, vector<1x1x64xf32>
    %289 = vector.shape_cast %288 : vector<1x1x64xf32> to vector<1x64xf32>
    %c0_103 = arith.constant 0 : index
    %c0_104 = arith.constant 0 : index
    %c0_105 = arith.constant 0 : index
    %c0_106 = arith.constant 0 : index
    %290 = vector.load %arg10[%c0_103, %c0_104, %c0_105, %c0_106] : memref<2x4x32x8xf32, #tpu.memory_space<vmem>>, vector<1x4x32x8xf32>
    %291 = vector.shape_cast %290 : vector<1x4x32x8xf32> to vector<4x32x8xf32>
    %292 = vector.extract_strided_slice %291 {offsets = [0, 0, 0], sizes = [1, 32, 8], strides = [1, 1, 1]} : vector<4x32x8xf32> to vector<1x32x8xf32>
    %293 = vector.shape_cast %292 : vector<1x32x8xf32> to vector<32x8xf32>
    %294 = arith.truncf %285 : vector<16x32xf32> to vector<16x32xbf16>
    %295 = arith.truncf %293 : vector<32x8xf32> to vector<32x8xbf16>
    %cst_107 = arith.constant dense<0.000000e+00> : vector<16x8xf32>
    %296 = tpu.matmul %294, %295, %cst_107 {dimension_numbers = #tpu.dot_dimension_numbers<[1], [0], [0], [1], [0, 0, 1, 1], [], []>} : vector<16x32xbf16>, vector<32x8xbf16>, vector<16x8xf32> -> vector<16x8xf32>
    %297 = vector.extract_strided_slice %291 {offsets = [1, 0, 0], sizes = [1, 32, 8], strides = [1, 1, 1]} : vector<4x32x8xf32> to vector<1x32x8xf32>
    %298 = vector.shape_cast %297 : vector<1x32x8xf32> to vector<32x8xf32>
    %299 = arith.truncf %285 : vector<16x32xf32> to vector<16x32xbf16>
    %300 = arith.truncf %298 : vector<32x8xf32> to vector<32x8xbf16>
    %cst_108 = arith.constant dense<0.000000e+00> : vector<16x8xf32>
    %301 = tpu.matmul %299, %300, %cst_108 {dimension_numbers = #tpu.dot_dimension_numbers<[1], [0], [0], [1], [0, 0, 1, 1], [], []>} : vector<16x32xbf16>, vector<32x8xbf16>, vector<16x8xf32> -> vector<16x8xf32>
    %302 = vector.extract_strided_slice %291 {offsets = [2, 0, 0], sizes = [1, 32, 8], strides = [1, 1, 1]} : vector<4x32x8xf32> to vector<1x32x8xf32>
    %303 = vector.shape_cast %302 : vector<1x32x8xf32> to vector<32x8xf32>
    %304 = arith.truncf %285 : vector<16x32xf32> to vector<16x32xbf16>
    %305 = arith.truncf %303 : vector<32x8xf32> to vector<32x8xbf16>
    %cst_109 = arith.constant dense<0.000000e+00> : vector<16x8xf32>
    %306 = tpu.matmul %304, %305, %cst_109 {dimension_numbers = #tpu.dot_dimension_numbers<[1], [0], [0], [1], [0, 0, 1, 1], [], []>} : vector<16x32xbf16>, vector<32x8xbf16>, vector<16x8xf32> -> vector<16x8xf32>
    %307 = vector.extract_strided_slice %291 {offsets = [3, 0, 0], sizes = [1, 32, 8], strides = [1, 1, 1]} : vector<4x32x8xf32> to vector<1x32x8xf32>
    %308 = vector.shape_cast %307 : vector<1x32x8xf32> to vector<32x8xf32>
    %309 = arith.truncf %285 : vector<16x32xf32> to vector<16x32xbf16>
    %310 = arith.truncf %308 : vector<32x8xf32> to vector<32x8xbf16>
    %cst_110 = arith.constant dense<0.000000e+00> : vector<16x8xf32>
    %311 = tpu.matmul %309, %310, %cst_110 {dimension_numbers = #tpu.dot_dimension_numbers<[1], [0], [0], [1], [0, 0, 1, 1], [], []>} : vector<16x32xbf16>, vector<32x8xbf16>, vector<16x8xf32> -> vector<16x8xf32>
    %312 = tpu.concatenate %296, %301, %306, %311 in 0 : vector<16x8xf32>, vector<16x8xf32>, vector<16x8xf32>, vector<16x8xf32> -> vector<64x8xf32>
    %313 = arith.truncf %312 : vector<64x8xf32> to vector<64x8xbf16>
    %314 = arith.truncf %312 : vector<64x8xf32> to vector<64x8xbf16>
    "tpu.trace_start"() <{level = 10 : i32, message = "md,nd->mn"}> : () -> ()
    %cst_111 = arith.constant dense<0.000000e+00> : vector<64x64xf32>
    %315 = tpu.matmul %313, %314, %cst_111 {dimension_numbers = #tpu.dot_dimension_numbers<[1], [1], [0], [0], [0, 0, 1, 0], [], []>} : vector<64x8xbf16>, vector<64x8xbf16>, vector<64x64xf32> -> vector<64x64xf32>
    "tpu.trace_stop"() : () -> ()
    %cst_112 = arith.constant 0.353553385 : f32
    %316 = vector.broadcast %cst_112 : f32 to vector<64x64xf32>
    %317 = arith.mulf %315, %316 : vector<64x64xf32>
    %318 = arith.addf %317, %1 : vector<64x64xf32>
    %cst_113 = arith.constant dense<0xFF800000> : vector<64xf32>
    %319 = vector.multi_reduction <maximumf>, %318, %cst_113 [1] : vector<64x64xf32> to vector<64xf32>
    %320 = vector.shape_cast %319 : vector<64xf32> to vector<64x1xf32>
    %321 = vector.broadcast %320 : vector<64x1xf32> to vector<64x64xf32>
    %322 = arith.subf %318, %321 : vector<64x64xf32>
    %323 = math.exp %322 : vector<64x64xf32>
    %cst_114 = arith.constant dense<0.000000e+00> : vector<64xf32>
    %324 = vector.multi_reduction <add>, %323, %cst_114 [1] : vector<64x64xf32> to vector<64xf32>
    %325 = vector.shape_cast %324 : vector<64xf32> to vector<64x1xf32>
    %326 = tpu.reciprocal %325 {approx = true} : vector<64x1xf32> -> vector<64x1xf32>
    %327 = vector.broadcast %326 : vector<64x1xf32> to vector<64x64xf32>
    %328 = arith.mulf %323, %327 : vector<64x64xf32>
    %329 = arith.truncf %328 : vector<64x64xf32> to vector<64x64xbf16>
    %330 = arith.truncf %312 : vector<64x8xf32> to vector<64x8xbf16>
    %cst_115 = arith.constant dense<0.000000e+00> : vector<64x8xf32>
    %331 = tpu.matmul %329, %330, %cst_115 {dimension_numbers = #tpu.dot_dimension_numbers<[1], [0], [0], [1], [0, 0, 1, 1], [], []>} : vector<64x64xbf16>, vector<64x8xbf16>, vector<64x8xf32> -> vector<64x8xf32>
    %c0_116 = arith.constant 0 : index
    %c0_117 = arith.constant 0 : index
    %c0_118 = arith.constant 0 : index
    %c0_119 = arith.constant 0 : index
    %332 = vector.load %arg11[%c0_116, %c0_117, %c0_118, %c0_119] : memref<2x4x8x32xf32, #tpu.memory_space<vmem>>, vector<1x4x8x32xf32>
    %333 = vector.shape_cast %332 : vector<1x4x8x32xf32> to vector<4x8x32xf32>
    %334 = vector.extract_strided_slice %287 {offsets = [0, 0], sizes = [1, 32], strides = [1, 1]} : vector<9x32xf32> to vector<1x32xf32>
    %335 = vector.extract_strided_slice %331 {offsets = [0, 0], sizes = [16, 8], strides = [1, 1]} : vector<64x8xf32> to vector<16x8xf32>
    %336 = vector.extract_strided_slice %333 {offsets = [0, 0, 0], sizes = [1, 8, 32], strides = [1, 1, 1]} : vector<4x8x32xf32> to vector<1x8x32xf32>
    %337 = vector.shape_cast %336 : vector<1x8x32xf32> to vector<8x32xf32>
    %338 = arith.truncf %335 : vector<16x8xf32> to vector<16x8xbf16>
    %339 = arith.truncf %337 : vector<8x32xf32> to vector<8x32xbf16>
    %cst_120 = arith.constant dense<0.000000e+00> : vector<16x32xf32>
    %340 = tpu.matmul %338, %339, %cst_120 {dimension_numbers = #tpu.dot_dimension_numbers<[1], [0], [0], [1], [0, 0, 1, 1], [], []>} : vector<16x8xbf16>, vector<8x32xbf16>, vector<16x32xf32> -> vector<16x32xf32>
    %341 = vector.extract_strided_slice %331 {offsets = [16, 0], sizes = [16, 8], strides = [1, 1]} : vector<64x8xf32> to vector<16x8xf32>
    %342 = vector.extract_strided_slice %333 {offsets = [1, 0, 0], sizes = [1, 8, 32], strides = [1, 1, 1]} : vector<4x8x32xf32> to vector<1x8x32xf32>
    %343 = vector.shape_cast %342 : vector<1x8x32xf32> to vector<8x32xf32>
    %344 = arith.truncf %341 : vector<16x8xf32> to vector<16x8xbf16>
    %345 = arith.truncf %343 : vector<8x32xf32> to vector<8x32xbf16>
    %cst_121 = arith.constant dense<0.000000e+00> : vector<16x32xf32>
    %346 = tpu.matmul %344, %345, %cst_121 {dimension_numbers = #tpu.dot_dimension_numbers<[1], [0], [0], [1], [0, 0, 1, 1], [], []>} : vector<16x8xbf16>, vector<8x32xbf16>, vector<16x32xf32> -> vector<16x32xf32>
    %347 = arith.addf %340, %346 : vector<16x32xf32>
    %348 = vector.extract_strided_slice %331 {offsets = [32, 0], sizes = [16, 8], strides = [1, 1]} : vector<64x8xf32> to vector<16x8xf32>
    %349 = vector.extract_strided_slice %333 {offsets = [2, 0, 0], sizes = [1, 8, 32], strides = [1, 1, 1]} : vector<4x8x32xf32> to vector<1x8x32xf32>
    %350 = vector.shape_cast %349 : vector<1x8x32xf32> to vector<8x32xf32>
    %351 = arith.truncf %348 : vector<16x8xf32> to vector<16x8xbf16>
    %352 = arith.truncf %350 : vector<8x32xf32> to vector<8x32xbf16>
    %cst_122 = arith.constant dense<0.000000e+00> : vector<16x32xf32>
    %353 = tpu.matmul %351, %352, %cst_122 {dimension_numbers = #tpu.dot_dimension_numbers<[1], [0], [0], [1], [0, 0, 1, 1], [], []>} : vector<16x8xbf16>, vector<8x32xbf16>, vector<16x32xf32> -> vector<16x32xf32>
    %354 = arith.addf %347, %353 : vector<16x32xf32>
    %355 = vector.extract_strided_slice %331 {offsets = [48, 0], sizes = [16, 8], strides = [1, 1]} : vector<64x8xf32> to vector<16x8xf32>
    %356 = vector.extract_strided_slice %333 {offsets = [3, 0, 0], sizes = [1, 8, 32], strides = [1, 1, 1]} : vector<4x8x32xf32> to vector<1x8x32xf32>
    %357 = vector.shape_cast %356 : vector<1x8x32xf32> to vector<8x32xf32>
    %358 = arith.truncf %355 : vector<16x8xf32> to vector<16x8xbf16>
    %359 = arith.truncf %357 : vector<8x32xf32> to vector<8x32xbf16>
    %cst_123 = arith.constant dense<0.000000e+00> : vector<16x32xf32>
    %360 = tpu.matmul %358, %359, %cst_123 {dimension_numbers = #tpu.dot_dimension_numbers<[1], [0], [0], [1], [0, 0, 1, 1], [], []>} : vector<16x8xbf16>, vector<8x32xbf16>, vector<16x32xf32> -> vector<16x32xf32>
    %361 = arith.addf %354, %360 : vector<16x32xf32>
    %362 = vector.broadcast %334 : vector<1x32xf32> to vector<16x32xf32>
    %363 = arith.addf %361, %362 : vector<16x32xf32>
    %364 = arith.addf %363, %285 : vector<16x32xf32>
    %365 = vector.extract_strided_slice %287 {offsets = [1, 0], sizes = [1, 32], strides = [1, 1]} : vector<9x32xf32> to vector<1x32xf32>
    %366 = vector.extract_strided_slice %287 {offsets = [2, 0], sizes = [1, 32], strides = [1, 1]} : vector<9x32xf32> to vector<1x32xf32>
    %cst_124 = arith.constant dense<0.000000e+00> : vector<16xf32>
    %367 = vector.multi_reduction <add>, %364, %cst_124 [1] : vector<16x32xf32> to vector<16xf32>
    %368 = vector.shape_cast %367 : vector<16xf32> to vector<16x1xf32>
    %cst_125 = arith.constant 3.200000e+01 : f32
    %369 = vector.broadcast %cst_125 : f32 to vector<16x1xf32>
    %370 = arith.divf %368, %369 : vector<16x1xf32>
    %371 = vector.broadcast %370 : vector<16x1xf32> to vector<16x32xf32>
    %372 = arith.subf %364, %371 : vector<16x32xf32>
    %373 = arith.mulf %372, %372 : vector<16x32xf32>
    %cst_126 = arith.constant dense<0.000000e+00> : vector<16xf32>
    %374 = vector.multi_reduction <add>, %373, %cst_126 [1] : vector<16x32xf32> to vector<16xf32>
    %375 = vector.shape_cast %374 : vector<16xf32> to vector<16x1xf32>
    %cst_127 = arith.constant 3.200000e+01 : f32
    %376 = vector.broadcast %cst_127 : f32 to vector<16x1xf32>
    %377 = arith.divf %375, %376 : vector<16x1xf32>
    %cst_128 = arith.constant 9.99999974E-6 : f32
    %378 = vector.broadcast %cst_128 : f32 to vector<16x1xf32>
    %379 = arith.addf %377, %378 : vector<16x1xf32>
    %380 = math.rsqrt %379 : vector<16x1xf32>
    %381 = vector.broadcast %380 : vector<16x1xf32> to vector<16x32xf32>
    %382 = arith.mulf %372, %381 : vector<16x32xf32>
    %383 = vector.broadcast %365 : vector<1x32xf32> to vector<16x32xf32>
    %384 = arith.mulf %382, %383 : vector<16x32xf32>
    %385 = vector.broadcast %366 : vector<1x32xf32> to vector<16x32xf32>
    %386 = arith.addf %384, %385 : vector<16x32xf32>
    %c0_129 = arith.constant 0 : index
    %c0_130 = arith.constant 0 : index
    %c0_131 = arith.constant 0 : index
    %c0_132 = arith.constant 0 : index
    %387 = vector.load %arg12[%c0_129, %c0_130, %c0_131, %c0_132] : memref<2x4x32x8xf32, #tpu.memory_space<vmem>>, vector<1x4x32x8xf32>
    %388 = vector.shape_cast %387 : vector<1x4x32x8xf32> to vector<4x32x8xf32>
    %389 = tpu.concatenate %386, %284 in 0 : vector<16x32xf32>, vector<16x32xf32> -> vector<32x32xf32>
    %390 = vector.extract_strided_slice %388 {offsets = [0, 0, 0], sizes = [1, 32, 8], strides = [1, 1, 1]} : vector<4x32x8xf32> to vector<1x32x8xf32>
    %391 = vector.shape_cast %390 : vector<1x32x8xf32> to vector<32x8xf32>
    %392 = arith.truncf %389 : vector<32x32xf32> to vector<32x32xbf16>
    %393 = arith.truncf %391 : vector<32x8xf32> to vector<32x8xbf16>
    %cst_133 = arith.constant dense<0.000000e+00> : vector<32x8xf32>
    %394 = tpu.matmul %392, %393, %cst_133 {dimension_numbers = #tpu.dot_dimension_numbers<[1], [0], [0], [1], [0, 0, 1, 1], [], []>} : vector<32x32xbf16>, vector<32x8xbf16>, vector<32x8xf32> -> vector<32x8xf32>
    %395 = vector.extract_strided_slice %394 {offsets = [0, 0], sizes = [16, 8], strides = [1, 1]} : vector<32x8xf32> to vector<16x8xf32>
    %396 = vector.extract_strided_slice %394 {offsets = [16, 0], sizes = [16, 8], strides = [1, 1]} : vector<32x8xf32> to vector<16x8xf32>
    %397 = vector.extract_strided_slice %388 {offsets = [1, 0, 0], sizes = [1, 32, 8], strides = [1, 1, 1]} : vector<4x32x8xf32> to vector<1x32x8xf32>
    %398 = vector.shape_cast %397 : vector<1x32x8xf32> to vector<32x8xf32>
    %399 = arith.truncf %389 : vector<32x32xf32> to vector<32x32xbf16>
    %400 = arith.truncf %398 : vector<32x8xf32> to vector<32x8xbf16>
    %cst_134 = arith.constant dense<0.000000e+00> : vector<32x8xf32>
    %401 = tpu.matmul %399, %400, %cst_134 {dimension_numbers = #tpu.dot_dimension_numbers<[1], [0], [0], [1], [0, 0, 1, 1], [], []>} : vector<32x32xbf16>, vector<32x8xbf16>, vector<32x8xf32> -> vector<32x8xf32>
    %402 = vector.extract_strided_slice %401 {offsets = [0, 0], sizes = [16, 8], strides = [1, 1]} : vector<32x8xf32> to vector<16x8xf32>
    %403 = vector.extract_strided_slice %401 {offsets = [16, 0], sizes = [16, 8], strides = [1, 1]} : vector<32x8xf32> to vector<16x8xf32>
    %404 = vector.extract_strided_slice %388 {offsets = [2, 0, 0], sizes = [1, 32, 8], strides = [1, 1, 1]} : vector<4x32x8xf32> to vector<1x32x8xf32>
    %405 = vector.shape_cast %404 : vector<1x32x8xf32> to vector<32x8xf32>
    %406 = arith.truncf %389 : vector<32x32xf32> to vector<32x32xbf16>
    %407 = arith.truncf %405 : vector<32x8xf32> to vector<32x8xbf16>
    %cst_135 = arith.constant dense<0.000000e+00> : vector<32x8xf32>
    %408 = tpu.matmul %406, %407, %cst_135 {dimension_numbers = #tpu.dot_dimension_numbers<[1], [0], [0], [1], [0, 0, 1, 1], [], []>} : vector<32x32xbf16>, vector<32x8xbf16>, vector<32x8xf32> -> vector<32x8xf32>
    %409 = vector.extract_strided_slice %408 {offsets = [0, 0], sizes = [16, 8], strides = [1, 1]} : vector<32x8xf32> to vector<16x8xf32>
    %410 = vector.extract_strided_slice %408 {offsets = [16, 0], sizes = [16, 8], strides = [1, 1]} : vector<32x8xf32> to vector<16x8xf32>
    %411 = vector.extract_strided_slice %388 {offsets = [3, 0, 0], sizes = [1, 32, 8], strides = [1, 1, 1]} : vector<4x32x8xf32> to vector<1x32x8xf32>
    %412 = vector.shape_cast %411 : vector<1x32x8xf32> to vector<32x8xf32>
    %413 = arith.truncf %389 : vector<32x32xf32> to vector<32x32xbf16>
    %414 = arith.truncf %412 : vector<32x8xf32> to vector<32x8xbf16>
    %cst_136 = arith.constant dense<0.000000e+00> : vector<32x8xf32>
    %415 = tpu.matmul %413, %414, %cst_136 {dimension_numbers = #tpu.dot_dimension_numbers<[1], [0], [0], [1], [0, 0, 1, 1], [], []>} : vector<32x32xbf16>, vector<32x8xbf16>, vector<32x8xf32> -> vector<32x8xf32>
    %416 = vector.extract_strided_slice %415 {offsets = [0, 0], sizes = [16, 8], strides = [1, 1]} : vector<32x8xf32> to vector<16x8xf32>
    %417 = vector.extract_strided_slice %415 {offsets = [16, 0], sizes = [16, 8], strides = [1, 1]} : vector<32x8xf32> to vector<16x8xf32>
    %418 = tpu.concatenate %395, %402, %409, %416 in 0 : vector<16x8xf32>, vector<16x8xf32>, vector<16x8xf32>, vector<16x8xf32> -> vector<64x8xf32>
    %419 = tpu.concatenate %396, %403, %410, %417 in 0 : vector<16x8xf32>, vector<16x8xf32>, vector<16x8xf32>, vector<16x8xf32> -> vector<64x8xf32>
    %420 = arith.truncf %418 : vector<64x8xf32> to vector<64x8xbf16>
    %421 = arith.truncf %419 : vector<64x8xf32> to vector<64x8xbf16>
    "tpu.trace_start"() <{level = 10 : i32, message = "md,nd->mn"}> : () -> ()
    %cst_137 = arith.constant dense<0.000000e+00> : vector<64x64xf32>
    %422 = tpu.matmul %420, %421, %cst_137 {dimension_numbers = #tpu.dot_dimension_numbers<[1], [1], [0], [0], [0, 0, 1, 0], [], []>} : vector<64x8xbf16>, vector<64x8xbf16>, vector<64x64xf32> -> vector<64x64xf32>
    "tpu.trace_stop"() : () -> ()
    %cst_138 = arith.constant 0.353553385 : f32
    %423 = vector.broadcast %cst_138 : f32 to vector<64x64xf32>
    %424 = arith.mulf %422, %423 : vector<64x64xf32>
    %425 = arith.addf %424, %0 : vector<64x64xf32>
    %cst_139 = arith.constant dense<0xFF800000> : vector<64xf32>
    %426 = vector.multi_reduction <maximumf>, %425, %cst_139 [1] : vector<64x64xf32> to vector<64xf32>
    %427 = vector.shape_cast %426 : vector<64xf32> to vector<64x1xf32>
    %428 = vector.broadcast %427 : vector<64x1xf32> to vector<64x64xf32>
    %429 = arith.subf %425, %428 : vector<64x64xf32>
    %430 = math.exp %429 : vector<64x64xf32>
    %cst_140 = arith.constant dense<0.000000e+00> : vector<64xf32>
    %431 = vector.multi_reduction <add>, %430, %cst_140 [1] : vector<64x64xf32> to vector<64xf32>
    %432 = vector.shape_cast %431 : vector<64xf32> to vector<64x1xf32>
    %433 = tpu.reciprocal %432 {approx = true} : vector<64x1xf32> -> vector<64x1xf32>
    %434 = vector.broadcast %433 : vector<64x1xf32> to vector<64x64xf32>
    %435 = arith.mulf %430, %434 : vector<64x64xf32>
    %436 = arith.truncf %435 : vector<64x64xf32> to vector<64x64xbf16>
    %437 = arith.truncf %419 : vector<64x8xf32> to vector<64x8xbf16>
    %cst_141 = arith.constant dense<0.000000e+00> : vector<64x8xf32>
    %438 = tpu.matmul %436, %437, %cst_141 {dimension_numbers = #tpu.dot_dimension_numbers<[1], [0], [0], [1], [0, 0, 1, 1], [], []>} : vector<64x64xbf16>, vector<64x8xbf16>, vector<64x8xf32> -> vector<64x8xf32>
    %c0_142 = arith.constant 0 : index
    %c0_143 = arith.constant 0 : index
    %c0_144 = arith.constant 0 : index
    %c0_145 = arith.constant 0 : index
    %439 = vector.load %arg13[%c0_142, %c0_143, %c0_144, %c0_145] : memref<2x4x8x32xf32, #tpu.memory_space<vmem>>, vector<1x4x8x32xf32>
    %440 = vector.shape_cast %439 : vector<1x4x8x32xf32> to vector<4x8x32xf32>
    %441 = vector.extract_strided_slice %287 {offsets = [3, 0], sizes = [1, 32], strides = [1, 1]} : vector<9x32xf32> to vector<1x32xf32>
    %442 = vector.extract_strided_slice %438 {offsets = [0, 0], sizes = [16, 8], strides = [1, 1]} : vector<64x8xf32> to vector<16x8xf32>
    %443 = vector.extract_strided_slice %440 {offsets = [0, 0, 0], sizes = [1, 8, 32], strides = [1, 1, 1]} : vector<4x8x32xf32> to vector<1x8x32xf32>
    %444 = vector.shape_cast %443 : vector<1x8x32xf32> to vector<8x32xf32>
    %445 = arith.truncf %442 : vector<16x8xf32> to vector<16x8xbf16>
    %446 = arith.truncf %444 : vector<8x32xf32> to vector<8x32xbf16>
    %cst_146 = arith.constant dense<0.000000e+00> : vector<16x32xf32>
    %447 = tpu.matmul %445, %446, %cst_146 {dimension_numbers = #tpu.dot_dimension_numbers<[1], [0], [0], [1], [0, 0, 1, 1], [], []>} : vector<16x8xbf16>, vector<8x32xbf16>, vector<16x32xf32> -> vector<16x32xf32>
    %448 = vector.extract_strided_slice %438 {offsets = [16, 0], sizes = [16, 8], strides = [1, 1]} : vector<64x8xf32> to vector<16x8xf32>
    %449 = vector.extract_strided_slice %440 {offsets = [1, 0, 0], sizes = [1, 8, 32], strides = [1, 1, 1]} : vector<4x8x32xf32> to vector<1x8x32xf32>
    %450 = vector.shape_cast %449 : vector<1x8x32xf32> to vector<8x32xf32>
    %451 = arith.truncf %448 : vector<16x8xf32> to vector<16x8xbf16>
    %452 = arith.truncf %450 : vector<8x32xf32> to vector<8x32xbf16>
    %cst_147 = arith.constant dense<0.000000e+00> : vector<16x32xf32>
    %453 = tpu.matmul %451, %452, %cst_147 {dimension_numbers = #tpu.dot_dimension_numbers<[1], [0], [0], [1], [0, 0, 1, 1], [], []>} : vector<16x8xbf16>, vector<8x32xbf16>, vector<16x32xf32> -> vector<16x32xf32>
    %454 = arith.addf %447, %453 : vector<16x32xf32>
    %455 = vector.extract_strided_slice %438 {offsets = [32, 0], sizes = [16, 8], strides = [1, 1]} : vector<64x8xf32> to vector<16x8xf32>
    %456 = vector.extract_strided_slice %440 {offsets = [2, 0, 0], sizes = [1, 8, 32], strides = [1, 1, 1]} : vector<4x8x32xf32> to vector<1x8x32xf32>
    %457 = vector.shape_cast %456 : vector<1x8x32xf32> to vector<8x32xf32>
    %458 = arith.truncf %455 : vector<16x8xf32> to vector<16x8xbf16>
    %459 = arith.truncf %457 : vector<8x32xf32> to vector<8x32xbf16>
    %cst_148 = arith.constant dense<0.000000e+00> : vector<16x32xf32>
    %460 = tpu.matmul %458, %459, %cst_148 {dimension_numbers = #tpu.dot_dimension_numbers<[1], [0], [0], [1], [0, 0, 1, 1], [], []>} : vector<16x8xbf16>, vector<8x32xbf16>, vector<16x32xf32> -> vector<16x32xf32>
    %461 = arith.addf %454, %460 : vector<16x32xf32>
    %462 = vector.extract_strided_slice %438 {offsets = [48, 0], sizes = [16, 8], strides = [1, 1]} : vector<64x8xf32> to vector<16x8xf32>
    %463 = vector.extract_strided_slice %440 {offsets = [3, 0, 0], sizes = [1, 8, 32], strides = [1, 1, 1]} : vector<4x8x32xf32> to vector<1x8x32xf32>
    %464 = vector.shape_cast %463 : vector<1x8x32xf32> to vector<8x32xf32>
    %465 = arith.truncf %462 : vector<16x8xf32> to vector<16x8xbf16>
    %466 = arith.truncf %464 : vector<8x32xf32> to vector<8x32xbf16>
    %cst_149 = arith.constant dense<0.000000e+00> : vector<16x32xf32>
    %467 = tpu.matmul %465, %466, %cst_149 {dimension_numbers = #tpu.dot_dimension_numbers<[1], [0], [0], [1], [0, 0, 1, 1], [], []>} : vector<16x8xbf16>, vector<8x32xbf16>, vector<16x32xf32> -> vector<16x32xf32>
    %468 = arith.addf %461, %467 : vector<16x32xf32>
    %469 = vector.broadcast %441 : vector<1x32xf32> to vector<16x32xf32>
    %470 = arith.addf %468, %469 : vector<16x32xf32>
    %471 = arith.addf %470, %386 : vector<16x32xf32>
    %472 = vector.extract_strided_slice %287 {offsets = [4, 0], sizes = [1, 32], strides = [1, 1]} : vector<9x32xf32> to vector<1x32xf32>
    %473 = vector.extract_strided_slice %287 {offsets = [5, 0], sizes = [1, 32], strides = [1, 1]} : vector<9x32xf32> to vector<1x32xf32>
    %cst_150 = arith.constant dense<0.000000e+00> : vector<16xf32>
    %474 = vector.multi_reduction <add>, %471, %cst_150 [1] : vector<16x32xf32> to vector<16xf32>
    %475 = vector.shape_cast %474 : vector<16xf32> to vector<16x1xf32>
    %cst_151 = arith.constant 3.200000e+01 : f32
    %476 = vector.broadcast %cst_151 : f32 to vector<16x1xf32>
    %477 = arith.divf %475, %476 : vector<16x1xf32>
    %478 = vector.broadcast %477 : vector<16x1xf32> to vector<16x32xf32>
    %479 = arith.subf %471, %478 : vector<16x32xf32>
    %480 = arith.mulf %479, %479 : vector<16x32xf32>
    %cst_152 = arith.constant dense<0.000000e+00> : vector<16xf32>
    %481 = vector.multi_reduction <add>, %480, %cst_152 [1] : vector<16x32xf32> to vector<16xf32>
    %482 = vector.shape_cast %481 : vector<16xf32> to vector<16x1xf32>
    %cst_153 = arith.constant 3.200000e+01 : f32
    %483 = vector.broadcast %cst_153 : f32 to vector<16x1xf32>
    %484 = arith.divf %482, %483 : vector<16x1xf32>
    %cst_154 = arith.constant 9.99999974E-6 : f32
    %485 = vector.broadcast %cst_154 : f32 to vector<16x1xf32>
    %486 = arith.addf %484, %485 : vector<16x1xf32>
    %487 = math.rsqrt %486 : vector<16x1xf32>
    %488 = vector.broadcast %487 : vector<16x1xf32> to vector<16x32xf32>
    %489 = arith.mulf %479, %488 : vector<16x32xf32>
    %490 = vector.broadcast %472 : vector<1x32xf32> to vector<16x32xf32>
    %491 = arith.mulf %489, %490 : vector<16x32xf32>
    %492 = vector.broadcast %473 : vector<1x32xf32> to vector<16x32xf32>
    %493 = arith.addf %491, %492 : vector<16x32xf32>
    %c0_155 = arith.constant 0 : index
    %c0_156 = arith.constant 0 : index
    %c0_157 = arith.constant 0 : index
    %494 = vector.load %arg14[%c0_155, %c0_156, %c0_157] : memref<2x32x64xf32, #tpu.memory_space<vmem>>, vector<1x32x64xf32>
    %495 = vector.shape_cast %494 : vector<1x32x64xf32> to vector<32x64xf32>
    %c0_158 = arith.constant 0 : index
    %c0_159 = arith.constant 0 : index
    %c0_160 = arith.constant 0 : index
    %496 = vector.load %arg15[%c0_158, %c0_159, %c0_160] : memref<2x64x32xf32, #tpu.memory_space<vmem>>, vector<1x64x32xf32>
    %497 = vector.shape_cast %496 : vector<1x64x32xf32> to vector<64x32xf32>
    %498 = vector.extract_strided_slice %287 {offsets = [6, 0], sizes = [1, 32], strides = [1, 1]} : vector<9x32xf32> to vector<1x32xf32>
    %499 = arith.truncf %493 : vector<16x32xf32> to vector<16x32xbf16>
    %500 = arith.truncf %495 : vector<32x64xf32> to vector<32x64xbf16>
    %cst_161 = arith.constant dense<0.000000e+00> : vector<16x64xf32>
    %501 = tpu.matmul %499, %500, %cst_161 {dimension_numbers = #tpu.dot_dimension_numbers<[1], [0], [0], [1], [0, 0, 1, 1], [], []>} : vector<16x32xbf16>, vector<32x64xbf16>, vector<16x64xf32> -> vector<16x64xf32>
    %502 = vector.broadcast %289 : vector<1x64xf32> to vector<16x64xf32>
    %503 = arith.addf %501, %502 : vector<16x64xf32>
    %cst_162 = arith.constant 0.000000e+00 : f32
    %504 = vector.broadcast %cst_162 : f32 to vector<16x64xf32>
    %505 = arith.maximumf %503, %504 : vector<16x64xf32>
    %506 = arith.truncf %505 : vector<16x64xf32> to vector<16x64xbf16>
    %507 = arith.truncf %497 : vector<64x32xf32> to vector<64x32xbf16>
    %cst_163 = arith.constant dense<0.000000e+00> : vector<16x32xf32>
    %508 = tpu.matmul %506, %507, %cst_163 {dimension_numbers = #tpu.dot_dimension_numbers<[1], [0], [0], [1], [0, 0, 1, 1], [], []>} : vector<16x64xbf16>, vector<64x32xbf16>, vector<16x32xf32> -> vector<16x32xf32>
    %509 = vector.broadcast %498 : vector<1x32xf32> to vector<16x32xf32>
    %510 = arith.addf %508, %509 : vector<16x32xf32>
    %511 = arith.addf %510, %493 : vector<16x32xf32>
    %512 = vector.extract_strided_slice %287 {offsets = [7, 0], sizes = [1, 32], strides = [1, 1]} : vector<9x32xf32> to vector<1x32xf32>
    %513 = vector.extract_strided_slice %287 {offsets = [8, 0], sizes = [1, 32], strides = [1, 1]} : vector<9x32xf32> to vector<1x32xf32>
    %cst_164 = arith.constant dense<0.000000e+00> : vector<16xf32>
    %514 = vector.multi_reduction <add>, %511, %cst_164 [1] : vector<16x32xf32> to vector<16xf32>
    %515 = vector.shape_cast %514 : vector<16xf32> to vector<16x1xf32>
    %cst_165 = arith.constant 3.200000e+01 : f32
    %516 = vector.broadcast %cst_165 : f32 to vector<16x1xf32>
    %517 = arith.divf %515, %516 : vector<16x1xf32>
    %518 = vector.broadcast %517 : vector<16x1xf32> to vector<16x32xf32>
    %519 = arith.subf %511, %518 : vector<16x32xf32>
    %520 = arith.mulf %519, %519 : vector<16x32xf32>
    %cst_166 = arith.constant dense<0.000000e+00> : vector<16xf32>
    %521 = vector.multi_reduction <add>, %520, %cst_166 [1] : vector<16x32xf32> to vector<16xf32>
    %522 = vector.shape_cast %521 : vector<16xf32> to vector<16x1xf32>
    %cst_167 = arith.constant 3.200000e+01 : f32
    %523 = vector.broadcast %cst_167 : f32 to vector<16x1xf32>
    %524 = arith.divf %522, %523 : vector<16x1xf32>
    %cst_168 = arith.constant 9.99999974E-6 : f32
    %525 = vector.broadcast %cst_168 : f32 to vector<16x1xf32>
    %526 = arith.addf %524, %525 : vector<16x1xf32>
    %527 = math.rsqrt %526 : vector<16x1xf32>
    %528 = vector.broadcast %527 : vector<16x1xf32> to vector<16x32xf32>
    %529 = arith.mulf %519, %528 : vector<16x32xf32>
    %530 = vector.broadcast %512 : vector<1x32xf32> to vector<16x32xf32>
    %531 = arith.mulf %529, %530 : vector<16x32xf32>
    %532 = vector.broadcast %513 : vector<1x32xf32> to vector<16x32xf32>
    %533 = arith.addf %531, %532 : vector<16x32xf32>
    %c1_169 = arith.constant 1 : index
    %c0_170 = arith.constant 0 : index
    %c0_171 = arith.constant 0 : index
    %534 = vector.load %arg16[%c1_169, %c0_170, %c0_171] : memref<2x9x32xf32, #tpu.memory_space<vmem>>, vector<1x9x32xf32>
    %535 = vector.shape_cast %534 : vector<1x9x32xf32> to vector<9x32xf32>
    %c1_172 = arith.constant 1 : index
    %c0_173 = arith.constant 0 : index
    %c0_174 = arith.constant 0 : index
    %536 = vector.load %arg17[%c1_172, %c0_173, %c0_174] : memref<2x1x64xf32, #tpu.memory_space<vmem>>, vector<1x1x64xf32>
    %537 = vector.shape_cast %536 : vector<1x1x64xf32> to vector<1x64xf32>
    %c1_175 = arith.constant 1 : index
    %c0_176 = arith.constant 0 : index
    %c0_177 = arith.constant 0 : index
    %c0_178 = arith.constant 0 : index
    %538 = vector.load %arg10[%c1_175, %c0_176, %c0_177, %c0_178] : memref<2x4x32x8xf32, #tpu.memory_space<vmem>>, vector<1x4x32x8xf32>
    %539 = vector.shape_cast %538 : vector<1x4x32x8xf32> to vector<4x32x8xf32>
    %540 = vector.extract_strided_slice %539 {offsets = [0, 0, 0], sizes = [1, 32, 8], strides = [1, 1, 1]} : vector<4x32x8xf32> to vector<1x32x8xf32>
    %541 = vector.shape_cast %540 : vector<1x32x8xf32> to vector<32x8xf32>
    %542 = arith.truncf %533 : vector<16x32xf32> to vector<16x32xbf16>
    %543 = arith.truncf %541 : vector<32x8xf32> to vector<32x8xbf16>
    %cst_179 = arith.constant dense<0.000000e+00> : vector<16x8xf32>
    %544 = tpu.matmul %542, %543, %cst_179 {dimension_numbers = #tpu.dot_dimension_numbers<[1], [0], [0], [1], [0, 0, 1, 1], [], []>} : vector<16x32xbf16>, vector<32x8xbf16>, vector<16x8xf32> -> vector<16x8xf32>
    %545 = vector.extract_strided_slice %539 {offsets = [1, 0, 0], sizes = [1, 32, 8], strides = [1, 1, 1]} : vector<4x32x8xf32> to vector<1x32x8xf32>
    %546 = vector.shape_cast %545 : vector<1x32x8xf32> to vector<32x8xf32>
    %547 = arith.truncf %533 : vector<16x32xf32> to vector<16x32xbf16>
    %548 = arith.truncf %546 : vector<32x8xf32> to vector<32x8xbf16>
    %cst_180 = arith.constant dense<0.000000e+00> : vector<16x8xf32>
    %549 = tpu.matmul %547, %548, %cst_180 {dimension_numbers = #tpu.dot_dimension_numbers<[1], [0], [0], [1], [0, 0, 1, 1], [], []>} : vector<16x32xbf16>, vector<32x8xbf16>, vector<16x8xf32> -> vector<16x8xf32>
    %550 = vector.extract_strided_slice %539 {offsets = [2, 0, 0], sizes = [1, 32, 8], strides = [1, 1, 1]} : vector<4x32x8xf32> to vector<1x32x8xf32>
    %551 = vector.shape_cast %550 : vector<1x32x8xf32> to vector<32x8xf32>
    %552 = arith.truncf %533 : vector<16x32xf32> to vector<16x32xbf16>
    %553 = arith.truncf %551 : vector<32x8xf32> to vector<32x8xbf16>
    %cst_181 = arith.constant dense<0.000000e+00> : vector<16x8xf32>
    %554 = tpu.matmul %552, %553, %cst_181 {dimension_numbers = #tpu.dot_dimension_numbers<[1], [0], [0], [1], [0, 0, 1, 1], [], []>} : vector<16x32xbf16>, vector<32x8xbf16>, vector<16x8xf32> -> vector<16x8xf32>
    %555 = vector.extract_strided_slice %539 {offsets = [3, 0, 0], sizes = [1, 32, 8], strides = [1, 1, 1]} : vector<4x32x8xf32> to vector<1x32x8xf32>
    %556 = vector.shape_cast %555 : vector<1x32x8xf32> to vector<32x8xf32>
    %557 = arith.truncf %533 : vector<16x32xf32> to vector<16x32xbf16>
    %558 = arith.truncf %556 : vector<32x8xf32> to vector<32x8xbf16>
    %cst_182 = arith.constant dense<0.000000e+00> : vector<16x8xf32>
    %559 = tpu.matmul %557, %558, %cst_182 {dimension_numbers = #tpu.dot_dimension_numbers<[1], [0], [0], [1], [0, 0, 1, 1], [], []>} : vector<16x32xbf16>, vector<32x8xbf16>, vector<16x8xf32> -> vector<16x8xf32>
    %560 = tpu.concatenate %544, %549, %554, %559 in 0 : vector<16x8xf32>, vector<16x8xf32>, vector<16x8xf32>, vector<16x8xf32> -> vector<64x8xf32>
    %561 = arith.truncf %560 : vector<64x8xf32> to vector<64x8xbf16>
    %562 = arith.truncf %560 : vector<64x8xf32> to vector<64x8xbf16>
    "tpu.trace_start"() <{level = 10 : i32, message = "md,nd->mn"}> : () -> ()
    %cst_183 = arith.constant dense<0.000000e+00> : vector<64x64xf32>
    %563 = tpu.matmul %561, %562, %cst_183 {dimension_numbers = #tpu.dot_dimension_numbers<[1], [1], [0], [0], [0, 0, 1, 0], [], []>} : vector<64x8xbf16>, vector<64x8xbf16>, vector<64x64xf32> -> vector<64x64xf32>
    "tpu.trace_stop"() : () -> ()
    %cst_184 = arith.constant 0.353553385 : f32
    %564 = vector.broadcast %cst_184 : f32 to vector<64x64xf32>
    %565 = arith.mulf %563, %564 : vector<64x64xf32>
    %566 = arith.addf %565, %1 : vector<64x64xf32>
    %cst_185 = arith.constant dense<0xFF800000> : vector<64xf32>
    %567 = vector.multi_reduction <maximumf>, %566, %cst_185 [1] : vector<64x64xf32> to vector<64xf32>
    %568 = vector.shape_cast %567 : vector<64xf32> to vector<64x1xf32>
    %569 = vector.broadcast %568 : vector<64x1xf32> to vector<64x64xf32>
    %570 = arith.subf %566, %569 : vector<64x64xf32>
    %571 = math.exp %570 : vector<64x64xf32>
    %cst_186 = arith.constant dense<0.000000e+00> : vector<64xf32>
    %572 = vector.multi_reduction <add>, %571, %cst_186 [1] : vector<64x64xf32> to vector<64xf32>
    %573 = vector.shape_cast %572 : vector<64xf32> to vector<64x1xf32>
    %574 = tpu.reciprocal %573 {approx = true} : vector<64x1xf32> -> vector<64x1xf32>
    %575 = vector.broadcast %574 : vector<64x1xf32> to vector<64x64xf32>
    %576 = arith.mulf %571, %575 : vector<64x64xf32>
    %577 = arith.truncf %576 : vector<64x64xf32> to vector<64x64xbf16>
    %578 = arith.truncf %560 : vector<64x8xf32> to vector<64x8xbf16>
    %cst_187 = arith.constant dense<0.000000e+00> : vector<64x8xf32>
    %579 = tpu.matmul %577, %578, %cst_187 {dimension_numbers = #tpu.dot_dimension_numbers<[1], [0], [0], [1], [0, 0, 1, 1], [], []>} : vector<64x64xbf16>, vector<64x8xbf16>, vector<64x8xf32> -> vector<64x8xf32>
    %c1_188 = arith.constant 1 : index
    %c0_189 = arith.constant 0 : index
    %c0_190 = arith.constant 0 : index
    %c0_191 = arith.constant 0 : index
    %580 = vector.load %arg11[%c1_188, %c0_189, %c0_190, %c0_191] : memref<2x4x8x32xf32, #tpu.memory_space<vmem>>, vector<1x4x8x32xf32>
    %581 = vector.shape_cast %580 : vector<1x4x8x32xf32> to vector<4x8x32xf32>
    %582 = vector.extract_strided_slice %535 {offsets = [0, 0], sizes = [1, 32], strides = [1, 1]} : vector<9x32xf32> to vector<1x32xf32>
    %583 = vector.extract_strided_slice %579 {offsets = [0, 0], sizes = [16, 8], strides = [1, 1]} : vector<64x8xf32> to vector<16x8xf32>
    %584 = vector.extract_strided_slice %581 {offsets = [0, 0, 0], sizes = [1, 8, 32], strides = [1, 1, 1]} : vector<4x8x32xf32> to vector<1x8x32xf32>
    %585 = vector.shape_cast %584 : vector<1x8x32xf32> to vector<8x32xf32>
    %586 = arith.truncf %583 : vector<16x8xf32> to vector<16x8xbf16>
    %587 = arith.truncf %585 : vector<8x32xf32> to vector<8x32xbf16>
    %cst_192 = arith.constant dense<0.000000e+00> : vector<16x32xf32>
    %588 = tpu.matmul %586, %587, %cst_192 {dimension_numbers = #tpu.dot_dimension_numbers<[1], [0], [0], [1], [0, 0, 1, 1], [], []>} : vector<16x8xbf16>, vector<8x32xbf16>, vector<16x32xf32> -> vector<16x32xf32>
    %589 = vector.extract_strided_slice %579 {offsets = [16, 0], sizes = [16, 8], strides = [1, 1]} : vector<64x8xf32> to vector<16x8xf32>
    %590 = vector.extract_strided_slice %581 {offsets = [1, 0, 0], sizes = [1, 8, 32], strides = [1, 1, 1]} : vector<4x8x32xf32> to vector<1x8x32xf32>
    %591 = vector.shape_cast %590 : vector<1x8x32xf32> to vector<8x32xf32>
    %592 = arith.truncf %589 : vector<16x8xf32> to vector<16x8xbf16>
    %593 = arith.truncf %591 : vector<8x32xf32> to vector<8x32xbf16>
    %cst_193 = arith.constant dense<0.000000e+00> : vector<16x32xf32>
    %594 = tpu.matmul %592, %593, %cst_193 {dimension_numbers = #tpu.dot_dimension_numbers<[1], [0], [0], [1], [0, 0, 1, 1], [], []>} : vector<16x8xbf16>, vector<8x32xbf16>, vector<16x32xf32> -> vector<16x32xf32>
    %595 = arith.addf %588, %594 : vector<16x32xf32>
    %596 = vector.extract_strided_slice %579 {offsets = [32, 0], sizes = [16, 8], strides = [1, 1]} : vector<64x8xf32> to vector<16x8xf32>
    %597 = vector.extract_strided_slice %581 {offsets = [2, 0, 0], sizes = [1, 8, 32], strides = [1, 1, 1]} : vector<4x8x32xf32> to vector<1x8x32xf32>
    %598 = vector.shape_cast %597 : vector<1x8x32xf32> to vector<8x32xf32>
    %599 = arith.truncf %596 : vector<16x8xf32> to vector<16x8xbf16>
    %600 = arith.truncf %598 : vector<8x32xf32> to vector<8x32xbf16>
    %cst_194 = arith.constant dense<0.000000e+00> : vector<16x32xf32>
    %601 = tpu.matmul %599, %600, %cst_194 {dimension_numbers = #tpu.dot_dimension_numbers<[1], [0], [0], [1], [0, 0, 1, 1], [], []>} : vector<16x8xbf16>, vector<8x32xbf16>, vector<16x32xf32> -> vector<16x32xf32>
    %602 = arith.addf %595, %601 : vector<16x32xf32>
    %603 = vector.extract_strided_slice %579 {offsets = [48, 0], sizes = [16, 8], strides = [1, 1]} : vector<64x8xf32> to vector<16x8xf32>
    %604 = vector.extract_strided_slice %581 {offsets = [3, 0, 0], sizes = [1, 8, 32], strides = [1, 1, 1]} : vector<4x8x32xf32> to vector<1x8x32xf32>
    %605 = vector.shape_cast %604 : vector<1x8x32xf32> to vector<8x32xf32>
    %606 = arith.truncf %603 : vector<16x8xf32> to vector<16x8xbf16>
    %607 = arith.truncf %605 : vector<8x32xf32> to vector<8x32xbf16>
    %cst_195 = arith.constant dense<0.000000e+00> : vector<16x32xf32>
    %608 = tpu.matmul %606, %607, %cst_195 {dimension_numbers = #tpu.dot_dimension_numbers<[1], [0], [0], [1], [0, 0, 1, 1], [], []>} : vector<16x8xbf16>, vector<8x32xbf16>, vector<16x32xf32> -> vector<16x32xf32>
    %609 = arith.addf %602, %608 : vector<16x32xf32>
    %610 = vector.broadcast %582 : vector<1x32xf32> to vector<16x32xf32>
    %611 = arith.addf %609, %610 : vector<16x32xf32>
    %612 = arith.addf %611, %533 : vector<16x32xf32>
    %613 = vector.extract_strided_slice %535 {offsets = [1, 0], sizes = [1, 32], strides = [1, 1]} : vector<9x32xf32> to vector<1x32xf32>
    %614 = vector.extract_strided_slice %535 {offsets = [2, 0], sizes = [1, 32], strides = [1, 1]} : vector<9x32xf32> to vector<1x32xf32>
    %cst_196 = arith.constant dense<0.000000e+00> : vector<16xf32>
    %615 = vector.multi_reduction <add>, %612, %cst_196 [1] : vector<16x32xf32> to vector<16xf32>
    %616 = vector.shape_cast %615 : vector<16xf32> to vector<16x1xf32>
    %cst_197 = arith.constant 3.200000e+01 : f32
    %617 = vector.broadcast %cst_197 : f32 to vector<16x1xf32>
    %618 = arith.divf %616, %617 : vector<16x1xf32>
    %619 = vector.broadcast %618 : vector<16x1xf32> to vector<16x32xf32>
    %620 = arith.subf %612, %619 : vector<16x32xf32>
    %621 = arith.mulf %620, %620 : vector<16x32xf32>
    %cst_198 = arith.constant dense<0.000000e+00> : vector<16xf32>
    %622 = vector.multi_reduction <add>, %621, %cst_198 [1] : vector<16x32xf32> to vector<16xf32>
    %623 = vector.shape_cast %622 : vector<16xf32> to vector<16x1xf32>
    %cst_199 = arith.constant 3.200000e+01 : f32
    %624 = vector.broadcast %cst_199 : f32 to vector<16x1xf32>
    %625 = arith.divf %623, %624 : vector<16x1xf32>
    %cst_200 = arith.constant 9.99999974E-6 : f32
    %626 = vector.broadcast %cst_200 : f32 to vector<16x1xf32>
    %627 = arith.addf %625, %626 : vector<16x1xf32>
    %628 = math.rsqrt %627 : vector<16x1xf32>
    %629 = vector.broadcast %628 : vector<16x1xf32> to vector<16x32xf32>
    %630 = arith.mulf %620, %629 : vector<16x32xf32>
    %631 = vector.broadcast %613 : vector<1x32xf32> to vector<16x32xf32>
    %632 = arith.mulf %630, %631 : vector<16x32xf32>
    %633 = vector.broadcast %614 : vector<1x32xf32> to vector<16x32xf32>
    %634 = arith.addf %632, %633 : vector<16x32xf32>
    %c1_201 = arith.constant 1 : index
    %c0_202 = arith.constant 0 : index
    %c0_203 = arith.constant 0 : index
    %c0_204 = arith.constant 0 : index
    %635 = vector.load %arg12[%c1_201, %c0_202, %c0_203, %c0_204] : memref<2x4x32x8xf32, #tpu.memory_space<vmem>>, vector<1x4x32x8xf32>
    %636 = vector.shape_cast %635 : vector<1x4x32x8xf32> to vector<4x32x8xf32>
    %637 = tpu.concatenate %634, %284 in 0 : vector<16x32xf32>, vector<16x32xf32> -> vector<32x32xf32>
    %638 = vector.extract_strided_slice %636 {offsets = [0, 0, 0], sizes = [1, 32, 8], strides = [1, 1, 1]} : vector<4x32x8xf32> to vector<1x32x8xf32>
    %639 = vector.shape_cast %638 : vector<1x32x8xf32> to vector<32x8xf32>
    %640 = arith.truncf %637 : vector<32x32xf32> to vector<32x32xbf16>
    %641 = arith.truncf %639 : vector<32x8xf32> to vector<32x8xbf16>
    %cst_205 = arith.constant dense<0.000000e+00> : vector<32x8xf32>
    %642 = tpu.matmul %640, %641, %cst_205 {dimension_numbers = #tpu.dot_dimension_numbers<[1], [0], [0], [1], [0, 0, 1, 1], [], []>} : vector<32x32xbf16>, vector<32x8xbf16>, vector<32x8xf32> -> vector<32x8xf32>
    %643 = vector.extract_strided_slice %642 {offsets = [0, 0], sizes = [16, 8], strides = [1, 1]} : vector<32x8xf32> to vector<16x8xf32>
    %644 = vector.extract_strided_slice %642 {offsets = [16, 0], sizes = [16, 8], strides = [1, 1]} : vector<32x8xf32> to vector<16x8xf32>
    %645 = vector.extract_strided_slice %636 {offsets = [1, 0, 0], sizes = [1, 32, 8], strides = [1, 1, 1]} : vector<4x32x8xf32> to vector<1x32x8xf32>
    %646 = vector.shape_cast %645 : vector<1x32x8xf32> to vector<32x8xf32>
    %647 = arith.truncf %637 : vector<32x32xf32> to vector<32x32xbf16>
    %648 = arith.truncf %646 : vector<32x8xf32> to vector<32x8xbf16>
    %cst_206 = arith.constant dense<0.000000e+00> : vector<32x8xf32>
    %649 = tpu.matmul %647, %648, %cst_206 {dimension_numbers = #tpu.dot_dimension_numbers<[1], [0], [0], [1], [0, 0, 1, 1], [], []>} : vector<32x32xbf16>, vector<32x8xbf16>, vector<32x8xf32> -> vector<32x8xf32>
    %650 = vector.extract_strided_slice %649 {offsets = [0, 0], sizes = [16, 8], strides = [1, 1]} : vector<32x8xf32> to vector<16x8xf32>
    %651 = vector.extract_strided_slice %649 {offsets = [16, 0], sizes = [16, 8], strides = [1, 1]} : vector<32x8xf32> to vector<16x8xf32>
    %652 = vector.extract_strided_slice %636 {offsets = [2, 0, 0], sizes = [1, 32, 8], strides = [1, 1, 1]} : vector<4x32x8xf32> to vector<1x32x8xf32>
    %653 = vector.shape_cast %652 : vector<1x32x8xf32> to vector<32x8xf32>
    %654 = arith.truncf %637 : vector<32x32xf32> to vector<32x32xbf16>
    %655 = arith.truncf %653 : vector<32x8xf32> to vector<32x8xbf16>
    %cst_207 = arith.constant dense<0.000000e+00> : vector<32x8xf32>
    %656 = tpu.matmul %654, %655, %cst_207 {dimension_numbers = #tpu.dot_dimension_numbers<[1], [0], [0], [1], [0, 0, 1, 1], [], []>} : vector<32x32xbf16>, vector<32x8xbf16>, vector<32x8xf32> -> vector<32x8xf32>
    %657 = vector.extract_strided_slice %656 {offsets = [0, 0], sizes = [16, 8], strides = [1, 1]} : vector<32x8xf32> to vector<16x8xf32>
    %658 = vector.extract_strided_slice %656 {offsets = [16, 0], sizes = [16, 8], strides = [1, 1]} : vector<32x8xf32> to vector<16x8xf32>
    %659 = vector.extract_strided_slice %636 {offsets = [3, 0, 0], sizes = [1, 32, 8], strides = [1, 1, 1]} : vector<4x32x8xf32> to vector<1x32x8xf32>
    %660 = vector.shape_cast %659 : vector<1x32x8xf32> to vector<32x8xf32>
    %661 = arith.truncf %637 : vector<32x32xf32> to vector<32x32xbf16>
    %662 = arith.truncf %660 : vector<32x8xf32> to vector<32x8xbf16>
    %cst_208 = arith.constant dense<0.000000e+00> : vector<32x8xf32>
    %663 = tpu.matmul %661, %662, %cst_208 {dimension_numbers = #tpu.dot_dimension_numbers<[1], [0], [0], [1], [0, 0, 1, 1], [], []>} : vector<32x32xbf16>, vector<32x8xbf16>, vector<32x8xf32> -> vector<32x8xf32>
    %664 = vector.extract_strided_slice %663 {offsets = [0, 0], sizes = [16, 8], strides = [1, 1]} : vector<32x8xf32> to vector<16x8xf32>
    %665 = vector.extract_strided_slice %663 {offsets = [16, 0], sizes = [16, 8], strides = [1, 1]} : vector<32x8xf32> to vector<16x8xf32>
    %666 = tpu.concatenate %643, %650, %657, %664 in 0 : vector<16x8xf32>, vector<16x8xf32>, vector<16x8xf32>, vector<16x8xf32> -> vector<64x8xf32>
    %667 = tpu.concatenate %644, %651, %658, %665 in 0 : vector<16x8xf32>, vector<16x8xf32>, vector<16x8xf32>, vector<16x8xf32> -> vector<64x8xf32>
    %668 = arith.truncf %666 : vector<64x8xf32> to vector<64x8xbf16>
    %669 = arith.truncf %667 : vector<64x8xf32> to vector<64x8xbf16>
    "tpu.trace_start"() <{level = 10 : i32, message = "md,nd->mn"}> : () -> ()
    %cst_209 = arith.constant dense<0.000000e+00> : vector<64x64xf32>
    %670 = tpu.matmul %668, %669, %cst_209 {dimension_numbers = #tpu.dot_dimension_numbers<[1], [1], [0], [0], [0, 0, 1, 0], [], []>} : vector<64x8xbf16>, vector<64x8xbf16>, vector<64x64xf32> -> vector<64x64xf32>
    "tpu.trace_stop"() : () -> ()
    %cst_210 = arith.constant 0.353553385 : f32
    %671 = vector.broadcast %cst_210 : f32 to vector<64x64xf32>
    %672 = arith.mulf %670, %671 : vector<64x64xf32>
    %673 = arith.addf %672, %0 : vector<64x64xf32>
    %cst_211 = arith.constant dense<0xFF800000> : vector<64xf32>
    %674 = vector.multi_reduction <maximumf>, %673, %cst_211 [1] : vector<64x64xf32> to vector<64xf32>
    %675 = vector.shape_cast %674 : vector<64xf32> to vector<64x1xf32>
    %676 = vector.broadcast %675 : vector<64x1xf32> to vector<64x64xf32>
    %677 = arith.subf %673, %676 : vector<64x64xf32>
    %678 = math.exp %677 : vector<64x64xf32>
    %cst_212 = arith.constant dense<0.000000e+00> : vector<64xf32>
    %679 = vector.multi_reduction <add>, %678, %cst_212 [1] : vector<64x64xf32> to vector<64xf32>
    %680 = vector.shape_cast %679 : vector<64xf32> to vector<64x1xf32>
    %681 = tpu.reciprocal %680 {approx = true} : vector<64x1xf32> -> vector<64x1xf32>
    %682 = vector.broadcast %681 : vector<64x1xf32> to vector<64x64xf32>
    %683 = arith.mulf %678, %682 : vector<64x64xf32>
    %684 = arith.truncf %683 : vector<64x64xf32> to vector<64x64xbf16>
    %685 = arith.truncf %667 : vector<64x8xf32> to vector<64x8xbf16>
    %cst_213 = arith.constant dense<0.000000e+00> : vector<64x8xf32>
    %686 = tpu.matmul %684, %685, %cst_213 {dimension_numbers = #tpu.dot_dimension_numbers<[1], [0], [0], [1], [0, 0, 1, 1], [], []>} : vector<64x64xbf16>, vector<64x8xbf16>, vector<64x8xf32> -> vector<64x8xf32>
    %c1_214 = arith.constant 1 : index
    %c0_215 = arith.constant 0 : index
    %c0_216 = arith.constant 0 : index
    %c0_217 = arith.constant 0 : index
    %687 = vector.load %arg13[%c1_214, %c0_215, %c0_216, %c0_217] : memref<2x4x8x32xf32, #tpu.memory_space<vmem>>, vector<1x4x8x32xf32>
    %688 = vector.shape_cast %687 : vector<1x4x8x32xf32> to vector<4x8x32xf32>
    %689 = vector.extract_strided_slice %535 {offsets = [3, 0], sizes = [1, 32], strides = [1, 1]} : vector<9x32xf32> to vector<1x32xf32>
    %690 = vector.extract_strided_slice %686 {offsets = [0, 0], sizes = [16, 8], strides = [1, 1]} : vector<64x8xf32> to vector<16x8xf32>
    %691 = vector.extract_strided_slice %688 {offsets = [0, 0, 0], sizes = [1, 8, 32], strides = [1, 1, 1]} : vector<4x8x32xf32> to vector<1x8x32xf32>
    %692 = vector.shape_cast %691 : vector<1x8x32xf32> to vector<8x32xf32>
    %693 = arith.truncf %690 : vector<16x8xf32> to vector<16x8xbf16>
    %694 = arith.truncf %692 : vector<8x32xf32> to vector<8x32xbf16>
    %cst_218 = arith.constant dense<0.000000e+00> : vector<16x32xf32>
    %695 = tpu.matmul %693, %694, %cst_218 {dimension_numbers = #tpu.dot_dimension_numbers<[1], [0], [0], [1], [0, 0, 1, 1], [], []>} : vector<16x8xbf16>, vector<8x32xbf16>, vector<16x32xf32> -> vector<16x32xf32>
    %696 = vector.extract_strided_slice %686 {offsets = [16, 0], sizes = [16, 8], strides = [1, 1]} : vector<64x8xf32> to vector<16x8xf32>
    %697 = vector.extract_strided_slice %688 {offsets = [1, 0, 0], sizes = [1, 8, 32], strides = [1, 1, 1]} : vector<4x8x32xf32> to vector<1x8x32xf32>
    %698 = vector.shape_cast %697 : vector<1x8x32xf32> to vector<8x32xf32>
    %699 = arith.truncf %696 : vector<16x8xf32> to vector<16x8xbf16>
    %700 = arith.truncf %698 : vector<8x32xf32> to vector<8x32xbf16>
    %cst_219 = arith.constant dense<0.000000e+00> : vector<16x32xf32>
    %701 = tpu.matmul %699, %700, %cst_219 {dimension_numbers = #tpu.dot_dimension_numbers<[1], [0], [0], [1], [0, 0, 1, 1], [], []>} : vector<16x8xbf16>, vector<8x32xbf16>, vector<16x32xf32> -> vector<16x32xf32>
    %702 = arith.addf %695, %701 : vector<16x32xf32>
    %703 = vector.extract_strided_slice %686 {offsets = [32, 0], sizes = [16, 8], strides = [1, 1]} : vector<64x8xf32> to vector<16x8xf32>
    %704 = vector.extract_strided_slice %688 {offsets = [2, 0, 0], sizes = [1, 8, 32], strides = [1, 1, 1]} : vector<4x8x32xf32> to vector<1x8x32xf32>
    %705 = vector.shape_cast %704 : vector<1x8x32xf32> to vector<8x32xf32>
    %706 = arith.truncf %703 : vector<16x8xf32> to vector<16x8xbf16>
    %707 = arith.truncf %705 : vector<8x32xf32> to vector<8x32xbf16>
    %cst_220 = arith.constant dense<0.000000e+00> : vector<16x32xf32>
    %708 = tpu.matmul %706, %707, %cst_220 {dimension_numbers = #tpu.dot_dimension_numbers<[1], [0], [0], [1], [0, 0, 1, 1], [], []>} : vector<16x8xbf16>, vector<8x32xbf16>, vector<16x32xf32> -> vector<16x32xf32>
    %709 = arith.addf %702, %708 : vector<16x32xf32>
    %710 = vector.extract_strided_slice %686 {offsets = [48, 0], sizes = [16, 8], strides = [1, 1]} : vector<64x8xf32> to vector<16x8xf32>
    %711 = vector.extract_strided_slice %688 {offsets = [3, 0, 0], sizes = [1, 8, 32], strides = [1, 1, 1]} : vector<4x8x32xf32> to vector<1x8x32xf32>
    %712 = vector.shape_cast %711 : vector<1x8x32xf32> to vector<8x32xf32>
    %713 = arith.truncf %710 : vector<16x8xf32> to vector<16x8xbf16>
    %714 = arith.truncf %712 : vector<8x32xf32> to vector<8x32xbf16>
    %cst_221 = arith.constant dense<0.000000e+00> : vector<16x32xf32>
    %715 = tpu.matmul %713, %714, %cst_221 {dimension_numbers = #tpu.dot_dimension_numbers<[1], [0], [0], [1], [0, 0, 1, 1], [], []>} : vector<16x8xbf16>, vector<8x32xbf16>, vector<16x32xf32> -> vector<16x32xf32>
    %716 = arith.addf %709, %715 : vector<16x32xf32>
    %717 = vector.broadcast %689 : vector<1x32xf32> to vector<16x32xf32>
    %718 = arith.addf %716, %717 : vector<16x32xf32>
    %719 = arith.addf %718, %634 : vector<16x32xf32>
    %720 = vector.extract_strided_slice %535 {offsets = [4, 0], sizes = [1, 32], strides = [1, 1]} : vector<9x32xf32> to vector<1x32xf32>
    %721 = vector.extract_strided_slice %535 {offsets = [5, 0], sizes = [1, 32], strides = [1, 1]} : vector<9x32xf32> to vector<1x32xf32>
    %cst_222 = arith.constant dense<0.000000e+00> : vector<16xf32>
    %722 = vector.multi_reduction <add>, %719, %cst_222 [1] : vector<16x32xf32> to vector<16xf32>
    %723 = vector.shape_cast %722 : vector<16xf32> to vector<16x1xf32>
    %cst_223 = arith.constant 3.200000e+01 : f32
    %724 = vector.broadcast %cst_223 : f32 to vector<16x1xf32>
    %725 = arith.divf %723, %724 : vector<16x1xf32>
    %726 = vector.broadcast %725 : vector<16x1xf32> to vector<16x32xf32>
    %727 = arith.subf %719, %726 : vector<16x32xf32>
    %728 = arith.mulf %727, %727 : vector<16x32xf32>
    %cst_224 = arith.constant dense<0.000000e+00> : vector<16xf32>
    %729 = vector.multi_reduction <add>, %728, %cst_224 [1] : vector<16x32xf32> to vector<16xf32>
    %730 = vector.shape_cast %729 : vector<16xf32> to vector<16x1xf32>
    %cst_225 = arith.constant 3.200000e+01 : f32
    %731 = vector.broadcast %cst_225 : f32 to vector<16x1xf32>
    %732 = arith.divf %730, %731 : vector<16x1xf32>
    %cst_226 = arith.constant 9.99999974E-6 : f32
    %733 = vector.broadcast %cst_226 : f32 to vector<16x1xf32>
    %734 = arith.addf %732, %733 : vector<16x1xf32>
    %735 = math.rsqrt %734 : vector<16x1xf32>
    %736 = vector.broadcast %735 : vector<16x1xf32> to vector<16x32xf32>
    %737 = arith.mulf %727, %736 : vector<16x32xf32>
    %738 = vector.broadcast %720 : vector<1x32xf32> to vector<16x32xf32>
    %739 = arith.mulf %737, %738 : vector<16x32xf32>
    %740 = vector.broadcast %721 : vector<1x32xf32> to vector<16x32xf32>
    %741 = arith.addf %739, %740 : vector<16x32xf32>
    %c1_227 = arith.constant 1 : index
    %c0_228 = arith.constant 0 : index
    %c0_229 = arith.constant 0 : index
    %742 = vector.load %arg14[%c1_227, %c0_228, %c0_229] : memref<2x32x64xf32, #tpu.memory_space<vmem>>, vector<1x32x64xf32>
    %743 = vector.shape_cast %742 : vector<1x32x64xf32> to vector<32x64xf32>
    %c1_230 = arith.constant 1 : index
    %c0_231 = arith.constant 0 : index
    %c0_232 = arith.constant 0 : index
    %744 = vector.load %arg15[%c1_230, %c0_231, %c0_232] : memref<2x64x32xf32, #tpu.memory_space<vmem>>, vector<1x64x32xf32>
    %745 = vector.shape_cast %744 : vector<1x64x32xf32> to vector<64x32xf32>
    %746 = vector.extract_strided_slice %535 {offsets = [6, 0], sizes = [1, 32], strides = [1, 1]} : vector<9x32xf32> to vector<1x32xf32>
    %747 = arith.truncf %741 : vector<16x32xf32> to vector<16x32xbf16>
    %748 = arith.truncf %743 : vector<32x64xf32> to vector<32x64xbf16>
    %cst_233 = arith.constant dense<0.000000e+00> : vector<16x64xf32>
    %749 = tpu.matmul %747, %748, %cst_233 {dimension_numbers = #tpu.dot_dimension_numbers<[1], [0], [0], [1], [0, 0, 1, 1], [], []>} : vector<16x32xbf16>, vector<32x64xbf16>, vector<16x64xf32> -> vector<16x64xf32>
    %750 = vector.broadcast %537 : vector<1x64xf32> to vector<16x64xf32>
    %751 = arith.addf %749, %750 : vector<16x64xf32>
    %cst_234 = arith.constant 0.000000e+00 : f32
    %752 = vector.broadcast %cst_234 : f32 to vector<16x64xf32>
    %753 = arith.maximumf %751, %752 : vector<16x64xf32>
    %754 = arith.truncf %753 : vector<16x64xf32> to vector<16x64xbf16>
    %755 = arith.truncf %745 : vector<64x32xf32> to vector<64x32xbf16>
    %cst_235 = arith.constant dense<0.000000e+00> : vector<16x32xf32>
    %756 = tpu.matmul %754, %755, %cst_235 {dimension_numbers = #tpu.dot_dimension_numbers<[1], [0], [0], [1], [0, 0, 1, 1], [], []>} : vector<16x64xbf16>, vector<64x32xbf16>, vector<16x32xf32> -> vector<16x32xf32>
    %757 = vector.broadcast %746 : vector<1x32xf32> to vector<16x32xf32>
    %758 = arith.addf %756, %757 : vector<16x32xf32>
    %759 = arith.addf %758, %741 : vector<16x32xf32>
    %760 = vector.extract_strided_slice %535 {offsets = [7, 0], sizes = [1, 32], strides = [1, 1]} : vector<9x32xf32> to vector<1x32xf32>
    %761 = vector.extract_strided_slice %535 {offsets = [8, 0], sizes = [1, 32], strides = [1, 1]} : vector<9x32xf32> to vector<1x32xf32>
    %cst_236 = arith.constant dense<0.000000e+00> : vector<16xf32>
    %762 = vector.multi_reduction <add>, %759, %cst_236 [1] : vector<16x32xf32> to vector<16xf32>
    %763 = vector.shape_cast %762 : vector<16xf32> to vector<16x1xf32>
    %cst_237 = arith.constant 3.200000e+01 : f32
    %764 = vector.broadcast %cst_237 : f32 to vector<16x1xf32>
    %765 = arith.divf %763, %764 : vector<16x1xf32>
    %766 = vector.broadcast %765 : vector<16x1xf32> to vector<16x32xf32>
    %767 = arith.subf %759, %766 : vector<16x32xf32>
    %768 = arith.mulf %767, %767 : vector<16x32xf32>
    %cst_238 = arith.constant dense<0.000000e+00> : vector<16xf32>
    %769 = vector.multi_reduction <add>, %768, %cst_238 [1] : vector<16x32xf32> to vector<16xf32>
    %770 = vector.shape_cast %769 : vector<16xf32> to vector<16x1xf32>
    %cst_239 = arith.constant 3.200000e+01 : f32
    %771 = vector.broadcast %cst_239 : f32 to vector<16x1xf32>
    %772 = arith.divf %770, %771 : vector<16x1xf32>
    %cst_240 = arith.constant 9.99999974E-6 : f32
    %773 = vector.broadcast %cst_240 : f32 to vector<16x1xf32>
    %774 = arith.addf %772, %773 : vector<16x1xf32>
    %775 = math.rsqrt %774 : vector<16x1xf32>
    %776 = vector.broadcast %775 : vector<16x1xf32> to vector<16x32xf32>
    %777 = arith.mulf %767, %776 : vector<16x32xf32>
    %778 = vector.broadcast %760 : vector<1x32xf32> to vector<16x32xf32>
    %779 = arith.mulf %777, %778 : vector<16x32xf32>
    %780 = vector.broadcast %761 : vector<1x32xf32> to vector<16x32xf32>
    %781 = arith.addf %779, %780 : vector<16x32xf32>
    %c0_241 = arith.constant 0 : index
    %c0_242 = arith.constant 0 : index
    %782 = vector.load %arg18[%c0_241, %c0_242] : memref<32x320xf32, #tpu.memory_space<vmem>>, vector<32x320xf32>
    %783 = arith.truncf %781 : vector<16x32xf32> to vector<16x32xbf16>
    %784 = arith.truncf %782 : vector<32x320xf32> to vector<32x320xbf16>
    %cst_243 = arith.constant dense<0.000000e+00> : vector<16x320xf32>
    %785 = tpu.matmul %783, %784, %cst_243 {dimension_numbers = #tpu.dot_dimension_numbers<[1], [0], [0], [1], [0, 0, 1, 1], [], []>} : vector<16x32xbf16>, vector<32x320xbf16>, vector<16x320xf32> -> vector<16x320xf32>
    %c0_244 = arith.constant 0 : index
    %c0_245 = arith.constant 0 : index
    %786 = vector.load %arg19[%c0_244, %c0_245] : memref<16x320xf32, #tpu.memory_space<vmem>>, vector<16x320xf32>
    %787 = arith.mulf %785, %786 : vector<16x320xf32>
    %c0_246 = arith.constant 0 : index
    %c0_247 = arith.constant 0 : index
    %788 = vector.load %arg20[%c0_246, %c0_247] : memref<320x40xf32, #tpu.memory_space<vmem>>, vector<320x40xf32>
    %789 = arith.truncf %787 : vector<16x320xf32> to vector<16x320xbf16>
    %790 = arith.truncf %788 : vector<320x40xf32> to vector<320x40xbf16>
    %cst_248 = arith.constant dense<0.000000e+00> : vector<16x40xf32>
    %791 = tpu.matmul %789, %790, %cst_248 {dimension_numbers = #tpu.dot_dimension_numbers<[1], [0], [0], [1], [0, 0, 1, 1], [], []>} : vector<16x320xbf16>, vector<320x40xbf16>, vector<16x40xf32> -> vector<16x40xf32>
    %c0_249 = arith.constant 0 : index
    %c0_250 = arith.constant 0 : index
    %792 = vector.load %arg21[%c0_249, %c0_250] : memref<2x16xf32, #tpu.memory_space<vmem>>, vector<2x16xf32>
    %793 = arith.truncf %792 : vector<2x16xf32> to vector<2x16xbf16>
    %794 = arith.truncf %791 : vector<16x40xf32> to vector<16x40xbf16>
    %cst_251 = arith.constant dense<0.000000e+00> : vector<2x40xf32>
    %795 = tpu.matmul %793, %794, %cst_251 {dimension_numbers = #tpu.dot_dimension_numbers<[1], [0], [0], [1], [0, 0, 1, 1], [], []>} : vector<2x16xbf16>, vector<16x40xbf16>, vector<2x40xf32> -> vector<2x40xf32>
    %c0_252 = arith.constant 0 : index
    %c0_253 = arith.constant 0 : index
    %796 = vector.load %arg22[%c0_252, %c0_253] : memref<1x40xf32, #tpu.memory_space<vmem>>, vector<1x40xf32>
    %797 = vector.broadcast %796 : vector<1x40xf32> to vector<2x40xf32>
    %798 = arith.addf %795, %797 : vector<2x40xf32>
    %c0_254 = arith.constant 0 : index
    %c0_255 = arith.constant 0 : index
    %799 = vector.load %arg23[%c0_254, %c0_255] : memref<2x40xf32, #tpu.memory_space<vmem>>, vector<2x40xf32>
    tpu.vector_store %arg23[%c0_254, %c0_255], %798 {strides = array<i32>} : memref<2x40xf32, #tpu.memory_space<vmem>>, vector<2x40xf32>,
    return
  }
}

</mosaic_0001>

<llo_original>
// kernel: attentive_translator.1
$region0: #{attentive_translator.1}
  #allocation0 [shape = 'u32[]', space=smem, size = 0x4, offset = 0x4, fixed_abs, tag = 'smem constant byte address 0x4 - core index']
  #allocation1 [shape = 'u32[72,128]{1,0:T(1,128)}', space=vmem, size = 0x9000, scoped, tag = 'internal scratch']
  %s0 = inlined_call_operand.vmem [shape: f32[16,32], index: 0, kind: input, shape index: {}]
  %s1 = inlined_call_operand.vmem [shape: f32[16,32], index: 1, kind: input, shape index: {}]
  %s2 = inlined_call_operand.vmem [shape: f32[64,64], index: 2, kind: input, shape index: {}]
  %s3 = inlined_call_operand.vmem [shape: f32[64,64], index: 3, kind: input, shape index: {}]
  %s4 = inlined_call_operand.vmem [shape: f32[2,4,32,8], index: 4, kind: input, shape index: {}]
  %s5 = inlined_call_operand.vmem [shape: f32[2,4,8,32], index: 5, kind: input, shape index: {}]
  %s6 = inlined_call_operand.vmem [shape: f32[2,32,64], index: 6, kind: input, shape index: {}]
  %s7 = inlined_call_operand.vmem [shape: f32[2,64,32], index: 7, kind: input, shape index: {}]
  %s8 = inlined_call_operand.vmem [shape: f32[2,6,32], index: 8, kind: input, shape index: {}]
  %s9 = inlined_call_operand.vmem [shape: f32[2,1,64], index: 9, kind: input, shape index: {}]
  %s10 = inlined_call_operand.vmem [shape: f32[2,4,32,8], index: 10, kind: input, shape index: {}]
  %s11 = inlined_call_operand.vmem [shape: f32[2,4,8,32], index: 11, kind: input, shape index: {}]
  %s12 = inlined_call_operand.vmem [shape: f32[2,4,32,8], index: 12, kind: input, shape index: {}]
  %s13 = inlined_call_operand.vmem [shape: f32[2,4,8,32], index: 13, kind: input, shape index: {}]
  %s14 = inlined_call_operand.vmem [shape: f32[2,32,64], index: 14, kind: input, shape index: {}]
  %s15 = inlined_call_operand.vmem [shape: f32[2,64,32], index: 15, kind: input, shape index: {}]
  %s16 = inlined_call_operand.vmem [shape: f32[2,9,32], index: 16, kind: input, shape index: {}]
  %s17 = inlined_call_operand.vmem [shape: f32[2,1,64], index: 17, kind: input, shape index: {}]
  %s18 = inlined_call_operand.vmem [shape: f32[32,320], index: 18, kind: input, shape index: {}]
  %s19 = inlined_call_operand.vmem [shape: f32[16,320], index: 19, kind: input, shape index: {}]
  %s20 = inlined_call_operand.vmem [shape: f32[320,40], index: 20, kind: input, shape index: {}]
  %s21 = inlined_call_operand.vmem [shape: f32[2,16], index: 21, kind: input, shape index: {}]
  %s22 = inlined_call_operand.vmem [shape: f32[1,40], index: 22, kind: input, shape index: {}]
  %s23 = inlined_call_operand.hbm [shape: f32[2,40], index: 23, kind: output, shape index: {}]
  %s24 = sld [smem:[#allocation0]]
  $region102: #{attentive_translator.1} parent=0
    _
  %s26 = ssub.s32 1, %s24
  %s27 = scalar_select 0, %s26, %s24
  $region1: #{attentive_translator.1} parent=0
    #allocation2 [shape = 'u8[1024]{0}', space=vmem, size = 0x400, scoped, tag = 'output window, operand 0, single buffered']
    #allocation3 [shape = 's32[1]{0}', space=sflag, size = 0x4, scoped, tag = 'scoped memory for attentive_translator.1']
    %28 = vsyncpa [#allocation3], 0
    // Predicated region
    $region2: #{attentive_translator.1} parent=1 // pred_check
      _
    $region3: #{attentive_translator.1} parent=1 // pred_check_branch
      %30 = sbr.rel (0) target = $region5
    $region4: #{attentive_translator.1} parent=1 // pred_region
      _
    $region5: #{attentive_translator.1} parent=1 // pred_fallthru
      _
    // Predicated region
    $region6: #{attentive_translator.1} parent=1 // pred_check
      _
    $region7: #{attentive_translator.1} parent=1 // pred_check_branch
      %32 = sbr.rel (0) target = $region9
    $region8: #{attentive_translator.1} parent=1 // pred_region
      _
    $region9: #{attentive_translator.1} parent=1 // pred_fallthru
      _
    // Predicated region
    $region10: #{attentive_translator.1} parent=1 // pred_check
      _
    $region11: #{attentive_translator.1} parent=1 // pred_check_branch
      %34 = sbr.rel (0) target = $region13
    $region12: #{attentive_translator.1} parent=1 // pred_region
      _
    $region13: #{attentive_translator.1} parent=1 // pred_fallthru
      _
    // Predicated region
    $region14: #{attentive_translator.1} parent=1 // pred_check
      _
    $region15: #{attentive_translator.1} parent=1 // pred_check_branch
      %36 = sbr.rel (0) target = $region17
    $region16: #{attentive_translator.1} parent=1 // pred_region
      _
    $region17: #{attentive_translator.1} parent=1 // pred_fallthru
      _
    // Predicated region
    $region18: #{attentive_translator.1} parent=1 // pred_check
      _
    $region19: #{attentive_translator.1} parent=1 // pred_check_branch
      %38 = sbr.rel (0) target = $region21
    $region20: #{attentive_translator.1} parent=1 // pred_region
      _
    $region21: #{attentive_translator.1} parent=1 // pred_fallthru
      _
    // Predicated region
    $region22: #{attentive_translator.1} parent=1 // pred_check
      _
    $region23: #{attentive_translator.1} parent=1 // pred_check_branch
      %40 = sbr.rel (0) target = $region25
    $region24: #{attentive_translator.1} parent=1 // pred_region
      _
    $region25: #{attentive_translator.1} parent=1 // pred_fallthru
      _
    // Predicated region
    $region26: #{attentive_translator.1} parent=1 // pred_check
      _
    $region27: #{attentive_translator.1} parent=1 // pred_check_branch
      %42 = sbr.rel (0) target = $region29
    $region28: #{attentive_translator.1} parent=1 // pred_region
      _
    $region29: #{attentive_translator.1} parent=1 // pred_fallthru
      _
    // Predicated region
    $region30: #{attentive_translator.1} parent=1 // pred_check
      _
    $region31: #{attentive_translator.1} parent=1 // pred_check_branch
      %44 = sbr.rel (0) target = $region33
    $region32: #{attentive_translator.1} parent=1 // pred_region
      _
    $region33: #{attentive_translator.1} parent=1 // pred_fallthru
      _
    // Predicated region
    $region34: #{attentive_translator.1} parent=1 // pred_check
      _
    $region35: #{attentive_translator.1} parent=1 // pred_check_branch
      %46 = sbr.rel (0) target = $region37
    $region36: #{attentive_translator.1} parent=1 // pred_region
      _
    $region37: #{attentive_translator.1} parent=1 // pred_fallthru
      _
    // Predicated region
    $region38: #{attentive_translator.1} parent=1 // pred_check
      _
    $region39: #{attentive_translator.1} parent=1 // pred_check_branch
      %48 = sbr.rel (0) target = $region41
    $region40: #{attentive_translator.1} parent=1 // pred_region
      _
    $region41: #{attentive_translator.1} parent=1 // pred_fallthru
      _
    // Predicated region
    $region42: #{attentive_translator.1} parent=1 // pred_check
      _
    $region43: #{attentive_translator.1} parent=1 // pred_check_branch
      %50 = sbr.rel (0) target = $region45
    $region44: #{attentive_translator.1} parent=1 // pred_region
      _
    $region45: #{attentive_translator.1} parent=1 // pred_fallthru
      _
    // Predicated region
    $region46: #{attentive_translator.1} parent=1 // pred_check
      _
    $region47: #{attentive_translator.1} parent=1 // pred_check_branch
      %52 = sbr.rel (0) target = $region49
    $region48: #{attentive_translator.1} parent=1 // pred_region
      _
    $region49: #{attentive_translator.1} parent=1 // pred_fallthru
      _
    // Predicated region
    $region50: #{attentive_translator.1} parent=1 // pred_check
      _
    $region51: #{attentive_translator.1} parent=1 // pred_check_branch
      %54 = sbr.rel (0) target = $region53
    $region52: #{attentive_translator.1} parent=1 // pred_region
      _
    $region53: #{attentive_translator.1} parent=1 // pred_fallthru
      _
    // Predicated region
    $region54: #{attentive_translator.1} parent=1 // pred_check
      _
    $region55: #{attentive_translator.1} parent=1 // pred_check_branch
      %56 = sbr.rel (0) target = $region57
    $region56: #{attentive_translator.1} parent=1 // pred_region
      _
    $region57: #{attentive_translator.1} parent=1 // pred_fallthru
      _
    // Predicated region
    $region58: #{attentive_translator.1} parent=1 // pred_check
      _
    $region59: #{attentive_translator.1} parent=1 // pred_check_branch
      %58 = sbr.rel (0) target = $region61
    $region60: #{attentive_translator.1} parent=1 // pred_region
      _
    $region61: #{attentive_translator.1} parent=1 // pred_fallthru
      _
    // Predicated region
    $region62: #{attentive_translator.1} parent=1 // pred_check
      _
    $region63: #{attentive_translator.1} parent=1 // pred_check_branch
      %60 = sbr.rel (0) target = $region65
    $region64: #{attentive_translator.1} parent=1 // pred_region
      _
    $region65: #{attentive_translator.1} parent=1 // pred_fallthru
      _
    // Predicated region
    $region66: #{attentive_translator.1} parent=1 // pred_check
      _
    $region67: #{attentive_translator.1} parent=1 // pred_check_branch
      %62 = sbr.rel (0) target = $region69
    $region68: #{attentive_translator.1} parent=1 // pred_region
      _
    $region69: #{attentive_translator.1} parent=1 // pred_fallthru
      _
    // Predicated region
    $region70: #{attentive_translator.1} parent=1 // pred_check
      _
    $region71: #{attentive_translator.1} parent=1 // pred_check_branch
      %64 = sbr.rel (0) target = $region73
    $region72: #{attentive_translator.1} parent=1 // pred_region
      _
    $region73: #{attentive_translator.1} parent=1 // pred_fallthru
      _
    // Predicated region
    $region74: #{attentive_translator.1} parent=1 // pred_check
      _
    $region75: #{attentive_translator.1} parent=1 // pred_check_branch
      %66 = sbr.rel (0) target = $region77
    $region76: #{attentive_translator.1} parent=1 // pred_region
      _
    $region77: #{attentive_translator.1} parent=1 // pred_fallthru
      _
    // Predicated region
    $region78: #{attentive_translator.1} parent=1 // pred_check
      _
    $region79: #{attentive_translator.1} parent=1 // pred_check_branch
      %68 = sbr.rel (0) target = $region81
    $region80: #{attentive_translator.1} parent=1 // pred_region
      _
    $region81: #{attentive_translator.1} parent=1 // pred_fallthru
      _
    // Predicated region
    $region82: #{attentive_translator.1} parent=1 // pred_check
      _
    $region83: #{attentive_translator.1} parent=1 // pred_check_branch
      %70 = sbr.rel (0) target = $region85
    $region84: #{attentive_translator.1} parent=1 // pred_region
      _
    $region85: #{attentive_translator.1} parent=1 // pred_fallthru
      _
    // Predicated region
    $region86: #{attentive_translator.1} parent=1 // pred_check
      _
    $region87: #{attentive_translator.1} parent=1 // pred_check_branch
      %72 = sbr.rel (0) target = $region89
    $region88: #{attentive_translator.1} parent=1 // pred_region
      _
    $region89: #{attentive_translator.1} parent=1 // pred_fallthru
      _
    // Predicated region
    $region90: #{attentive_translator.1} parent=1 // pred_check
      _
    $region91: #{attentive_translator.1} parent=1 // pred_check_branch
      %74 = sbr.rel (0) target = $region93
    $region92: #{attentive_translator.1} parent=1 // pred_region
      _
    $region93: #{attentive_translator.1} parent=1 // pred_fallthru
      _
    %v76 = vld [vmem:[%s2] sm:$0xff]
    %v77 = vld [vmem:[%s2 + $0x8] sm:$0xff]
    %v78 = vld [vmem:[%s2 + $0x10] sm:$0xff]
    %v79 = vld [vmem:[%s2 + $0x18] sm:$0xff]
    %v80 = vld [vmem:[%s2 + $0x20] sm:$0xff]
    %v81 = vld [vmem:[%s2 + $0x28] sm:$0xff]
    %v82 = vld [vmem:[%s2 + $0x30] sm:$0xff]
    %v83 = vld [vmem:[%s2 + $0x38] sm:$0xff]
    %v84 = vld [vmem:[%s3] sm:$0xff]
    %v85 = vld [vmem:[%s3 + $0x8] sm:$0xff]
    %v86 = vld [vmem:[%s3 + $0x10] sm:$0xff]
    %v87 = vld [vmem:[%s3 + $0x18] sm:$0xff]
    %v88 = vld [vmem:[%s3 + $0x20] sm:$0xff]
    %v89 = vld [vmem:[%s3 + $0x28] sm:$0xff]
    %v90 = vld [vmem:[%s3 + $0x30] sm:$0xff]
    %v91 = vld [vmem:[%s3 + $0x38] sm:$0xff]
    %v92 = vld [vmem:[%s0] sm:$0xff]
    %v93 = vld [vmem:[%s0 + $0x8] sm:$0xff]
    %v94 = vld [vmem:[%s4] sm:$0xff]
    %v95 = vld [vmem:[%s4 + $0x8] sm:$0xff]
    %v96 = vld [vmem:[%s4 + $0x10] sm:$0xff]
    %v97 = vld [vmem:[%s4 + $0x18] sm:$0xff]
    %v98 = vld [vmem:[%s4 + $0x20] sm:$0xff]
    %v99 = vld [vmem:[%s4 + $0x28] sm:$0xff]
    %v100 = vld [vmem:[%s4 + $0x30] sm:$0xff]
    %v101 = vld [vmem:[%s4 + $0x38] sm:$0xff]
    %v102 = vld [vmem:[%s4 + $0x40] sm:$0xff]
    %v103 = vld [vmem:[%s4 + $0x48] sm:$0xff]
    %v104 = vld [vmem:[%s4 + $0x50] sm:$0xff]
    %v105 = vld [vmem:[%s4 + $0x58] sm:$0xff]
    %v106 = vld [vmem:[%s4 + $0x60] sm:$0xff]
    %v107 = vld [vmem:[%s4 + $0x68] sm:$0xff]
    %v108 = vld [vmem:[%s4 + $0x70] sm:$0xff]
    %v109 = vld [vmem:[%s4 + $0x78] sm:$0xff]
    %v110 = vld [vmem:[%s5] sm:$0xff]
    %v111 = vld [vmem:[%s5 + $0x8] sm:$0xff]
    %v112 = vld [vmem:[%s5 + $0x10] sm:$0xff]
    %v113 = vld [vmem:[%s5 + $0x18] sm:$0xff]
    %v114 = vld [vmem:[%s8] sm:$0x3f]
    %v115 = vld [vmem:[%s9] sm:$0x1]
    %v116 = vpack.c.bf16 %v93, %v92
    %v117 = vpack.c.bf16 %v95, %v94
    %v118 = vpack.c.bf16 %v97, %v96
    %vm119 = vcmask 261120
    %v121 = vsel %vm119, %v116, 0
    %123 = vmatpush.bf16.msra.mxu0 0
    %124 = vmatpush.bf16.msra.mxu0 0
    %125 = vmatpush.bf16.msra.mxu0 0
    %126 = vmatpush.bf16.msra.mxu0 0
    %127 = vmatpush.bf16.msra.mxu0 0
    %128 = vmatpush.bf16.msra.mxu0 0
    %129 = vmatpush.bf16.msra.mxu0 %v118
    %130 = vmatpush.bf16.msra.mxu0 %v117
    %131 = vmatmul.bf16.gmra.mxu0 %v121
    %v132 = vpop.f32.mrf.mxu0
    %v133 = vadd.f32 0.0, %v132
    %v134 = vpop.f32.mrf.mxu0
    %v135 = vadd.f32 0.0, %v134
    %136 = vdwg.mxu0
    %v137 = vpack.c.bf16 %v99, %v98
    %v138 = vpack.c.bf16 %v101, %v100
    %139 = vmatpush.bf16.msra.mxu0 0
    %140 = vmatpush.bf16.msra.mxu0 0
    %141 = vmatpush.bf16.msra.mxu0 0
    %142 = vmatpush.bf16.msra.mxu0 0
    %143 = vmatpush.bf16.msra.mxu0 0
    %144 = vmatpush.bf16.msra.mxu0 0
    %145 = vmatpush.bf16.msra.mxu0 %v138
    %146 = vmatpush.bf16.msra.mxu0 %v137
    %147 = vmatmul.bf16.gmra.mxu0 %v121
    %v148 = vpop.f32.mrf.mxu0
    %v149 = vadd.f32 0.0, %v148
    %v150 = vpop.f32.mrf.mxu0
    %v151 = vadd.f32 0.0, %v150
    %152 = vdwg.mxu0
    %v153 = vpack.c.bf16 %v103, %v102
    %v154 = vpack.c.bf16 %v105, %v104
    %155 = vmatpush.bf16.msra.mxu0 0
    %156 = vmatpush.bf16.msra.mxu0 0
    %157 = vmatpush.bf16.msra.mxu0 0
    %158 = vmatpush.bf16.msra.mxu0 0
    %159 = vmatpush.bf16.msra.mxu0 0
    %160 = vmatpush.bf16.msra.mxu0 0
    %161 = vmatpush.bf16.msra.mxu0 %v154
    %162 = vmatpush.bf16.msra.mxu0 %v153
    %163 = vmatmul.bf16.gmra.mxu0 %v121
    %v164 = vpop.f32.mrf.mxu0
    %v165 = vadd.f32 0.0, %v164
    %v166 = vpop.f32.mrf.mxu0
    %v167 = vadd.f32 0.0, %v166
    %168 = vdwg.mxu0
    %v169 = vpack.c.bf16 %v107, %v106
    %v170 = vpack.c.bf16 %v109, %v108
    %171 = vmatpush.bf16.msra.mxu0 0
    %172 = vmatpush.bf16.msra.mxu0 0
    %173 = vmatpush.bf16.msra.mxu0 0
    %174 = vmatpush.bf16.msra.mxu0 0
    %175 = vmatpush.bf16.msra.mxu0 0
    %176 = vmatpush.bf16.msra.mxu0 0
    %177 = vmatpush.bf16.msra.mxu0 %v170
    %178 = vmatpush.bf16.msra.mxu0 %v169
    %179 = vmatmul.bf16.gmra.mxu0 %v121
    %v180 = vpop.f32.mrf.mxu0
    %v181 = vadd.f32 0.0, %v180
    %v182 = vpop.f32.mrf.mxu0
    %v183 = vadd.f32 0.0, %v182
    %184 = vdwg.mxu0
    %v185 = vpack.c.bf16 %v135, %v133
    %v186 = vpack.c.bf16 %v151, %v149
    %v187 = vpack.c.bf16 %v167, %v165
    %v188 = vpack.c.bf16 %v183, %v181
    %vm189 = vcmask 64512
    %v191 = vsel %vm189, %v185, 0
    %v194 = vsel %vm189, %v186, 0
    %v197 = vsel %vm189, %v187, 0
    %v200 = vsel %vm189, %v188, 0
    %202 = vmatpush.bf16.xpose.msra.mxu0 0
    %203 = vmatpush.bf16.xpose.msra.mxu0 0
    %204 = vmatpush.bf16.xpose.msra.mxu0 0
    %205 = vmatpush.bf16.xpose.msra.mxu0 0
    %206 = vmatpush.bf16.xpose.msra.mxu0 %v200
    %207 = vmatpush.bf16.xpose.msra.mxu0 %v197
    %208 = vmatpush.bf16.xpose.msra.mxu0 %v194
    %209 = vmatpush.bf16.xpose.msra.mxu0 %v191
    %210 = vmatmul.bf16.gmra.mxu0 %v191
    %v211 = vpop.f32.mrf.mxu0
    %v212 = vadd.f32 0.0, %v211
    %v213 = vpop.f32.mrf.mxu0
    %v214 = vadd.f32 0.0, %v213
    %215 = vmatmul.bf16.gmra.mxu0 %v194
    %v216 = vpop.f32.mrf.mxu0
    %v217 = vadd.f32 0.0, %v216
    %v218 = vpop.f32.mrf.mxu0
    %v219 = vadd.f32 0.0, %v218
    %220 = vmatmul.bf16.gmra.mxu0 %v197
    %v221 = vpop.f32.mrf.mxu0
    %v222 = vadd.f32 0.0, %v221
    %v223 = vpop.f32.mrf.mxu0
    %v224 = vadd.f32 0.0, %v223
    %225 = vmatmul.bf16.gmra.mxu0 %v200
    %v226 = vpop.f32.mrf.mxu0
    %v227 = vadd.f32 0.0, %v226
    %v228 = vpop.f32.mrf.mxu0
    %v229 = vadd.f32 0.0, %v228
    %230 = vdwg.mxu0
    %v231 = vmul.f32 %v212, 0.35355338
    %v232 = vmul.f32 %v214, 0.35355338
    %v233 = vmul.f32 %v217, 0.35355338
    %v234 = vmul.f32 %v219, 0.35355338
    %v235 = vmul.f32 %v222, 0.35355338
    %v236 = vmul.f32 %v224, 0.35355338
    %v237 = vmul.f32 %v227, 0.35355338
    %v238 = vmul.f32 %v229, 0.35355338
    %v239 = vadd.f32 %v231, %v76
    %v240 = vadd.f32 %v232, %v77
    %v241 = vadd.f32 %v233, %v78
    %v242 = vadd.f32 %v234, %v79
    %v243 = vadd.f32 %v235, %v80
    %v244 = vadd.f32 %v236, %v81
    %v245 = vadd.f32 %v237, %v82
    %v246 = vadd.f32 %v238, %v83
    %vm247 = vcmask 523264
    %v248 = vsel %vm247, %v239, -inf
    %249 = vmax.xlane.f32.xlu0 %v248
    %v250 = vpop.xlane.xlu0 %249
    %v251 = vsel %vm247, %v240, -inf
    %252 = vmax.xlane.f32.xlu0 %v251
    %v253 = vpop.xlane.xlu0 %252
    %v254 = vsel %vm247, %v241, -inf
    %255 = vmax.xlane.f32.xlu0 %v254
    %v256 = vpop.xlane.xlu0 %255
    %v257 = vsel %vm247, %v242, -inf
    %258 = vmax.xlane.f32.xlu0 %v257
    %v259 = vpop.xlane.xlu0 %258
    %v260 = vsel %vm247, %v243, -inf
    %261 = vmax.xlane.f32.xlu0 %v260
    %v262 = vpop.xlane.xlu0 %261
    %v263 = vsel %vm247, %v244, -inf
    %264 = vmax.xlane.f32.xlu0 %v263
    %v265 = vpop.xlane.xlu0 %264
    %v266 = vsel %vm247, %v245, -inf
    %267 = vmax.xlane.f32.xlu0 %v266
    %v268 = vpop.xlane.xlu0 %267
    %v269 = vsel %vm247, %v246, -inf
    %270 = vmax.xlane.f32.xlu0 %v269
    %v271 = vpop.xlane.xlu0 %270
    %v272 = vsub.f32 %v239, %v250
    %v273 = vsub.f32 %v240, %v253
    %v274 = vsub.f32 %v241, %v256
    %v275 = vsub.f32 %v242, %v259
    %v276 = vsub.f32 %v243, %v262
    %v277 = vsub.f32 %v244, %v265
    %v278 = vsub.f32 %v245, %v268
    %v279 = vsub.f32 %v246, %v271
    %v280 = vmul.f32 %v272, 1.442695
    %v281 = vpow.pop %v280
    %v282 = vmul.f32 %v273, 1.442695
    %v283 = vpow.pop %v282
    %v284 = vmul.f32 %v274, 1.442695
    %v285 = vpow.pop %v284
    %v286 = vmul.f32 %v275, 1.442695
    %v287 = vpow.pop %v286
    %v288 = vmul.f32 %v276, 1.442695
    %v289 = vpow.pop %v288
    %v290 = vmul.f32 %v277, 1.442695
    %v291 = vpow.pop %v290
    %v292 = vmul.f32 %v278, 1.442695
    %v293 = vpow.pop %v292
    %v294 = vmul.f32 %v279, 1.442695
    %v295 = vpow.pop %v294
    %v296 = vsel %vm247, %v281, 0.0
    %297 = vadd.xlane.f32.xlu0 %v296
    %v298 = vpop.xlane.xlu0 %297
    %v299 = vsel %vm247, %v283, 0.0
    %300 = vadd.xlane.f32.xlu0 %v299
    %v301 = vpop.xlane.xlu0 %300
    %v302 = vsel %vm247, %v285, 0.0
    %303 = vadd.xlane.f32.xlu0 %v302
    %v304 = vpop.xlane.xlu0 %303
    %v305 = vsel %vm247, %v287, 0.0
    %306 = vadd.xlane.f32.xlu0 %v305
    %v307 = vpop.xlane.xlu0 %306
    %v308 = vsel %vm247, %v289, 0.0
    %309 = vadd.xlane.f32.xlu0 %v308
    %v310 = vpop.xlane.xlu0 %309
    %v311 = vsel %vm247, %v291, 0.0
    %312 = vadd.xlane.f32.xlu0 %v311
    %v313 = vpop.xlane.xlu0 %312
    %v314 = vsel %vm247, %v293, 0.0
    %315 = vadd.xlane.f32.xlu0 %v314
    %v316 = vpop.xlane.xlu0 %315
    %v317 = vsel %vm247, %v295, 0.0
    %318 = vadd.xlane.f32.xlu0 %v317
    %v319 = vpop.xlane.xlu0 %318
    %v320 = vrcp.pop %v298
    %v321 = vrcp.pop %v301
    %v322 = vrcp.pop %v304
    %v323 = vrcp.pop %v307
    %v324 = vrcp.pop %v310
    %v325 = vrcp.pop %v313
    %v326 = vrcp.pop %v316
    %v327 = vrcp.pop %v319
    %v328 = vmul.f32 %v281, %v320
    %v329 = vmul.f32 %v283, %v321
    %v330 = vmul.f32 %v285, %v322
    %v331 = vmul.f32 %v287, %v323
    %v332 = vmul.f32 %v289, %v324
    %v333 = vmul.f32 %v291, %v325
    %v334 = vmul.f32 %v293, %v326
    %v335 = vmul.f32 %v295, %v327
    %v336 = vpack.c.bf16 %v329, %v328
    %v337 = vpack.c.bf16 %v331, %v330
    %v338 = vpack.c.bf16 %v333, %v332
    %v339 = vpack.c.bf16 %v335, %v334
    %v341 = vsel %vm247, %v336, 0
    %v344 = vsel %vm247, %v337, 0
    %v347 = vsel %vm247, %v338, 0
    %v350 = vsel %vm247, %v339, 0
    %352 = vmatpush.bf16.msra.mxu0 0
    %353 = vmatpush.bf16.msra.mxu0 0
    %354 = vmatpush.bf16.msra.mxu0 0
    %355 = vmatpush.bf16.msra.mxu0 0
    %356 = vmatpush.bf16.msra.mxu0 %v188
    %357 = vmatpush.bf16.msra.mxu0 %v187
    %358 = vmatpush.bf16.msra.mxu0 %v186
    %359 = vmatpush.bf16.msra.mxu0 %v185
    %360 = vmatmul.bf16.gmra.mxu0 %v341
    %v361 = vpop.f32.mrf.mxu0
    %v362 = vadd.f32 0.0, %v361
    %v363 = vpop.f32.mrf.mxu0
    %v364 = vadd.f32 0.0, %v363
    %365 = vmatmul.bf16.gmra.mxu0 %v344
    %v366 = vpop.f32.mrf.mxu0
    %v367 = vadd.f32 0.0, %v366
    %v368 = vpop.f32.mrf.mxu0
    %v369 = vadd.f32 0.0, %v368
    %370 = vmatmul.bf16.gmra.mxu0 %v347
    %v371 = vpop.f32.mrf.mxu0
    %v372 = vadd.f32 0.0, %v371
    %v373 = vpop.f32.mrf.mxu0
    %v374 = vadd.f32 0.0, %v373
    %375 = vmatmul.bf16.gmra.mxu0 %v350
    %v376 = vpop.f32.mrf.mxu0
    %v377 = vadd.f32 0.0, %v376
    %v378 = vpop.f32.mrf.mxu0
    %v379 = vadd.f32 0.0, %v378
    %380 = vdwg.mxu0
    %v381 = vpack.c.bf16 %v364, %v362
    %v382 = vpack.c.bf16 %v110, %v110
    %v383 = vpack.c.bf16 %v369, %v367
    %v384 = vpack.c.bf16 %v111, %v111
    %v386 = vsel %vm189, %v383, 0
    %vm388 = vcmask 1043456
    %v390 = vsel %vm388, %v384, 0
    %392 = vmatpush.bf16.msra.mxu0 0
    %393 = vmatpush.bf16.msra.mxu0 0
    %394 = vmatpush.bf16.msra.mxu0 0
    %395 = vmatpush.bf16.msra.mxu0 0
    %396 = vmatpush.bf16.msra.mxu0 0
    %397 = vmatpush.bf16.msra.mxu0 0
    %398 = vmatpush.bf16.msra.mxu0 0
    %399 = vmatpush.bf16.msra.mxu0 %v390
    %400 = vmatmul.bf16.gmra.mxu0 %v386
    %v401 = vpop.f32.mrf.mxu0
    %v402 = vadd.f32 0.0, %v401
    %v403 = vpop.f32.mrf.mxu0
    %v404 = vadd.f32 0.0, %v403
    %405 = vdwg.mxu0
    %v407 = vsel %vm189, %v381, 0
    %v410 = vsel %vm388, %v382, 0
    %412 = vmatpush.bf16.msra.mxu0 0
    %413 = vmatpush.bf16.msra.mxu0 0
    %414 = vmatpush.bf16.msra.mxu0 0
    %415 = vmatpush.bf16.msra.mxu0 0
    %416 = vmatpush.bf16.msra.mxu0 0
    %417 = vmatpush.bf16.msra.mxu0 0
    %418 = vmatpush.bf16.msra.mxu0 0
    %419 = vmatpush.bf16.msra.mxu0 %v410
    %420 = vmatmul.bf16.gmra.mxu0 %v407
    %v421 = vpop.f32.mrf.mxu0
    %v422 = vadd.f32 %v402, %v421
    %v423 = vpop.f32.mrf.mxu0
    %v424 = vadd.f32 %v404, %v423
    %425 = vdwg.mxu0
    %v426 = vpack.c.bf16 %v374, %v372
    %v427 = vpack.c.bf16 %v112, %v112
    %v429 = vsel %vm189, %v426, 0
    %v432 = vsel %vm388, %v427, 0
    %434 = vmatpush.bf16.msra.mxu0 0
    %435 = vmatpush.bf16.msra.mxu0 0
    %436 = vmatpush.bf16.msra.mxu0 0
    %437 = vmatpush.bf16.msra.mxu0 0
    %438 = vmatpush.bf16.msra.mxu0 0
    %439 = vmatpush.bf16.msra.mxu0 0
    %440 = vmatpush.bf16.msra.mxu0 0
    %441 = vmatpush.bf16.msra.mxu0 %v432
    %442 = vmatmul.bf16.gmra.mxu0 %v429
    %v443 = vpop.f32.mrf.mxu0
    %v444 = vadd.f32 0.0, %v443
    %v445 = vpop.f32.mrf.mxu0
    %v446 = vadd.f32 0.0, %v445
    %447 = vdwg.mxu0
    %v448 = vadd.f32 %v422, %v444
    %v449 = vadd.f32 %v424, %v446
    %v450 = vpack.c.bf16 %v379, %v377
    %v451 = vpack.c.bf16 %v113, %v113
    %v453 = vsel %vm189, %v450, 0
    %v456 = vsel %vm388, %v451, 0
    %458 = vmatpush.bf16.msra.mxu0 0
    %459 = vmatpush.bf16.msra.mxu0 0
    %460 = vmatpush.bf16.msra.mxu0 0
    %461 = vmatpush.bf16.msra.mxu0 0
    %462 = vmatpush.bf16.msra.mxu0 0
    %463 = vmatpush.bf16.msra.mxu0 0
    %464 = vmatpush.bf16.msra.mxu0 0
    %465 = vmatpush.bf16.msra.mxu0 %v456
    %466 = vmatmul.bf16.gmra.mxu0 %v453
    %v467 = vpop.f32.mrf.mxu0
    %v468 = vadd.f32 0.0, %v467
    %v469 = vpop.f32.mrf.mxu0
    %v470 = vadd.f32 0.0, %v469
    %471 = vdwg.mxu0
    %v472 = vadd.f32 %v448, %v468
    %v473 = vadd.f32 %v449, %v470
    %v474 = vperm.slane %v114, 0
    %v475 = vadd.f32 %v472, %v474
    %v476 = vadd.f32 %v473, %v474
    %v477 = vadd.f32 %v475, %v92
    %v478 = vadd.f32 %v476, %v93
    %v479 = vsel %vm119, %v477, 0.0
    %480 = vadd.xlane.f32.xlu0 %v479
    %v481 = vpop.xlane.xlu0 %480
    %v482 = vsel %vm119, %v478, 0.0
    %483 = vadd.xlane.f32.xlu0 %v482
    %v484 = vpop.xlane.xlu0 %483
    %v485 = vrcp.pop 32.0
    %v486 = vmul.f32 32.0, %v485
    %v487 = vsub.f32 1.0, %v486
    %v488 = vmul.f32 %v485, %v487
    %v489 = vadd.f32 %v485, %v488
    %vm490 = vweird.f32 %v485
    %v491 = vsel %vm490, %v485, %v489
    %v492 = vmul.f32 %v481, %v491
    %v493 = vmul.f32 %v484, %v491
    %v494 = vsub.f32 %v477, %v492
    %v495 = vsub.f32 %v478, %v493
    %v496 = vmul.f32 %v494, %v494
    %v497 = vmul.f32 %v495, %v495
    %v498 = vsel %vm119, %v496, 0.0
    %499 = vadd.xlane.f32.xlu0 %v498
    %v500 = vpop.xlane.xlu0 %499
    %v501 = vsel %vm119, %v497, 0.0
    %502 = vadd.xlane.f32.xlu0 %v501
    %v503 = vpop.xlane.xlu0 %502
    %v504 = vmul.f32 %v500, %v491
    %v505 = vmul.f32 %v503, %v491
    %v506 = vadd.f32 %v504, 1e-05
    %v507 = vadd.f32 %v505, 1e-05
    %v508 = vrsqrt.pop %v506
    %v509 = vmul.f32 %v508, %v506
    %v510 = vmul.f32 %v509, %v508
    %v511 = vmul.f32 0.5, %v510
    %v512 = vsub.f32 1.5, %v511
    %v513 = vmul.f32 %v508, %v512
    %vm514 = vweird.f32 %v506
    %vm515 = vweird.f32 %v508
    %vm516 = vmor %vm514, %vm515
    %v517 = vsel %vm516, %v508, %v513
    %v518 = vrsqrt.pop %v507
    %v519 = vmul.f32 %v518, %v507
    %v520 = vmul.f32 %v519, %v518
    %v521 = vmul.f32 0.5, %v520
    %v522 = vsub.f32 1.5, %v521
    %v523 = vmul.f32 %v518, %v522
    %vm524 = vweird.f32 %v507
    %vm525 = vweird.f32 %v518
    %vm526 = vmor %vm524, %vm525
    %v527 = vsel %vm526, %v518, %v523
    %v528 = vmul.f32 %v494, %v517
    %v529 = vmul.f32 %v495, %v527
    %v530 = vperm.slane %v114, 1
    %v531 = vmul.f32 %v528, %v530
    %v532 = vmul.f32 %v529, %v530
    %v533 = vperm.slane %v114, 2
    %v534 = vadd.f32 %v531, %v533
    %v535 = vadd.f32 %v532, %v533
    %v536 = vld [vmem:[%s6] sm:$0xff]
    %v537 = vld [vmem:[%s6 + $0x8] sm:$0xff]
    %v538 = vld [vmem:[%s6 + $0x10] sm:$0xff]
    %v539 = vld [vmem:[%s6 + $0x18] sm:$0xff]
    %v540 = vld [vmem:[%s7] sm:$0xff]
    %v541 = vld [vmem:[%s7 + $0x8] sm:$0xff]
    %v542 = vld [vmem:[%s7 + $0x10] sm:$0xff]
    %v543 = vld [vmem:[%s7 + $0x18] sm:$0xff]
    %v544 = vld [vmem:[%s7 + $0x20] sm:$0xff]
    %v545 = vld [vmem:[%s7 + $0x28] sm:$0xff]
    %v546 = vld [vmem:[%s7 + $0x30] sm:$0xff]
    %v547 = vld [vmem:[%s7 + $0x38] sm:$0xff]
    %v548 = vpack.c.bf16 %v535, %v534
    %v549 = vpack.c.bf16 %v537, %v536
    %v550 = vpack.c.bf16 %v539, %v538
    %v552 = vperm.slane %v115, 0
    %v555 = vsel %vm119, %v548, 0
    %557 = vmatpush.bf16.msra.mxu0 0
    %558 = vmatpush.bf16.msra.mxu0 0
    %559 = vmatpush.bf16.msra.mxu0 0
    %560 = vmatpush.bf16.msra.mxu0 0
    %561 = vmatpush.bf16.msra.mxu0 0
    %562 = vmatpush.bf16.msra.mxu0 0
    %563 = vmatpush.bf16.msra.mxu0 %v550
    %564 = vmatpush.bf16.msra.mxu0 %v549
    %565 = vmatmul.bf16.gmra.mxu0 %v555
    %v566 = vpop.f32.mrf.mxu0
    %v567 = vadd.f32 %v552, %v566
    %v568 = vpop.f32.mrf.mxu0
    %v569 = vadd.f32 %v552, %v568
    %570 = vdwg.mxu0
    %v571 = vmax.f32 %v567, 0.0
    %v572 = vmax.f32 %v569, 0.0
    %v573 = vpack.c.bf16 %v572, %v571
    %v574 = vpack.c.bf16 %v541, %v540
    %v575 = vpack.c.bf16 %v543, %v542
    %v576 = vpack.c.bf16 %v545, %v544
    %v577 = vpack.c.bf16 %v547, %v546
    %v578 = vperm.slane %v114, 3
    %v580 = vsel %vm247, %v573, 0
    %582 = vmatpush.bf16.msra.mxu0 0
    %583 = vmatpush.bf16.msra.mxu0 0
    %584 = vmatpush.bf16.msra.mxu0 0
    %585 = vmatpush.bf16.msra.mxu0 0
    %586 = vmatpush.bf16.msra.mxu0 %v577
    %587 = vmatpush.bf16.msra.mxu0 %v576
    %588 = vmatpush.bf16.msra.mxu0 %v575
    %589 = vmatpush.bf16.msra.mxu0 %v574
    %590 = vmatmul.bf16.gmra.mxu0 %v580
    %v591 = vpop.f32.mrf.mxu0
    %v592 = vadd.f32 %v578, %v591
    %v593 = vpop.f32.mrf.mxu0
    %v594 = vadd.f32 %v578, %v593
    %595 = vdwg.mxu0
    %v596 = vadd.f32 %v592, %v534
    %v597 = vadd.f32 %v594, %v535
    %v598 = vsel %vm119, %v596, 0.0
    %599 = vadd.xlane.f32.xlu0 %v598
    %v600 = vpop.xlane.xlu0 %599
    %v601 = vsel %vm119, %v597, 0.0
    %602 = vadd.xlane.f32.xlu0 %v601
    %v603 = vpop.xlane.xlu0 %602
    %v604 = vmul.f32 %v600, %v491
    %v605 = vmul.f32 %v603, %v491
    %v606 = vsub.f32 %v596, %v604
    %v607 = vsub.f32 %v597, %v605
    %v608 = vmul.f32 %v606, %v606
    %v609 = vmul.f32 %v607, %v607
    %v610 = vsel %vm119, %v608, 0.0
    %611 = vadd.xlane.f32.xlu0 %v610
    %v612 = vpop.xlane.xlu0 %611
    %v613 = vsel %vm119, %v609, 0.0
    %614 = vadd.xlane.f32.xlu0 %v613
    %v615 = vpop.xlane.xlu0 %614
    %v616 = vmul.f32 %v612, %v491
    %v617 = vmul.f32 %v615, %v491
    %v618 = vadd.f32 %v616, 1e-05
    %v619 = vadd.f32 %v617, 1e-05
    %v620 = vrsqrt.pop %v618
    %v621 = vmul.f32 %v620, %v618
    %v622 = vmul.f32 %v621, %v620
    %v623 = vmul.f32 0.5, %v622
    %v624 = vsub.f32 1.5, %v623
    %v625 = vmul.f32 %v620, %v624
    %vm626 = vweird.f32 %v618
    %vm627 = vweird.f32 %v620
    %vm628 = vmor %vm626, %vm627
    %v629 = vsel %vm628, %v620, %v625
    %v630 = vrsqrt.pop %v619
    %v631 = vmul.f32 %v630, %v619
    %v632 = vmul.f32 %v631, %v630
    %v633 = vmul.f32 0.5, %v632
    %v634 = vsub.f32 1.5, %v633
    %v635 = vmul.f32 %v630, %v634
    %vm636 = vweird.f32 %v619
    %vm637 = vweird.f32 %v630
    %vm638 = vmor %vm636, %vm637
    %v639 = vsel %vm638, %v630, %v635
    %v640 = vmul.f32 %v606, %v629
    %v641 = vmul.f32 %v607, %v639
    %v642 = vperm.slane %v114, 4
    %v643 = vmul.f32 %v640, %v642
    %v644 = vmul.f32 %v641, %v642
    %v645 = vperm.slane %v114, 5
    %v646 = vadd.f32 %v643, %v645
    %v647 = vadd.f32 %v644, %v645
    %s648 = scalar_lea.vmem %s4, 128
    %v649 = vld [vmem:[%s648] sm:$0xff]
    %v650 = vld [vmem:[%s648 + $0x8] sm:$0xff]
    %v651 = vld [vmem:[%s648 + $0x10] sm:$0xff]
    %v652 = vld [vmem:[%s648 + $0x18] sm:$0xff]
    %v653 = vld [vmem:[%s648 + $0x20] sm:$0xff]
    %v654 = vld [vmem:[%s648 + $0x28] sm:$0xff]
    %v655 = vld [vmem:[%s648 + $0x30] sm:$0xff]
    %v656 = vld [vmem:[%s648 + $0x38] sm:$0xff]
    %v657 = vld [vmem:[%s648 + $0x40] sm:$0xff]
    %v658 = vld [vmem:[%s648 + $0x48] sm:$0xff]
    %v659 = vld [vmem:[%s648 + $0x50] sm:$0xff]
    %v660 = vld [vmem:[%s648 + $0x58] sm:$0xff]
    %v661 = vld [vmem:[%s648 + $0x60] sm:$0xff]
    %v662 = vld [vmem:[%s648 + $0x68] sm:$0xff]
    %v663 = vld [vmem:[%s648 + $0x70] sm:$0xff]
    %v664 = vld [vmem:[%s648 + $0x78] sm:$0xff]
    %s665 = scalar_lea.vmem %s5, 32
    %v666 = vld [vmem:[%s665] sm:$0xff]
    %v667 = vld [vmem:[%s665 + $0x8] sm:$0xff]
    %v668 = vld [vmem:[%s665 + $0x10] sm:$0xff]
    %v669 = vld [vmem:[%s665 + $0x18] sm:$0xff]
    %s670 = scalar_lea.vmem %s8, 8
    %v671 = vld [vmem:[%s670] sm:$0x3f]
    %s672 = scalar_lea.vmem %s9, 1
    %v673 = vld [vmem:[%s672] sm:$0x1]
    %v674 = vpack.c.bf16 %v647, %v646
    %v675 = vpack.c.bf16 %v650, %v649
    %v676 = vpack.c.bf16 %v652, %v651
    %v678 = vsel %vm119, %v674, 0
    %680 = vmatpush.bf16.msra.mxu0 0
    %681 = vmatpush.bf16.msra.mxu0 0
    %682 = vmatpush.bf16.msra.mxu0 0
    %683 = vmatpush.bf16.msra.mxu0 0
    %684 = vmatpush.bf16.msra.mxu0 0
    %685 = vmatpush.bf16.msra.mxu0 0
    %686 = vmatpush.bf16.msra.mxu0 %v676
    %687 = vmatpush.bf16.msra.mxu0 %v675
    %688 = vmatmul.bf16.gmra.mxu0 %v678
    %v689 = vpop.f32.mrf.mxu0
    %v690 = vadd.f32 0.0, %v689
    %v691 = vpop.f32.mrf.mxu0
    %v692 = vadd.f32 0.0, %v691
    %693 = vdwg.mxu0
    %v694 = vpack.c.bf16 %v654, %v653
    %v695 = vpack.c.bf16 %v656, %v655
    %696 = vmatpush.bf16.msra.mxu0 0
    %697 = vmatpush.bf16.msra.mxu0 0
    %698 = vmatpush.bf16.msra.mxu0 0
    %699 = vmatpush.bf16.msra.mxu0 0
    %700 = vmatpush.bf16.msra.mxu0 0
    %701 = vmatpush.bf16.msra.mxu0 0
    %702 = vmatpush.bf16.msra.mxu0 %v695
    %703 = vmatpush.bf16.msra.mxu0 %v694
    %704 = vmatmul.bf16.gmra.mxu0 %v678
    %v705 = vpop.f32.mrf.mxu0
    %v706 = vadd.f32 0.0, %v705
    %v707 = vpop.f32.mrf.mxu0
    %v708 = vadd.f32 0.0, %v707
    %709 = vdwg.mxu0
    %v710 = vpack.c.bf16 %v658, %v657
    %v711 = vpack.c.bf16 %v660, %v659
    %712 = vmatpush.bf16.msra.mxu0 0
    %713 = vmatpush.bf16.msra.mxu0 0
    %714 = vmatpush.bf16.msra.mxu0 0
    %715 = vmatpush.bf16.msra.mxu0 0
    %716 = vmatpush.bf16.msra.mxu0 0
    %717 = vmatpush.bf16.msra.mxu0 0
    %718 = vmatpush.bf16.msra.mxu0 %v711
    %719 = vmatpush.bf16.msra.mxu0 %v710
    %720 = vmatmul.bf16.gmra.mxu0 %v678
    %v721 = vpop.f32.mrf.mxu0
    %v722 = vadd.f32 0.0, %v721
    %v723 = vpop.f32.mrf.mxu0
    %v724 = vadd.f32 0.0, %v723
    %725 = vdwg.mxu0
    %v726 = vpack.c.bf16 %v662, %v661
    %v727 = vpack.c.bf16 %v664, %v663
    %728 = vmatpush.bf16.msra.mxu0 0
    %729 = vmatpush.bf16.msra.mxu0 0
    %730 = vmatpush.bf16.msra.mxu0 0
    %731 = vmatpush.bf16.msra.mxu0 0
    %732 = vmatpush.bf16.msra.mxu0 0
    %733 = vmatpush.bf16.msra.mxu0 0
    %734 = vmatpush.bf16.msra.mxu0 %v727
    %735 = vmatpush.bf16.msra.mxu0 %v726
    %736 = vmatmul.bf16.gmra.mxu0 %v678
    %v737 = vpop.f32.mrf.mxu0
    %v738 = vadd.f32 0.0, %v737
    %v739 = vpop.f32.mrf.mxu0
    %v740 = vadd.f32 0.0, %v739
    %741 = vdwg.mxu0
    %v742 = vpack.c.bf16 %v692, %v690
    %v743 = vpack.c.bf16 %v708, %v706
    %v744 = vpack.c.bf16 %v724, %v722
    %v745 = vpack.c.bf16 %v740, %v738
    %v747 = vsel %vm189, %v742, 0
    %v750 = vsel %vm189, %v743, 0
    %v753 = vsel %vm189, %v744, 0
    %v756 = vsel %vm189, %v745, 0
    %758 = vmatpush.bf16.xpose.msra.mxu0 0
    %759 = vmatpush.bf16.xpose.msra.mxu0 0
    %760 = vmatpush.bf16.xpose.msra.mxu0 0
    %761 = vmatpush.bf16.xpose.msra.mxu0 0
    %762 = vmatpush.bf16.xpose.msra.mxu0 %v756
    %763 = vmatpush.bf16.xpose.msra.mxu0 %v753
    %764 = vmatpush.bf16.xpose.msra.mxu0 %v750
    %765 = vmatpush.bf16.xpose.msra.mxu0 %v747
    %766 = vmatmul.bf16.gmra.mxu0 %v747
    %v767 = vpop.f32.mrf.mxu0
    %v768 = vadd.f32 0.0, %v767
    %v769 = vpop.f32.mrf.mxu0
    %v770 = vadd.f32 0.0, %v769
    %771 = vmatmul.bf16.gmra.mxu0 %v750
    %v772 = vpop.f32.mrf.mxu0
    %v773 = vadd.f32 0.0, %v772
    %v774 = vpop.f32.mrf.mxu0
    %v775 = vadd.f32 0.0, %v774
    %776 = vmatmul.bf16.gmra.mxu0 %v753
    %v777 = vpop.f32.mrf.mxu0
    %v778 = vadd.f32 0.0, %v777
    %v779 = vpop.f32.mrf.mxu0
    %v780 = vadd.f32 0.0, %v779
    %781 = vmatmul.bf16.gmra.mxu0 %v756
    %v782 = vpop.f32.mrf.mxu0
    %v783 = vadd.f32 0.0, %v782
    %v784 = vpop.f32.mrf.mxu0
    %v785 = vadd.f32 0.0, %v784
    %786 = vdwg.mxu0
    %v787 = vmul.f32 %v768, 0.35355338
    %v788 = vmul.f32 %v770, 0.35355338
    %v789 = vmul.f32 %v773, 0.35355338
    %v790 = vmul.f32 %v775, 0.35355338
    %v791 = vmul.f32 %v778, 0.35355338
    %v792 = vmul.f32 %v780, 0.35355338
    %v793 = vmul.f32 %v783, 0.35355338
    %v794 = vmul.f32 %v785, 0.35355338
    %v795 = vadd.f32 %v787, %v76
    %v796 = vadd.f32 %v788, %v77
    %v797 = vadd.f32 %v789, %v78
    %v798 = vadd.f32 %v790, %v79
    %v799 = vadd.f32 %v791, %v80
    %v800 = vadd.f32 %v792, %v81
    %v801 = vadd.f32 %v793, %v82
    %v802 = vadd.f32 %v794, %v83
    %v803 = vsel %vm247, %v795, -inf
    %804 = vmax.xlane.f32.xlu0 %v803
    %v805 = vpop.xlane.xlu0 %804
    %v806 = vsel %vm247, %v796, -inf
    %807 = vmax.xlane.f32.xlu0 %v806
    %v808 = vpop.xlane.xlu0 %807
    %v809 = vsel %vm247, %v797, -inf
    %810 = vmax.xlane.f32.xlu0 %v809
    %v811 = vpop.xlane.xlu0 %810
    %v812 = vsel %vm247, %v798, -inf
    %813 = vmax.xlane.f32.xlu0 %v812
    %v814 = vpop.xlane.xlu0 %813
    %v815 = vsel %vm247, %v799, -inf
    %816 = vmax.xlane.f32.xlu0 %v815
    %v817 = vpop.xlane.xlu0 %816
    %v818 = vsel %vm247, %v800, -inf
    %819 = vmax.xlane.f32.xlu0 %v818
    %v820 = vpop.xlane.xlu0 %819
    %v821 = vsel %vm247, %v801, -inf
    %822 = vmax.xlane.f32.xlu0 %v821
    %v823 = vpop.xlane.xlu0 %822
    %v824 = vsel %vm247, %v802, -inf
    %825 = vmax.xlane.f32.xlu0 %v824
    %v826 = vpop.xlane.xlu0 %825
    %v827 = vsub.f32 %v795, %v805
    %v828 = vsub.f32 %v796, %v808
    %v829 = vsub.f32 %v797, %v811
    %v830 = vsub.f32 %v798, %v814
    %v831 = vsub.f32 %v799, %v817
    %v832 = vsub.f32 %v800, %v820
    %v833 = vsub.f32 %v801, %v823
    %v834 = vsub.f32 %v802, %v826
    %v835 = vmul.f32 %v827, 1.442695
    %v836 = vpow.pop %v835
    %v837 = vmul.f32 %v828, 1.442695
    %v838 = vpow.pop %v837
    %v839 = vmul.f32 %v829, 1.442695
    %v840 = vpow.pop %v839
    %v841 = vmul.f32 %v830, 1.442695
    %v842 = vpow.pop %v841
    %v843 = vmul.f32 %v831, 1.442695
    %v844 = vpow.pop %v843
    %v845 = vmul.f32 %v832, 1.442695
    %v846 = vpow.pop %v845
    %v847 = vmul.f32 %v833, 1.442695
    %v848 = vpow.pop %v847
    %v849 = vmul.f32 %v834, 1.442695
    %v850 = vpow.pop %v849
    %v851 = vsel %vm247, %v836, 0.0
    %852 = vadd.xlane.f32.xlu0 %v851
    %v853 = vpop.xlane.xlu0 %852
    %v854 = vsel %vm247, %v838, 0.0
    %855 = vadd.xlane.f32.xlu0 %v854
    %v856 = vpop.xlane.xlu0 %855
    %v857 = vsel %vm247, %v840, 0.0
    %858 = vadd.xlane.f32.xlu0 %v857
    %v859 = vpop.xlane.xlu0 %858
    %v860 = vsel %vm247, %v842, 0.0
    %861 = vadd.xlane.f32.xlu0 %v860
    %v862 = vpop.xlane.xlu0 %861
    %v863 = vsel %vm247, %v844, 0.0
    %864 = vadd.xlane.f32.xlu0 %v863
    %v865 = vpop.xlane.xlu0 %864
    %v866 = vsel %vm247, %v846, 0.0
    %867 = vadd.xlane.f32.xlu0 %v866
    %v868 = vpop.xlane.xlu0 %867
    %v869 = vsel %vm247, %v848, 0.0
    %870 = vadd.xlane.f32.xlu0 %v869
    %v871 = vpop.xlane.xlu0 %870
    %v872 = vsel %vm247, %v850, 0.0
    %873 = vadd.xlane.f32.xlu0 %v872
    %v874 = vpop.xlane.xlu0 %873
    %v875 = vrcp.pop %v853
    %v876 = vrcp.pop %v856
    %v877 = vrcp.pop %v859
    %v878 = vrcp.pop %v862
    %v879 = vrcp.pop %v865
    %v880 = vrcp.pop %v868
    %v881 = vrcp.pop %v871
    %v882 = vrcp.pop %v874
    %v883 = vmul.f32 %v836, %v875
    %v884 = vmul.f32 %v838, %v876
    %v885 = vmul.f32 %v840, %v877
    %v886 = vmul.f32 %v842, %v878
    %v887 = vmul.f32 %v844, %v879
    %v888 = vmul.f32 %v846, %v880
    %v889 = vmul.f32 %v848, %v881
    %v890 = vmul.f32 %v850, %v882
    %v891 = vpack.c.bf16 %v884, %v883
    %v892 = vpack.c.bf16 %v886, %v885
    %v893 = vpack.c.bf16 %v888, %v887
    %v894 = vpack.c.bf16 %v890, %v889
    %v896 = vsel %vm247, %v891, 0
    %v899 = vsel %vm247, %v892, 0
    %v902 = vsel %vm247, %v893, 0
    %v905 = vsel %vm247, %v894, 0
    %907 = vmatpush.bf16.msra.mxu0 0
    %908 = vmatpush.bf16.msra.mxu0 0
    %909 = vmatpush.bf16.msra.mxu0 0
    %910 = vmatpush.bf16.msra.mxu0 0
    %911 = vmatpush.bf16.msra.mxu0 %v745
    %912 = vmatpush.bf16.msra.mxu0 %v744
    %913 = vmatpush.bf16.msra.mxu0 %v743
    %914 = vmatpush.bf16.msra.mxu0 %v742
    %915 = vmatmul.bf16.gmra.mxu0 %v896
    %v916 = vpop.f32.mrf.mxu0
    %v917 = vadd.f32 0.0, %v916
    %v918 = vpop.f32.mrf.mxu0
    %v919 = vadd.f32 0.0, %v918
    %920 = vmatmul.bf16.gmra.mxu0 %v899
    %v921 = vpop.f32.mrf.mxu0
    %v922 = vadd.f32 0.0, %v921
    %v923 = vpop.f32.mrf.mxu0
    %v924 = vadd.f32 0.0, %v923
    %925 = vmatmul.bf16.gmra.mxu0 %v902
    %v926 = vpop.f32.mrf.mxu0
    %v927 = vadd.f32 0.0, %v926
    %v928 = vpop.f32.mrf.mxu0
    %v929 = vadd.f32 0.0, %v928
    %930 = vmatmul.bf16.gmra.mxu0 %v905
    %v931 = vpop.f32.mrf.mxu0
    %v932 = vadd.f32 0.0, %v931
    %v933 = vpop.f32.mrf.mxu0
    %v934 = vadd.f32 0.0, %v933
    %935 = vdwg.mxu0
    %v936 = vpack.c.bf16 %v919, %v917
    %v937 = vpack.c.bf16 %v666, %v666
    %v938 = vpack.c.bf16 %v924, %v922
    %v939 = vpack.c.bf16 %v667, %v667
    %v941 = vsel %vm189, %v938, 0
    %v944 = vsel %vm388, %v939, 0
    %946 = vmatpush.bf16.msra.mxu0 0
    %947 = vmatpush.bf16.msra.mxu0 0
    %948 = vmatpush.bf16.msra.mxu0 0
    %949 = vmatpush.bf16.msra.mxu0 0
    %950 = vmatpush.bf16.msra.mxu0 0
    %951 = vmatpush.bf16.msra.mxu0 0
    %952 = vmatpush.bf16.msra.mxu0 0
    %953 = vmatpush.bf16.msra.mxu0 %v944
    %954 = vmatmul.bf16.gmra.mxu0 %v941
    %v955 = vpop.f32.mrf.mxu0
    %v956 = vadd.f32 0.0, %v955
    %v957 = vpop.f32.mrf.mxu0
    %v958 = vadd.f32 0.0, %v957
    %959 = vdwg.mxu0
    %v961 = vsel %vm189, %v936, 0
    %v964 = vsel %vm388, %v937, 0
    %966 = vmatpush.bf16.msra.mxu0 0
    %967 = vmatpush.bf16.msra.mxu0 0
    %968 = vmatpush.bf16.msra.mxu0 0
    %969 = vmatpush.bf16.msra.mxu0 0
    %970 = vmatpush.bf16.msra.mxu0 0
    %971 = vmatpush.bf16.msra.mxu0 0
    %972 = vmatpush.bf16.msra.mxu0 0
    %973 = vmatpush.bf16.msra.mxu0 %v964
    %974 = vmatmul.bf16.gmra.mxu0 %v961
    %v975 = vpop.f32.mrf.mxu0
    %v976 = vadd.f32 %v956, %v975
    %v977 = vpop.f32.mrf.mxu0
    %v978 = vadd.f32 %v958, %v977
    %979 = vdwg.mxu0
    %v980 = vpack.c.bf16 %v929, %v927
    %v981 = vpack.c.bf16 %v668, %v668
    %v983 = vsel %vm189, %v980, 0
    %v986 = vsel %vm388, %v981, 0
    %988 = vmatpush.bf16.msra.mxu0 0
    %989 = vmatpush.bf16.msra.mxu0 0
    %990 = vmatpush.bf16.msra.mxu0 0
    %991 = vmatpush.bf16.msra.mxu0 0
    %992 = vmatpush.bf16.msra.mxu0 0
    %993 = vmatpush.bf16.msra.mxu0 0
    %994 = vmatpush.bf16.msra.mxu0 0
    %995 = vmatpush.bf16.msra.mxu0 %v986
    %996 = vmatmul.bf16.gmra.mxu0 %v983
    %v997 = vpop.f32.mrf.mxu0
    %v998 = vadd.f32 0.0, %v997
    %v999 = vpop.f32.mrf.mxu0
    %v1000 = vadd.f32 0.0, %v999
    %1001 = vdwg.mxu0
    %v1002 = vadd.f32 %v976, %v998
    %v1003 = vadd.f32 %v978, %v1000
    %v1004 = vpack.c.bf16 %v934, %v932
    %v1005 = vpack.c.bf16 %v669, %v669
    %v1007 = vsel %vm189, %v1004, 0
    %v1010 = vsel %vm388, %v1005, 0
    %1012 = vmatpush.bf16.msra.mxu0 0
    %1013 = vmatpush.bf16.msra.mxu0 0
    %1014 = vmatpush.bf16.msra.mxu0 0
    %1015 = vmatpush.bf16.msra.mxu0 0
    %1016 = vmatpush.bf16.msra.mxu0 0
    %1017 = vmatpush.bf16.msra.mxu0 0
    %1018 = vmatpush.bf16.msra.mxu0 0
    %1019 = vmatpush.bf16.msra.mxu0 %v1010
    %1020 = vmatmul.bf16.gmra.mxu0 %v1007
    %v1021 = vpop.f32.mrf.mxu0
    %v1022 = vadd.f32 0.0, %v1021
    %v1023 = vpop.f32.mrf.mxu0
    %v1024 = vadd.f32 0.0, %v1023
    %1025 = vdwg.mxu0
    %v1026 = vadd.f32 %v1002, %v1022
    %v1027 = vadd.f32 %v1003, %v1024
    %v1028 = vperm.slane %v671, 0
    %v1029 = vadd.f32 %v1026, %v1028
    %v1030 = vadd.f32 %v1027, %v1028
    %v1031 = vadd.f32 %v1029, %v646
    %v1032 = vadd.f32 %v1030, %v647
    %v1033 = vsel %vm119, %v1031, 0.0
    %1034 = vadd.xlane.f32.xlu0 %v1033
    %v1035 = vpop.xlane.xlu0 %1034
    %v1036 = vsel %vm119, %v1032, 0.0
    %1037 = vadd.xlane.f32.xlu0 %v1036
    %v1038 = vpop.xlane.xlu0 %1037
    %v1039 = vmul.f32 %v1035, %v491
    %v1040 = vmul.f32 %v1038, %v491
    %v1041 = vsub.f32 %v1031, %v1039
    %v1042 = vsub.f32 %v1032, %v1040
    %v1043 = vmul.f32 %v1041, %v1041
    %v1044 = vmul.f32 %v1042, %v1042
    %v1045 = vsel %vm119, %v1043, 0.0
    %1046 = vadd.xlane.f32.xlu0 %v1045
    %v1047 = vpop.xlane.xlu0 %1046
    %v1048 = vsel %vm119, %v1044, 0.0
    %1049 = vadd.xlane.f32.xlu0 %v1048
    %v1050 = vpop.xlane.xlu0 %1049
    %v1051 = vmul.f32 %v1047, %v491
    %v1052 = vmul.f32 %v1050, %v491
    %v1053 = vadd.f32 %v1051, 1e-05
    %v1054 = vadd.f32 %v1052, 1e-05
    %v1055 = vrsqrt.pop %v1053
    %v1056 = vmul.f32 %v1055, %v1053
    %v1057 = vmul.f32 %v1056, %v1055
    %v1058 = vmul.f32 0.5, %v1057
    %v1059 = vsub.f32 1.5, %v1058
    %v1060 = vmul.f32 %v1055, %v1059
    %vm1061 = vweird.f32 %v1053
    %vm1062 = vweird.f32 %v1055
    %vm1063 = vmor %vm1061, %vm1062
    %v1064 = vsel %vm1063, %v1055, %v1060
    %v1065 = vrsqrt.pop %v1054
    %v1066 = vmul.f32 %v1065, %v1054
    %v1067 = vmul.f32 %v1066, %v1065
    %v1068 = vmul.f32 0.5, %v1067
    %v1069 = vsub.f32 1.5, %v1068
    %v1070 = vmul.f32 %v1065, %v1069
    %vm1071 = vweird.f32 %v1054
    %vm1072 = vweird.f32 %v1065
    %vm1073 = vmor %vm1071, %vm1072
    %v1074 = vsel %vm1073, %v1065, %v1070
    %v1075 = vmul.f32 %v1041, %v1064
    %v1076 = vmul.f32 %v1042, %v1074
    %v1077 = vperm.slane %v671, 1
    %v1078 = vmul.f32 %v1075, %v1077
    %v1079 = vmul.f32 %v1076, %v1077
    %v1080 = vperm.slane %v671, 2
    %v1081 = vadd.f32 %v1078, %v1080
    %v1082 = vadd.f32 %v1079, %v1080
    %s1083 = scalar_lea.vmem %s6, 32
    %v1084 = vld [vmem:[%s1083] sm:$0xff]
    %v1085 = vld [vmem:[%s1083 + $0x8] sm:$0xff]
    %v1086 = vld [vmem:[%s1083 + $0x10] sm:$0xff]
    %v1087 = vld [vmem:[%s1083 + $0x18] sm:$0xff]
    %s1088 = scalar_lea.vmem %s7, 64
    %v1089 = vld [vmem:[%s1088] sm:$0xff]
    %v1090 = vld [vmem:[%s1088 + $0x8] sm:$0xff]
    %v1091 = vld [vmem:[%s1088 + $0x10] sm:$0xff]
    %v1092 = vld [vmem:[%s1088 + $0x18] sm:$0xff]
    %v1093 = vld [vmem:[%s1088 + $0x20] sm:$0xff]
    %v1094 = vld [vmem:[%s1088 + $0x28] sm:$0xff]
    %v1095 = vld [vmem:[%s1088 + $0x30] sm:$0xff]
    %v1096 = vld [vmem:[%s1088 + $0x38] sm:$0xff]
    %v1097 = vpack.c.bf16 %v1082, %v1081
    %v1098 = vpack.c.bf16 %v1085, %v1084
    %v1099 = vpack.c.bf16 %v1087, %v1086
    %v1101 = vperm.slane %v673, 0
    %v1104 = vsel %vm119, %v1097, 0
    %1106 = vmatpush.bf16.msra.mxu0 0
    %1107 = vmatpush.bf16.msra.mxu0 0
    %1108 = vmatpush.bf16.msra.mxu0 0
    %1109 = vmatpush.bf16.msra.mxu0 0
    %1110 = vmatpush.bf16.msra.mxu0 0
    %1111 = vmatpush.bf16.msra.mxu0 0
    %1112 = vmatpush.bf16.msra.mxu0 %v1099
    %1113 = vmatpush.bf16.msra.mxu0 %v1098
    %1114 = vmatmul.bf16.gmra.mxu0 %v1104
    %v1115 = vpop.f32.mrf.mxu0
    %v1116 = vadd.f32 %v1101, %v1115
    %v1117 = vpop.f32.mrf.mxu0
    %v1118 = vadd.f32 %v1101, %v1117
    %1119 = vdwg.mxu0
    %v1120 = vmax.f32 %v1116, 0.0
    %v1121 = vmax.f32 %v1118, 0.0
    %v1122 = vpack.c.bf16 %v1121, %v1120
    %v1123 = vpack.c.bf16 %v1090, %v1089
    %v1124 = vpack.c.bf16 %v1092, %v1091
    %v1125 = vpack.c.bf16 %v1094, %v1093
    %v1126 = vpack.c.bf16 %v1096, %v1095
    %v1127 = vperm.slane %v671, 3
    %v1129 = vsel %vm247, %v1122, 0
    %1131 = vmatpush.bf16.msra.mxu0 0
    %1132 = vmatpush.bf16.msra.mxu0 0
    %1133 = vmatpush.bf16.msra.mxu0 0
    %1134 = vmatpush.bf16.msra.mxu0 0
    %1135 = vmatpush.bf16.msra.mxu0 %v1126
    %1136 = vmatpush.bf16.msra.mxu0 %v1125
    %1137 = vmatpush.bf16.msra.mxu0 %v1124
    %1138 = vmatpush.bf16.msra.mxu0 %v1123
    %1139 = vmatmul.bf16.gmra.mxu0 %v1129
    %v1140 = vpop.f32.mrf.mxu0
    %v1141 = vadd.f32 %v1127, %v1140
    %v1142 = vpop.f32.mrf.mxu0
    %v1143 = vadd.f32 %v1127, %v1142
    %1144 = vdwg.mxu0
    %v1145 = vadd.f32 %v1141, %v1081
    %v1146 = vadd.f32 %v1143, %v1082
    %v1147 = vsel %vm119, %v1145, 0.0
    %1148 = vadd.xlane.f32.xlu0 %v1147
    %v1149 = vpop.xlane.xlu0 %1148
    %v1150 = vsel %vm119, %v1146, 0.0
    %1151 = vadd.xlane.f32.xlu0 %v1150
    %v1152 = vpop.xlane.xlu0 %1151
    %v1153 = vmul.f32 %v1149, %v491
    %v1154 = vmul.f32 %v1152, %v491
    %v1155 = vsub.f32 %v1145, %v1153
    %v1156 = vsub.f32 %v1146, %v1154
    %v1157 = vmul.f32 %v1155, %v1155
    %v1158 = vmul.f32 %v1156, %v1156
    %v1159 = vsel %vm119, %v1157, 0.0
    %1160 = vadd.xlane.f32.xlu0 %v1159
    %v1161 = vpop.xlane.xlu0 %1160
    %v1162 = vsel %vm119, %v1158, 0.0
    %1163 = vadd.xlane.f32.xlu0 %v1162
    %v1164 = vpop.xlane.xlu0 %1163
    %v1165 = vmul.f32 %v1161, %v491
    %v1166 = vmul.f32 %v1164, %v491
    %v1167 = vadd.f32 %v1165, 1e-05
    %v1168 = vadd.f32 %v1166, 1e-05
    %v1169 = vrsqrt.pop %v1167
    %v1170 = vmul.f32 %v1169, %v1167
    %v1171 = vmul.f32 %v1170, %v1169
    %v1172 = vmul.f32 0.5, %v1171
    %v1173 = vsub.f32 1.5, %v1172
    %v1174 = vmul.f32 %v1169, %v1173
    %vm1175 = vweird.f32 %v1167
    %vm1176 = vweird.f32 %v1169
    %vm1177 = vmor %vm1175, %vm1176
    %v1178 = vsel %vm1177, %v1169, %v1174
    %v1179 = vrsqrt.pop %v1168
    %v1180 = vmul.f32 %v1179, %v1168
    %v1181 = vmul.f32 %v1180, %v1179
    %v1182 = vmul.f32 0.5, %v1181
    %v1183 = vsub.f32 1.5, %v1182
    %v1184 = vmul.f32 %v1179, %v1183
    %vm1185 = vweird.f32 %v1168
    %vm1186 = vweird.f32 %v1179
    %vm1187 = vmor %vm1185, %vm1186
    %v1188 = vsel %vm1187, %v1179, %v1184
    %v1189 = vmul.f32 %v1155, %v1178
    %v1190 = vmul.f32 %v1156, %v1188
    %v1191 = vperm.slane %v671, 4
    %v1192 = vmul.f32 %v1189, %v1191
    %v1193 = vmul.f32 %v1190, %v1191
    %v1194 = vperm.slane %v671, 5
    %v1195 = vadd.f32 %v1192, %v1194
    %v1196 = vadd.f32 %v1193, %v1194
    %v1197 = vld [vmem:[%s1] sm:$0xff]
    %v1198 = vld [vmem:[%s1 + $0x8] sm:$0xff]
    %v1199 = vld [vmem:[%s16] sm:$0xff]
    %v1200 = vld [vmem:[%s16 + $0x8] sm:$0x1]
    %v1201 = vld [vmem:[%s17] sm:$0x1]
    %v1202 = vld [vmem:[%s10] sm:$0xff]
    %v1203 = vld [vmem:[%s10 + $0x8] sm:$0xff]
    %v1204 = vld [vmem:[%s10 + $0x10] sm:$0xff]
    %v1205 = vld [vmem:[%s10 + $0x18] sm:$0xff]
    %v1206 = vld [vmem:[%s10 + $0x20] sm:$0xff]
    %v1207 = vld [vmem:[%s10 + $0x28] sm:$0xff]
    %v1208 = vld [vmem:[%s10 + $0x30] sm:$0xff]
    %v1209 = vld [vmem:[%s10 + $0x38] sm:$0xff]
    %v1210 = vld [vmem:[%s10 + $0x40] sm:$0xff]
    %v1211 = vld [vmem:[%s10 + $0x48] sm:$0xff]
    %v1212 = vld [vmem:[%s10 + $0x50] sm:$0xff]
    %v1213 = vld [vmem:[%s10 + $0x58] sm:$0xff]
    %v1214 = vld [vmem:[%s10 + $0x60] sm:$0xff]
    %v1215 = vld [vmem:[%s10 + $0x68] sm:$0xff]
    %v1216 = vld [vmem:[%s10 + $0x70] sm:$0xff]
    %v1217 = vld [vmem:[%s10 + $0x78] sm:$0xff]
    %v1218 = vpack.c.bf16 %v1198, %v1197
    %v1219 = vpack.c.bf16 %v1203, %v1202
    %v1220 = vpack.c.bf16 %v1205, %v1204
    %v1222 = vsel %vm119, %v1218, 0
    %1224 = vmatpush.bf16.msra.mxu0 0
    %1225 = vmatpush.bf16.msra.mxu0 0
    %1226 = vmatpush.bf16.msra.mxu0 0
    %1227 = vmatpush.bf16.msra.mxu0 0
    %1228 = vmatpush.bf16.msra.mxu0 0
    %1229 = vmatpush.bf16.msra.mxu0 0
    %1230 = vmatpush.bf16.msra.mxu0 %v1220
    %1231 = vmatpush.bf16.msra.mxu0 %v1219
    %1232 = vmatmul.bf16.gmra.mxu0 %v1222
    %v1233 = vpop.f32.mrf.mxu0
    %v1234 = vadd.f32 0.0, %v1233
    %v1235 = vpop.f32.mrf.mxu0
    %v1236 = vadd.f32 0.0, %v1235
    %1237 = vdwg.mxu0
    %v1238 = vpack.c.bf16 %v1207, %v1206
    %v1239 = vpack.c.bf16 %v1209, %v1208
    %1240 = vmatpush.bf16.msra.mxu0 0
    %1241 = vmatpush.bf16.msra.mxu0 0
    %1242 = vmatpush.bf16.msra.mxu0 0
    %1243 = vmatpush.bf16.msra.mxu0 0
    %1244 = vmatpush.bf16.msra.mxu0 0
    %1245 = vmatpush.bf16.msra.mxu0 0
    %1246 = vmatpush.bf16.msra.mxu0 %v1239
    %1247 = vmatpush.bf16.msra.mxu0 %v1238
    %1248 = vmatmul.bf16.gmra.mxu0 %v1222
    %v1249 = vpop.f32.mrf.mxu0
    %v1250 = vadd.f32 0.0, %v1249
    %v1251 = vpop.f32.mrf.mxu0
    %v1252 = vadd.f32 0.0, %v1251
    %1253 = vdwg.mxu0
    %v1254 = vpack.c.bf16 %v1211, %v1210
    %v1255 = vpack.c.bf16 %v1213, %v1212
    %1256 = vmatpush.bf16.msra.mxu0 0
    %1257 = vmatpush.bf16.msra.mxu0 0
    %1258 = vmatpush.bf16.msra.mxu0 0
    %1259 = vmatpush.bf16.msra.mxu0 0
    %1260 = vmatpush.bf16.msra.mxu0 0
    %1261 = vmatpush.bf16.msra.mxu0 0
    %1262 = vmatpush.bf16.msra.mxu0 %v1255
    %1263 = vmatpush.bf16.msra.mxu0 %v1254
    %1264 = vmatmul.bf16.gmra.mxu0 %v1222
    %v1265 = vpop.f32.mrf.mxu0
    %v1266 = vadd.f32 0.0, %v1265
    %v1267 = vpop.f32.mrf.mxu0
    %v1268 = vadd.f32 0.0, %v1267
    %1269 = vdwg.mxu0
    %v1270 = vpack.c.bf16 %v1215, %v1214
    %v1271 = vpack.c.bf16 %v1217, %v1216
    %1272 = vmatpush.bf16.msra.mxu0 0
    %1273 = vmatpush.bf16.msra.mxu0 0
    %1274 = vmatpush.bf16.msra.mxu0 0
    %1275 = vmatpush.bf16.msra.mxu0 0
    %1276 = vmatpush.bf16.msra.mxu0 0
    %1277 = vmatpush.bf16.msra.mxu0 0
    %1278 = vmatpush.bf16.msra.mxu0 %v1271
    %1279 = vmatpush.bf16.msra.mxu0 %v1270
    %1280 = vmatmul.bf16.gmra.mxu0 %v1222
    %v1281 = vpop.f32.mrf.mxu0
    %v1282 = vadd.f32 0.0, %v1281
    %v1283 = vpop.f32.mrf.mxu0
    %v1284 = vadd.f32 0.0, %v1283
    %1285 = vdwg.mxu0
    %v1286 = vpack.c.bf16 %v1236, %v1234
    %v1287 = vpack.c.bf16 %v1252, %v1250
    %v1288 = vpack.c.bf16 %v1268, %v1266
    %v1289 = vpack.c.bf16 %v1284, %v1282
    %v1291 = vsel %vm189, %v1286, 0
    %v1294 = vsel %vm189, %v1287, 0
    %v1297 = vsel %vm189, %v1288, 0
    %v1300 = vsel %vm189, %v1289, 0
    %1302 = vmatpush.bf16.xpose.msra.mxu0 0
    %1303 = vmatpush.bf16.xpose.msra.mxu0 0
    %1304 = vmatpush.bf16.xpose.msra.mxu0 0
    %1305 = vmatpush.bf16.xpose.msra.mxu0 0
    %1306 = vmatpush.bf16.xpose.msra.mxu0 %v1300
    %1307 = vmatpush.bf16.xpose.msra.mxu0 %v1297
    %1308 = vmatpush.bf16.xpose.msra.mxu0 %v1294
    %1309 = vmatpush.bf16.xpose.msra.mxu0 %v1291
    %1310 = vmatmul.bf16.gmra.mxu0 %v1291
    %v1311 = vpop.f32.mrf.mxu0
    %v1312 = vadd.f32 0.0, %v1311
    %v1313 = vpop.f32.mrf.mxu0
    %v1314 = vadd.f32 0.0, %v1313
    %1315 = vmatmul.bf16.gmra.mxu0 %v1294
    %v1316 = vpop.f32.mrf.mxu0
    %v1317 = vadd.f32 0.0, %v1316
    %v1318 = vpop.f32.mrf.mxu0
    %v1319 = vadd.f32 0.0, %v1318
    %1320 = vmatmul.bf16.gmra.mxu0 %v1297
    %v1321 = vpop.f32.mrf.mxu0
    %v1322 = vadd.f32 0.0, %v1321
    %v1323 = vpop.f32.mrf.mxu0
    %v1324 = vadd.f32 0.0, %v1323
    %1325 = vmatmul.bf16.gmra.mxu0 %v1300
    %v1326 = vpop.f32.mrf.mxu0
    %v1327 = vadd.f32 0.0, %v1326
    %v1328 = vpop.f32.mrf.mxu0
    %v1329 = vadd.f32 0.0, %v1328
    %1330 = vdwg.mxu0
    %v1331 = vmul.f32 %v1312, 0.35355338
    %v1332 = vmul.f32 %v1314, 0.35355338
    %v1333 = vmul.f32 %v1317, 0.35355338
    %v1334 = vmul.f32 %v1319, 0.35355338
    %v1335 = vmul.f32 %v1322, 0.35355338
    %v1336 = vmul.f32 %v1324, 0.35355338
    %v1337 = vmul.f32 %v1327, 0.35355338
    %v1338 = vmul.f32 %v1329, 0.35355338
    %v1339 = vadd.f32 %v1331, %v84
    %v1340 = vadd.f32 %v1332, %v85
    %v1341 = vadd.f32 %v1333, %v86
    %v1342 = vadd.f32 %v1334, %v87
    %v1343 = vadd.f32 %v1335, %v88
    %v1344 = vadd.f32 %v1336, %v89
    %v1345 = vadd.f32 %v1337, %v90
    %v1346 = vadd.f32 %v1338, %v91
    %v1347 = vsel %vm247, %v1339, -inf
    %1348 = vmax.xlane.f32.xlu0 %v1347
    %v1349 = vpop.xlane.xlu0 %1348
    %v1350 = vsel %vm247, %v1340, -inf
    %1351 = vmax.xlane.f32.xlu0 %v1350
    %v1352 = vpop.xlane.xlu0 %1351
    %v1353 = vsel %vm247, %v1341, -inf
    %1354 = vmax.xlane.f32.xlu0 %v1353
    %v1355 = vpop.xlane.xlu0 %1354
    %v1356 = vsel %vm247, %v1342, -inf
    %1357 = vmax.xlane.f32.xlu0 %v1356
    %v1358 = vpop.xlane.xlu0 %1357
    %v1359 = vsel %vm247, %v1343, -inf
    %1360 = vmax.xlane.f32.xlu0 %v1359
    %v1361 = vpop.xlane.xlu0 %1360
    %v1362 = vsel %vm247, %v1344, -inf
    %1363 = vmax.xlane.f32.xlu0 %v1362
    %v1364 = vpop.xlane.xlu0 %1363
    %v1365 = vsel %vm247, %v1345, -inf
    %1366 = vmax.xlane.f32.xlu0 %v1365
    %v1367 = vpop.xlane.xlu0 %1366
    %v1368 = vsel %vm247, %v1346, -inf
    %1369 = vmax.xlane.f32.xlu0 %v1368
    %v1370 = vpop.xlane.xlu0 %1369
    %v1371 = vsub.f32 %v1339, %v1349
    %v1372 = vsub.f32 %v1340, %v1352
    %v1373 = vsub.f32 %v1341, %v1355
    %v1374 = vsub.f32 %v1342, %v1358
    %v1375 = vsub.f32 %v1343, %v1361
    %v1376 = vsub.f32 %v1344, %v1364
    %v1377 = vsub.f32 %v1345, %v1367
    %v1378 = vsub.f32 %v1346, %v1370
    %v1379 = vmul.f32 %v1371, 1.442695
    %v1380 = vpow.pop %v1379
    %v1381 = vmul.f32 %v1372, 1.442695
    %v1382 = vpow.pop %v1381
    %v1383 = vmul.f32 %v1373, 1.442695
    %v1384 = vpow.pop %v1383
    %v1385 = vmul.f32 %v1374, 1.442695
    %v1386 = vpow.pop %v1385
    %v1387 = vmul.f32 %v1375, 1.442695
    %v1388 = vpow.pop %v1387
    %v1389 = vmul.f32 %v1376, 1.442695
    %v1390 = vpow.pop %v1389
    %v1391 = vmul.f32 %v1377, 1.442695
    %v1392 = vpow.pop %v1391
    %v1393 = vmul.f32 %v1378, 1.442695
    %v1394 = vpow.pop %v1393
    %v1395 = vsel %vm247, %v1380, 0.0
    %1396 = vadd.xlane.f32.xlu0 %v1395
    %v1397 = vpop.xlane.xlu0 %1396
    %v1398 = vsel %vm247, %v1382, 0.0
    %1399 = vadd.xlane.f32.xlu0 %v1398
    %v1400 = vpop.xlane.xlu0 %1399
    %v1401 = vsel %vm247, %v1384, 0.0
    %1402 = vadd.xlane.f32.xlu0 %v1401
    %v1403 = vpop.xlane.xlu0 %1402
    %v1404 = vsel %vm247, %v1386, 0.0
    %1405 = vadd.xlane.f32.xlu0 %v1404
    %v1406 = vpop.xlane.xlu0 %1405
    %v1407 = vsel %vm247, %v1388, 0.0
    %1408 = vadd.xlane.f32.xlu0 %v1407
    %v1409 = vpop.xlane.xlu0 %1408
    %v1410 = vsel %vm247, %v1390, 0.0
    %1411 = vadd.xlane.f32.xlu0 %v1410
    %v1412 = vpop.xlane.xlu0 %1411
    %v1413 = vsel %vm247, %v1392, 0.0
    %1414 = vadd.xlane.f32.xlu0 %v1413
    %v1415 = vpop.xlane.xlu0 %1414
    %v1416 = vsel %vm247, %v1394, 0.0
    %1417 = vadd.xlane.f32.xlu0 %v1416
    %v1418 = vpop.xlane.xlu0 %1417
    %v1419 = vrcp.pop %v1397
    %v1420 = vrcp.pop %v1400
    %v1421 = vrcp.pop %v1403
    %v1422 = vrcp.pop %v1406
    %v1423 = vrcp.pop %v1409
    %v1424 = vrcp.pop %v1412
    %v1425 = vrcp.pop %v1415
    %v1426 = vrcp.pop %v1418
    %v1427 = vmul.f32 %v1380, %v1419
    %v1428 = vmul.f32 %v1382, %v1420
    %v1429 = vmul.f32 %v1384, %v1421
    %v1430 = vmul.f32 %v1386, %v1422
    %v1431 = vmul.f32 %v1388, %v1423
    %v1432 = vmul.f32 %v1390, %v1424
    %v1433 = vmul.f32 %v1392, %v1425
    %v1434 = vmul.f32 %v1394, %v1426
    %v1435 = vpack.c.bf16 %v1428, %v1427
    %v1436 = vpack.c.bf16 %v1430, %v1429
    %v1437 = vpack.c.bf16 %v1432, %v1431
    %v1438 = vpack.c.bf16 %v1434, %v1433
    %v1440 = vsel %vm247, %v1435, 0
    %v1443 = vsel %vm247, %v1436, 0
    %v1446 = vsel %vm247, %v1437, 0
    %v1449 = vsel %vm247, %v1438, 0
    %1451 = vmatpush.bf16.msra.mxu0 0
    %1452 = vmatpush.bf16.msra.mxu0 0
    %1453 = vmatpush.bf16.msra.mxu0 0
    %1454 = vmatpush.bf16.msra.mxu0 0
    %1455 = vmatpush.bf16.msra.mxu0 %v1289
    %1456 = vmatpush.bf16.msra.mxu0 %v1288
    %1457 = vmatpush.bf16.msra.mxu0 %v1287
    %1458 = vmatpush.bf16.msra.mxu0 %v1286
    %1459 = vmatmul.bf16.gmra.mxu0 %v1440
    %v1460 = vpop.f32.mrf.mxu0
    %v1461 = vadd.f32 0.0, %v1460
    %v1462 = vpop.f32.mrf.mxu0
    %v1463 = vadd.f32 0.0, %v1462
    %1464 = vmatmul.bf16.gmra.mxu0 %v1443
    %v1465 = vpop.f32.mrf.mxu0
    %v1466 = vadd.f32 0.0, %v1465
    %v1467 = vpop.f32.mrf.mxu0
    %v1468 = vadd.f32 0.0, %v1467
    %1469 = vmatmul.bf16.gmra.mxu0 %v1446
    %v1470 = vpop.f32.mrf.mxu0
    %v1471 = vadd.f32 0.0, %v1470
    %v1472 = vpop.f32.mrf.mxu0
    %v1473 = vadd.f32 0.0, %v1472
    %1474 = vmatmul.bf16.gmra.mxu0 %v1449
    %v1475 = vpop.f32.mrf.mxu0
    %v1476 = vadd.f32 0.0, %v1475
    %v1477 = vpop.f32.mrf.mxu0
    %v1478 = vadd.f32 0.0, %v1477
    %1479 = vdwg.mxu0
    %v1480 = vld [vmem:[%s11] sm:$0xff]
    %v1481 = vld [vmem:[%s11 + $0x8] sm:$0xff]
    %v1482 = vld [vmem:[%s11 + $0x10] sm:$0xff]
    %v1483 = vld [vmem:[%s11 + $0x18] sm:$0xff]
    %v1484 = vpack.c.bf16 %v1463, %v1461
    %v1485 = vpack.c.bf16 %v1480, %v1480
    %v1486 = vpack.c.bf16 %v1468, %v1466
    %v1487 = vpack.c.bf16 %v1481, %v1481
    %v1489 = vsel %vm189, %v1486, 0
    %v1492 = vsel %vm388, %v1487, 0
    %1494 = vmatpush.bf16.msra.mxu0 0
    %1495 = vmatpush.bf16.msra.mxu0 0
    %1496 = vmatpush.bf16.msra.mxu0 0
    %1497 = vmatpush.bf16.msra.mxu0 0
    %1498 = vmatpush.bf16.msra.mxu0 0
    %1499 = vmatpush.bf16.msra.mxu0 0
    %1500 = vmatpush.bf16.msra.mxu0 0
    %1501 = vmatpush.bf16.msra.mxu0 %v1492
    %1502 = vmatmul.bf16.gmra.mxu0 %v1489
    %v1503 = vpop.f32.mrf.mxu0
    %v1504 = vadd.f32 0.0, %v1503
    %v1505 = vpop.f32.mrf.mxu0
    %v1506 = vadd.f32 0.0, %v1505
    %1507 = vdwg.mxu0
    %v1509 = vsel %vm189, %v1484, 0
    %v1512 = vsel %vm388, %v1485, 0
    %1514 = vmatpush.bf16.msra.mxu0 0
    %1515 = vmatpush.bf16.msra.mxu0 0
    %1516 = vmatpush.bf16.msra.mxu0 0
    %1517 = vmatpush.bf16.msra.mxu0 0
    %1518 = vmatpush.bf16.msra.mxu0 0
    %1519 = vmatpush.bf16.msra.mxu0 0
    %1520 = vmatpush.bf16.msra.mxu0 0
    %1521 = vmatpush.bf16.msra.mxu0 %v1512
    %1522 = vmatmul.bf16.gmra.mxu0 %v1509
    %v1523 = vpop.f32.mrf.mxu0
    %v1524 = vadd.f32 %v1504, %v1523
    %v1525 = vpop.f32.mrf.mxu0
    %v1526 = vadd.f32 %v1506, %v1525
    %1527 = vdwg.mxu0
    %v1528 = vpack.c.bf16 %v1473, %v1471
    %v1529 = vpack.c.bf16 %v1482, %v1482
    %v1531 = vsel %vm189, %v1528, 0
    %v1534 = vsel %vm388, %v1529, 0
    %1536 = vmatpush.bf16.msra.mxu0 0
    %1537 = vmatpush.bf16.msra.mxu0 0
    %1538 = vmatpush.bf16.msra.mxu0 0
    %1539 = vmatpush.bf16.msra.mxu0 0
    %1540 = vmatpush.bf16.msra.mxu0 0
    %1541 = vmatpush.bf16.msra.mxu0 0
    %1542 = vmatpush.bf16.msra.mxu0 0
    %1543 = vmatpush.bf16.msra.mxu0 %v1534
    %1544 = vmatmul.bf16.gmra.mxu0 %v1531
    %v1545 = vpop.f32.mrf.mxu0
    %v1546 = vadd.f32 0.0, %v1545
    %v1547 = vpop.f32.mrf.mxu0
    %v1548 = vadd.f32 0.0, %v1547
    %1549 = vdwg.mxu0
    %v1550 = vadd.f32 %v1524, %v1546
    %v1551 = vadd.f32 %v1526, %v1548
    %v1552 = vpack.c.bf16 %v1478, %v1476
    %v1553 = vpack.c.bf16 %v1483, %v1483
    %v1555 = vsel %vm189, %v1552, 0
    %v1558 = vsel %vm388, %v1553, 0
    %1560 = vmatpush.bf16.msra.mxu0 0
    %1561 = vmatpush.bf16.msra.mxu0 0
    %1562 = vmatpush.bf16.msra.mxu0 0
    %1563 = vmatpush.bf16.msra.mxu0 0
    %1564 = vmatpush.bf16.msra.mxu0 0
    %1565 = vmatpush.bf16.msra.mxu0 0
    %1566 = vmatpush.bf16.msra.mxu0 0
    %1567 = vmatpush.bf16.msra.mxu0 %v1558
    %1568 = vmatmul.bf16.gmra.mxu0 %v1555
    %v1569 = vpop.f32.mrf.mxu0
    %v1570 = vadd.f32 0.0, %v1569
    %v1571 = vpop.f32.mrf.mxu0
    %v1572 = vadd.f32 0.0, %v1571
    %1573 = vdwg.mxu0
    %v1574 = vadd.f32 %v1550, %v1570
    %v1575 = vadd.f32 %v1551, %v1572
    %v1576 = vperm.slane %v1199, 0
    %v1577 = vadd.f32 %v1574, %v1576
    %v1578 = vadd.f32 %v1575, %v1576
    %v1579 = vadd.f32 %v1577, %v1197
    %v1580 = vadd.f32 %v1578, %v1198
    %v1581 = vsel %vm119, %v1579, 0.0
    %1582 = vadd.xlane.f32.xlu0 %v1581
    %v1583 = vpop.xlane.xlu0 %1582
    %v1584 = vsel %vm119, %v1580, 0.0
    %1585 = vadd.xlane.f32.xlu0 %v1584
    %v1586 = vpop.xlane.xlu0 %1585
    %v1587 = vmul.f32 %v1583, %v491
    %v1588 = vmul.f32 %v1586, %v491
    %v1589 = vsub.f32 %v1579, %v1587
    %v1590 = vsub.f32 %v1580, %v1588
    %v1591 = vmul.f32 %v1589, %v1589
    %v1592 = vmul.f32 %v1590, %v1590
    %v1593 = vsel %vm119, %v1591, 0.0
    %1594 = vadd.xlane.f32.xlu0 %v1593
    %v1595 = vpop.xlane.xlu0 %1594
    %v1596 = vsel %vm119, %v1592, 0.0
    %1597 = vadd.xlane.f32.xlu0 %v1596
    %v1598 = vpop.xlane.xlu0 %1597
    %v1599 = vmul.f32 %v1595, %v491
    %v1600 = vmul.f32 %v1598, %v491
    %v1601 = vadd.f32 %v1599, 1e-05
    %v1602 = vadd.f32 %v1600, 1e-05
    %v1603 = vrsqrt.pop %v1601
    %v1604 = vmul.f32 %v1603, %v1601
    %v1605 = vmul.f32 %v1604, %v1603
    %v1606 = vmul.f32 0.5, %v1605
    %v1607 = vsub.f32 1.5, %v1606
    %v1608 = vmul.f32 %v1603, %v1607
    %vm1609 = vweird.f32 %v1601
    %vm1610 = vweird.f32 %v1603
    %vm1611 = vmor %vm1609, %vm1610
    %v1612 = vsel %vm1611, %v1603, %v1608
    %v1613 = vrsqrt.pop %v1602
    %v1614 = vmul.f32 %v1613, %v1602
    %v1615 = vmul.f32 %v1614, %v1613
    %v1616 = vmul.f32 0.5, %v1615
    %v1617 = vsub.f32 1.5, %v1616
    %v1618 = vmul.f32 %v1613, %v1617
    %vm1619 = vweird.f32 %v1602
    %vm1620 = vweird.f32 %v1613
    %vm1621 = vmor %vm1619, %vm1620
    %v1622 = vsel %vm1621, %v1613, %v1618
    %v1623 = vmul.f32 %v1589, %v1612
    %v1624 = vmul.f32 %v1590, %v1622
    %v1625 = vperm.slane %v1199, 1
    %v1626 = vmul.f32 %v1623, %v1625
    %v1627 = vmul.f32 %v1624, %v1625
    %v1628 = vperm.slane %v1199, 2
    %v1629 = vadd.f32 %v1626, %v1628
    %v1630 = vadd.f32 %v1627, %v1628
    %v1631 = vld [vmem:[%s12] sm:$0xff]
    %v1632 = vld [vmem:[%s12 + $0x8] sm:$0xff]
    %v1633 = vld [vmem:[%s12 + $0x10] sm:$0xff]
    %v1634 = vld [vmem:[%s12 + $0x18] sm:$0xff]
    %v1635 = vld [vmem:[%s12 + $0x20] sm:$0xff]
    %v1636 = vld [vmem:[%s12 + $0x28] sm:$0xff]
    %v1637 = vld [vmem:[%s12 + $0x30] sm:$0xff]
    %v1638 = vld [vmem:[%s12 + $0x38] sm:$0xff]
    %v1639 = vld [vmem:[%s12 + $0x40] sm:$0xff]
    %v1640 = vld [vmem:[%s12 + $0x48] sm:$0xff]
    %v1641 = vld [vmem:[%s12 + $0x50] sm:$0xff]
    %v1642 = vld [vmem:[%s12 + $0x58] sm:$0xff]
    %v1643 = vld [vmem:[%s12 + $0x60] sm:$0xff]
    %v1644 = vld [vmem:[%s12 + $0x68] sm:$0xff]
    %v1645 = vld [vmem:[%s12 + $0x70] sm:$0xff]
    %v1646 = vld [vmem:[%s12 + $0x78] sm:$0xff]
    %v1647 = vpack.c.bf16 %v1630, %v1629
    %v1648 = vpack.c.bf16 %v1196, %v1195
    %v1649 = vpack.c.bf16 %v1632, %v1631
    %v1650 = vpack.c.bf16 %v1634, %v1633
    %v1652 = vsel %vm119, %v1647, 0
    %v1655 = vsel %vm119, %v1648, 0
    %1657 = vmatpush.bf16.msra.mxu0 0
    %1658 = vmatpush.bf16.msra.mxu0 0
    %1659 = vmatpush.bf16.msra.mxu0 0
    %1660 = vmatpush.bf16.msra.mxu0 0
    %1661 = vmatpush.bf16.msra.mxu0 0
    %1662 = vmatpush.bf16.msra.mxu0 0
    %1663 = vmatpush.bf16.msra.mxu0 %v1650
    %1664 = vmatpush.bf16.msra.mxu0 %v1649
    %1665 = vmatmul.bf16.gmra.mxu0 %v1652
    %v1666 = vpop.f32.mrf.mxu0
    %v1667 = vadd.f32 0.0, %v1666
    %v1668 = vpop.f32.mrf.mxu0
    %v1669 = vadd.f32 0.0, %v1668
    %1670 = vmatmul.bf16.gmra.mxu0 %v1655
    %v1671 = vpop.f32.mrf.mxu0
    %v1672 = vadd.f32 0.0, %v1671
    %v1673 = vpop.f32.mrf.mxu0
    %v1674 = vadd.f32 0.0, %v1673
    %1675 = vdwg.mxu0
    %v1676 = vpack.c.bf16 %v1636, %v1635
    %v1677 = vpack.c.bf16 %v1638, %v1637
    %1678 = vmatpush.bf16.msra.mxu0 0
    %1679 = vmatpush.bf16.msra.mxu0 0
    %1680 = vmatpush.bf16.msra.mxu0 0
    %1681 = vmatpush.bf16.msra.mxu0 0
    %1682 = vmatpush.bf16.msra.mxu0 0
    %1683 = vmatpush.bf16.msra.mxu0 0
    %1684 = vmatpush.bf16.msra.mxu0 %v1677
    %1685 = vmatpush.bf16.msra.mxu0 %v1676
    %1686 = vmatmul.bf16.gmra.mxu0 %v1652
    %v1687 = vpop.f32.mrf.mxu0
    %v1688 = vadd.f32 0.0, %v1687
    %v1689 = vpop.f32.mrf.mxu0
    %v1690 = vadd.f32 0.0, %v1689
    %1691 = vmatmul.bf16.gmra.mxu0 %v1655
    %v1692 = vpop.f32.mrf.mxu0
    %v1693 = vadd.f32 0.0, %v1692
    %v1694 = vpop.f32.mrf.mxu0
    %v1695 = vadd.f32 0.0, %v1694
    %1696 = vdwg.mxu0
    %v1697 = vpack.c.bf16 %v1640, %v1639
    %v1698 = vpack.c.bf16 %v1642, %v1641
    %1699 = vmatpush.bf16.msra.mxu0 0
    %1700 = vmatpush.bf16.msra.mxu0 0
    %1701 = vmatpush.bf16.msra.mxu0 0
    %1702 = vmatpush.bf16.msra.mxu0 0
    %1703 = vmatpush.bf16.msra.mxu0 0
    %1704 = vmatpush.bf16.msra.mxu0 0
    %1705 = vmatpush.bf16.msra.mxu0 %v1698
    %1706 = vmatpush.bf16.msra.mxu0 %v1697
    %1707 = vmatmul.bf16.gmra.mxu0 %v1652
    %v1708 = vpop.f32.mrf.mxu0
    %v1709 = vadd.f32 0.0, %v1708
    %v1710 = vpop.f32.mrf.mxu0
    %v1711 = vadd.f32 0.0, %v1710
    %1712 = vmatmul.bf16.gmra.mxu0 %v1655
    %v1713 = vpop.f32.mrf.mxu0
    %v1714 = vadd.f32 0.0, %v1713
    %v1715 = vpop.f32.mrf.mxu0
    %v1716 = vadd.f32 0.0, %v1715
    %1717 = vdwg.mxu0
    %v1718 = vpack.c.bf16 %v1644, %v1643
    %v1719 = vpack.c.bf16 %v1646, %v1645
    %1720 = vmatpush.bf16.msra.mxu0 0
    %1721 = vmatpush.bf16.msra.mxu0 0
    %1722 = vmatpush.bf16.msra.mxu0 0
    %1723 = vmatpush.bf16.msra.mxu0 0
    %1724 = vmatpush.bf16.msra.mxu0 0
    %1725 = vmatpush.bf16.msra.mxu0 0
    %1726 = vmatpush.bf16.msra.mxu0 %v1719
    %1727 = vmatpush.bf16.msra.mxu0 %v1718
    %1728 = vmatmul.bf16.gmra.mxu0 %v1652
    %v1729 = vpop.f32.mrf.mxu0
    %v1730 = vadd.f32 0.0, %v1729
    %v1731 = vpop.f32.mrf.mxu0
    %v1732 = vadd.f32 0.0, %v1731
    %1733 = vmatmul.bf16.gmra.mxu0 %v1655
    %v1734 = vpop.f32.mrf.mxu0
    %v1735 = vadd.f32 0.0, %v1734
    %v1736 = vpop.f32.mrf.mxu0
    %v1737 = vadd.f32 0.0, %v1736
    %1738 = vdwg.mxu0
    %v1739 = vpack.c.bf16 %v1669, %v1667
    %v1740 = vpack.c.bf16 %v1690, %v1688
    %v1741 = vpack.c.bf16 %v1711, %v1709
    %v1742 = vpack.c.bf16 %v1732, %v1730
    %v1743 = vpack.c.bf16 %v1674, %v1672
    %v1744 = vpack.c.bf16 %v1695, %v1693
    %v1745 = vpack.c.bf16 %v1716, %v1714
    %v1746 = vpack.c.bf16 %v1737, %v1735
    %v1748 = vsel %vm189, %v1739, 0
    %v1751 = vsel %vm189, %v1740, 0
    %v1754 = vsel %vm189, %v1741, 0
    %v1757 = vsel %vm189, %v1742, 0
    %v1760 = vsel %vm189, %v1743, 0
    %v1763 = vsel %vm189, %v1744, 0
    %v1766 = vsel %vm189, %v1745, 0
    %v1769 = vsel %vm189, %v1746, 0
    %1771 = vmatpush.bf16.xpose.msra.mxu0 0
    %1772 = vmatpush.bf16.xpose.msra.mxu0 0
    %1773 = vmatpush.bf16.xpose.msra.mxu0 0
    %1774 = vmatpush.bf16.xpose.msra.mxu0 0
    %1775 = vmatpush.bf16.xpose.msra.mxu0 %v1769
    %1776 = vmatpush.bf16.xpose.msra.mxu0 %v1766
    %1777 = vmatpush.bf16.xpose.msra.mxu0 %v1763
    %1778 = vmatpush.bf16.xpose.msra.mxu0 %v1760
    %1779 = vmatmul.bf16.gmra.mxu0 %v1748
    %v1780 = vpop.f32.mrf.mxu0
    %v1781 = vadd.f32 0.0, %v1780
    %v1782 = vpop.f32.mrf.mxu0
    %v1783 = vadd.f32 0.0, %v1782
    %1784 = vmatmul.bf16.gmra.mxu0 %v1751
    %v1785 = vpop.f32.mrf.mxu0
    %v1786 = vadd.f32 0.0, %v1785
    %v1787 = vpop.f32.mrf.mxu0
    %v1788 = vadd.f32 0.0, %v1787
    %1789 = vmatmul.bf16.gmra.mxu0 %v1754
    %v1790 = vpop.f32.mrf.mxu0
    %v1791 = vadd.f32 0.0, %v1790
    %v1792 = vpop.f32.mrf.mxu0
    %v1793 = vadd.f32 0.0, %v1792
    %1794 = vmatmul.bf16.gmra.mxu0 %v1757
    %v1795 = vpop.f32.mrf.mxu0
    %v1796 = vadd.f32 0.0, %v1795
    %v1797 = vpop.f32.mrf.mxu0
    %v1798 = vadd.f32 0.0, %v1797
    %1799 = vdwg.mxu0
    %v1800 = vmul.f32 %v1781, 0.35355338
    %v1801 = vmul.f32 %v1783, 0.35355338
    %v1802 = vmul.f32 %v1786, 0.35355338
    %v1803 = vmul.f32 %v1788, 0.35355338
    %v1804 = vmul.f32 %v1791, 0.35355338
    %v1805 = vmul.f32 %v1793, 0.35355338
    %v1806 = vmul.f32 %v1796, 0.35355338
    %v1807 = vmul.f32 %v1798, 0.35355338
    %v1808 = vadd.f32 %v1800, %v76
    %v1809 = vadd.f32 %v1801, %v77
    %v1810 = vadd.f32 %v1802, %v78
    %v1811 = vadd.f32 %v1803, %v79
    %v1812 = vadd.f32 %v1804, %v80
    %v1813 = vadd.f32 %v1805, %v81
    %v1814 = vadd.f32 %v1806, %v82
    %v1815 = vadd.f32 %v1807, %v83
    %v1816 = vsel %vm247, %v1808, -inf
    %1817 = vmax.xlane.f32.xlu0 %v1816
    %v1818 = vpop.xlane.xlu0 %1817
    %v1819 = vsel %vm247, %v1809, -inf
    %1820 = vmax.xlane.f32.xlu0 %v1819
    %v1821 = vpop.xlane.xlu0 %1820
    %v1822 = vsel %vm247, %v1810, -inf
    %1823 = vmax.xlane.f32.xlu0 %v1822
    %v1824 = vpop.xlane.xlu0 %1823
    %v1825 = vsel %vm247, %v1811, -inf
    %1826 = vmax.xlane.f32.xlu0 %v1825
    %v1827 = vpop.xlane.xlu0 %1826
    %v1828 = vsel %vm247, %v1812, -inf
    %1829 = vmax.xlane.f32.xlu0 %v1828
    %v1830 = vpop.xlane.xlu0 %1829
    %v1831 = vsel %vm247, %v1813, -inf
    %1832 = vmax.xlane.f32.xlu0 %v1831
    %v1833 = vpop.xlane.xlu0 %1832
    %v1834 = vsel %vm247, %v1814, -inf
    %1835 = vmax.xlane.f32.xlu0 %v1834
    %v1836 = vpop.xlane.xlu0 %1835
    %v1837 = vsel %vm247, %v1815, -inf
    %1838 = vmax.xlane.f32.xlu0 %v1837
    %v1839 = vpop.xlane.xlu0 %1838
    %v1840 = vsub.f32 %v1808, %v1818
    %v1841 = vsub.f32 %v1809, %v1821
    %v1842 = vsub.f32 %v1810, %v1824
    %v1843 = vsub.f32 %v1811, %v1827
    %v1844 = vsub.f32 %v1812, %v1830
    %v1845 = vsub.f32 %v1813, %v1833
    %v1846 = vsub.f32 %v1814, %v1836
    %v1847 = vsub.f32 %v1815, %v1839
    %v1848 = vmul.f32 %v1840, 1.442695
    %v1849 = vpow.pop %v1848
    %v1850 = vmul.f32 %v1841, 1.442695
    %v1851 = vpow.pop %v1850
    %v1852 = vmul.f32 %v1842, 1.442695
    %v1853 = vpow.pop %v1852
    %v1854 = vmul.f32 %v1843, 1.442695
    %v1855 = vpow.pop %v1854
    %v1856 = vmul.f32 %v1844, 1.442695
    %v1857 = vpow.pop %v1856
    %v1858 = vmul.f32 %v1845, 1.442695
    %v1859 = vpow.pop %v1858
    %v1860 = vmul.f32 %v1846, 1.442695
    %v1861 = vpow.pop %v1860
    %v1862 = vmul.f32 %v1847, 1.442695
    %v1863 = vpow.pop %v1862
    %v1864 = vsel %vm247, %v1849, 0.0
    %1865 = vadd.xlane.f32.xlu0 %v1864
    %v1866 = vpop.xlane.xlu0 %1865
    %v1867 = vsel %vm247, %v1851, 0.0
    %1868 = vadd.xlane.f32.xlu0 %v1867
    %v1869 = vpop.xlane.xlu0 %1868
    %v1870 = vsel %vm247, %v1853, 0.0
    %1871 = vadd.xlane.f32.xlu0 %v1870
    %v1872 = vpop.xlane.xlu0 %1871
    %v1873 = vsel %vm247, %v1855, 0.0
    %1874 = vadd.xlane.f32.xlu0 %v1873
    %v1875 = vpop.xlane.xlu0 %1874
    %v1876 = vsel %vm247, %v1857, 0.0
    %1877 = vadd.xlane.f32.xlu0 %v1876
    %v1878 = vpop.xlane.xlu0 %1877
    %v1879 = vsel %vm247, %v1859, 0.0
    %1880 = vadd.xlane.f32.xlu0 %v1879
    %v1881 = vpop.xlane.xlu0 %1880
    %v1882 = vsel %vm247, %v1861, 0.0
    %1883 = vadd.xlane.f32.xlu0 %v1882
    %v1884 = vpop.xlane.xlu0 %1883
    %v1885 = vsel %vm247, %v1863, 0.0
    %1886 = vadd.xlane.f32.xlu0 %v1885
    %v1887 = vpop.xlane.xlu0 %1886
    %v1888 = vrcp.pop %v1866
    %v1889 = vrcp.pop %v1869
    %v1890 = vrcp.pop %v1872
    %v1891 = vrcp.pop %v1875
    %v1892 = vrcp.pop %v1878
    %v1893 = vrcp.pop %v1881
    %v1894 = vrcp.pop %v1884
    %v1895 = vrcp.pop %v1887
    %v1896 = vmul.f32 %v1849, %v1888
    %v1897 = vmul.f32 %v1851, %v1889
    %v1898 = vmul.f32 %v1853, %v1890
    %v1899 = vmul.f32 %v1855, %v1891
    %v1900 = vmul.f32 %v1857, %v1892
    %v1901 = vmul.f32 %v1859, %v1893
    %v1902 = vmul.f32 %v1861, %v1894
    %v1903 = vmul.f32 %v1863, %v1895
    %v1904 = vpack.c.bf16 %v1897, %v1896
    %v1905 = vpack.c.bf16 %v1899, %v1898
    %v1906 = vpack.c.bf16 %v1901, %v1900
    %v1907 = vpack.c.bf16 %v1903, %v1902
    %v1909 = vsel %vm247, %v1904, 0
    %v1912 = vsel %vm247, %v1905, 0
    %v1915 = vsel %vm247, %v1906, 0
    %v1918 = vsel %vm247, %v1907, 0
    %1920 = vmatpush.bf16.msra.mxu0 0
    %1921 = vmatpush.bf16.msra.mxu0 0
    %1922 = vmatpush.bf16.msra.mxu0 0
    %1923 = vmatpush.bf16.msra.mxu0 0
    %1924 = vmatpush.bf16.msra.mxu0 %v1746
    %1925 = vmatpush.bf16.msra.mxu0 %v1745
    %1926 = vmatpush.bf16.msra.mxu0 %v1744
    %1927 = vmatpush.bf16.msra.mxu0 %v1743
    %1928 = vmatmul.bf16.gmra.mxu0 %v1909
    %v1929 = vpop.f32.mrf.mxu0
    %v1930 = vadd.f32 0.0, %v1929
    %v1931 = vpop.f32.mrf.mxu0
    %v1932 = vadd.f32 0.0, %v1931
    %1933 = vmatmul.bf16.gmra.mxu0 %v1912
    %v1934 = vpop.f32.mrf.mxu0
    %v1935 = vadd.f32 0.0, %v1934
    %v1936 = vpop.f32.mrf.mxu0
    %v1937 = vadd.f32 0.0, %v1936
    %1938 = vmatmul.bf16.gmra.mxu0 %v1915
    %v1939 = vpop.f32.mrf.mxu0
    %v1940 = vadd.f32 0.0, %v1939
    %v1941 = vpop.f32.mrf.mxu0
    %v1942 = vadd.f32 0.0, %v1941
    %1943 = vmatmul.bf16.gmra.mxu0 %v1918
    %v1944 = vpop.f32.mrf.mxu0
    %v1945 = vadd.f32 0.0, %v1944
    %v1946 = vpop.f32.mrf.mxu0
    %v1947 = vadd.f32 0.0, %v1946
    %1948 = vdwg.mxu0
    %v1949 = vld [vmem:[%s13] sm:$0xff]
    %v1950 = vld [vmem:[%s13 + $0x8] sm:$0xff]
    %v1951 = vld [vmem:[%s13 + $0x10] sm:$0xff]
    %v1952 = vld [vmem:[%s13 + $0x18] sm:$0xff]
    %v1953 = vpack.c.bf16 %v1932, %v1930
    %v1954 = vpack.c.bf16 %v1949, %v1949
    %v1955 = vpack.c.bf16 %v1937, %v1935
    %v1956 = vpack.c.bf16 %v1950, %v1950
    %v1958 = vsel %vm189, %v1955, 0
    %v1961 = vsel %vm388, %v1956, 0
    %1963 = vmatpush.bf16.msra.mxu0 0
    %1964 = vmatpush.bf16.msra.mxu0 0
    %1965 = vmatpush.bf16.msra.mxu0 0
    %1966 = vmatpush.bf16.msra.mxu0 0
    %1967 = vmatpush.bf16.msra.mxu0 0
    %1968 = vmatpush.bf16.msra.mxu0 0
    %1969 = vmatpush.bf16.msra.mxu0 0
    %1970 = vmatpush.bf16.msra.mxu0 %v1961
    %1971 = vmatmul.bf16.gmra.mxu0 %v1958
    %v1972 = vpop.f32.mrf.mxu0
    %v1973 = vadd.f32 0.0, %v1972
    %v1974 = vpop.f32.mrf.mxu0
    %v1975 = vadd.f32 0.0, %v1974
    %1976 = vdwg.mxu0
    %v1978 = vsel %vm189, %v1953, 0
    %v1981 = vsel %vm388, %v1954, 0
    %1983 = vmatpush.bf16.msra.mxu0 0
    %1984 = vmatpush.bf16.msra.mxu0 0
    %1985 = vmatpush.bf16.msra.mxu0 0
    %1986 = vmatpush.bf16.msra.mxu0 0
    %1987 = vmatpush.bf16.msra.mxu0 0
    %1988 = vmatpush.bf16.msra.mxu0 0
    %1989 = vmatpush.bf16.msra.mxu0 0
    %1990 = vmatpush.bf16.msra.mxu0 %v1981
    %1991 = vmatmul.bf16.gmra.mxu0 %v1978
    %v1992 = vpop.f32.mrf.mxu0
    %v1993 = vadd.f32 %v1973, %v1992
    %v1994 = vpop.f32.mrf.mxu0
    %v1995 = vadd.f32 %v1975, %v1994
    %1996 = vdwg.mxu0
    %v1997 = vpack.c.bf16 %v1942, %v1940
    %v1998 = vpack.c.bf16 %v1951, %v1951
    %v2000 = vsel %vm189, %v1997, 0
    %v2003 = vsel %vm388, %v1998, 0
    %2005 = vmatpush.bf16.msra.mxu0 0
    %2006 = vmatpush.bf16.msra.mxu0 0
    %2007 = vmatpush.bf16.msra.mxu0 0
    %2008 = vmatpush.bf16.msra.mxu0 0
    %2009 = vmatpush.bf16.msra.mxu0 0
    %2010 = vmatpush.bf16.msra.mxu0 0
    %2011 = vmatpush.bf16.msra.mxu0 0
    %2012 = vmatpush.bf16.msra.mxu0 %v2003
    %2013 = vmatmul.bf16.gmra.mxu0 %v2000
    %v2014 = vpop.f32.mrf.mxu0
    %v2015 = vadd.f32 0.0, %v2014
    %v2016 = vpop.f32.mrf.mxu0
    %v2017 = vadd.f32 0.0, %v2016
    %2018 = vdwg.mxu0
    %v2019 = vadd.f32 %v1993, %v2015
    %v2020 = vadd.f32 %v1995, %v2017
    %v2021 = vpack.c.bf16 %v1947, %v1945
    %v2022 = vpack.c.bf16 %v1952, %v1952
    %v2024 = vsel %vm189, %v2021, 0
    %v2027 = vsel %vm388, %v2022, 0
    %2029 = vmatpush.bf16.msra.mxu0 0
    %2030 = vmatpush.bf16.msra.mxu0 0
    %2031 = vmatpush.bf16.msra.mxu0 0
    %2032 = vmatpush.bf16.msra.mxu0 0
    %2033 = vmatpush.bf16.msra.mxu0 0
    %2034 = vmatpush.bf16.msra.mxu0 0
    %2035 = vmatpush.bf16.msra.mxu0 0
    %2036 = vmatpush.bf16.msra.mxu0 %v2027
    %2037 = vmatmul.bf16.gmra.mxu0 %v2024
    %v2038 = vpop.f32.mrf.mxu0
    %v2039 = vadd.f32 0.0, %v2038
    %v2040 = vpop.f32.mrf.mxu0
    %v2041 = vadd.f32 0.0, %v2040
    %2042 = vdwg.mxu0
    %v2043 = vadd.f32 %v2019, %v2039
    %v2044 = vadd.f32 %v2020, %v2041
    %v2045 = vperm.slane %v1199, 3
    %v2046 = vadd.f32 %v2043, %v2045
    %v2047 = vadd.f32 %v2044, %v2045
    %v2048 = vadd.f32 %v2046, %v1629
    %v2049 = vadd.f32 %v2047, %v1630
    %v2050 = vsel %vm119, %v2048, 0.0
    %2051 = vadd.xlane.f32.xlu0 %v2050
    %v2052 = vpop.xlane.xlu0 %2051
    %v2053 = vsel %vm119, %v2049, 0.0
    %2054 = vadd.xlane.f32.xlu0 %v2053
    %v2055 = vpop.xlane.xlu0 %2054
    %v2056 = vmul.f32 %v2052, %v491
    %v2057 = vmul.f32 %v2055, %v491
    %v2058 = vsub.f32 %v2048, %v2056
    %v2059 = vsub.f32 %v2049, %v2057
    %v2060 = vmul.f32 %v2058, %v2058
    %v2061 = vmul.f32 %v2059, %v2059
    %v2062 = vsel %vm119, %v2060, 0.0
    %2063 = vadd.xlane.f32.xlu0 %v2062
    %v2064 = vpop.xlane.xlu0 %2063
    %v2065 = vsel %vm119, %v2061, 0.0
    %2066 = vadd.xlane.f32.xlu0 %v2065
    %v2067 = vpop.xlane.xlu0 %2066
    %v2068 = vmul.f32 %v2064, %v491
    %v2069 = vmul.f32 %v2067, %v491
    %v2070 = vadd.f32 %v2068, 1e-05
    %v2071 = vadd.f32 %v2069, 1e-05
    %v2072 = vrsqrt.pop %v2070
    %v2073 = vmul.f32 %v2072, %v2070
    %v2074 = vmul.f32 %v2073, %v2072
    %v2075 = vmul.f32 0.5, %v2074
    %v2076 = vsub.f32 1.5, %v2075
    %v2077 = vmul.f32 %v2072, %v2076
    %vm2078 = vweird.f32 %v2070
    %vm2079 = vweird.f32 %v2072
    %vm2080 = vmor %vm2078, %vm2079
    %v2081 = vsel %vm2080, %v2072, %v2077
    %v2082 = vrsqrt.pop %v2071
    %v2083 = vmul.f32 %v2082, %v2071
    %v2084 = vmul.f32 %v2083, %v2082
    %v2085 = vmul.f32 0.5, %v2084
    %v2086 = vsub.f32 1.5, %v2085
    %v2087 = vmul.f32 %v2082, %v2086
    %vm2088 = vweird.f32 %v2071
    %vm2089 = vweird.f32 %v2082
    %vm2090 = vmor %vm2088, %vm2089
    %v2091 = vsel %vm2090, %v2082, %v2087
    %v2092 = vmul.f32 %v2058, %v2081
    %v2093 = vmul.f32 %v2059, %v2091
    %v2094 = vperm.slane %v1199, 4
    %v2095 = vmul.f32 %v2092, %v2094
    %v2096 = vmul.f32 %v2093, %v2094
    %v2097 = vperm.slane %v1199, 5
    %v2098 = vadd.f32 %v2095, %v2097
    %v2099 = vadd.f32 %v2096, %v2097
    %v2100 = vld [vmem:[%s14] sm:$0xff]
    %v2101 = vld [vmem:[%s14 + $0x8] sm:$0xff]
    %v2102 = vld [vmem:[%s14 + $0x10] sm:$0xff]
    %v2103 = vld [vmem:[%s14 + $0x18] sm:$0xff]
    %v2104 = vld [vmem:[%s15] sm:$0xff]
    %v2105 = vld [vmem:[%s15 + $0x8] sm:$0xff]
    %v2106 = vld [vmem:[%s15 + $0x10] sm:$0xff]
    %v2107 = vld [vmem:[%s15 + $0x18] sm:$0xff]
    %v2108 = vld [vmem:[%s15 + $0x20] sm:$0xff]
    %v2109 = vld [vmem:[%s15 + $0x28] sm:$0xff]
    %v2110 = vld [vmem:[%s15 + $0x30] sm:$0xff]
    %v2111 = vld [vmem:[%s15 + $0x38] sm:$0xff]
    %v2112 = vpack.c.bf16 %v2099, %v2098
    %v2113 = vpack.c.bf16 %v2101, %v2100
    %v2114 = vpack.c.bf16 %v2103, %v2102
    %v2116 = vperm.slane %v1201, 0
    %v2119 = vsel %vm119, %v2112, 0
    %2121 = vmatpush.bf16.msra.mxu0 0
    %2122 = vmatpush.bf16.msra.mxu0 0
    %2123 = vmatpush.bf16.msra.mxu0 0
    %2124 = vmatpush.bf16.msra.mxu0 0
    %2125 = vmatpush.bf16.msra.mxu0 0
    %2126 = vmatpush.bf16.msra.mxu0 0
    %2127 = vmatpush.bf16.msra.mxu0 %v2114
    %2128 = vmatpush.bf16.msra.mxu0 %v2113
    %2129 = vmatmul.bf16.gmra.mxu0 %v2119
    %v2130 = vpop.f32.mrf.mxu0
    %v2131 = vadd.f32 %v2116, %v2130
    %v2132 = vpop.f32.mrf.mxu0
    %v2133 = vadd.f32 %v2116, %v2132
    %2134 = vdwg.mxu0
    %v2135 = vmax.f32 %v2131, 0.0
    %v2136 = vmax.f32 %v2133, 0.0
    %v2137 = vpack.c.bf16 %v2136, %v2135
    %v2138 = vpack.c.bf16 %v2105, %v2104
    %v2139 = vpack.c.bf16 %v2107, %v2106
    %v2140 = vpack.c.bf16 %v2109, %v2108
    %v2141 = vpack.c.bf16 %v2111, %v2110
    %v2142 = vperm.slane %v1199, 6
    %v2144 = vsel %vm247, %v2137, 0
    %2146 = vmatpush.bf16.msra.mxu0 0
    %2147 = vmatpush.bf16.msra.mxu0 0
    %2148 = vmatpush.bf16.msra.mxu0 0
    %2149 = vmatpush.bf16.msra.mxu0 0
    %2150 = vmatpush.bf16.msra.mxu0 %v2141
    %2151 = vmatpush.bf16.msra.mxu0 %v2140
    %2152 = vmatpush.bf16.msra.mxu0 %v2139
    %2153 = vmatpush.bf16.msra.mxu0 %v2138
    %2154 = vmatmul.bf16.gmra.mxu0 %v2144
    %v2155 = vpop.f32.mrf.mxu0
    %v2156 = vadd.f32 %v2142, %v2155
    %v2157 = vpop.f32.mrf.mxu0
    %v2158 = vadd.f32 %v2142, %v2157
    %2159 = vdwg.mxu0
    %v2160 = vadd.f32 %v2156, %v2098
    %v2161 = vadd.f32 %v2158, %v2099
    %v2162 = vsel %vm119, %v2160, 0.0
    %2163 = vadd.xlane.f32.xlu0 %v2162
    %v2164 = vpop.xlane.xlu0 %2163
    %v2165 = vsel %vm119, %v2161, 0.0
    %2166 = vadd.xlane.f32.xlu0 %v2165
    %v2167 = vpop.xlane.xlu0 %2166
    %v2168 = vmul.f32 %v2164, %v491
    %v2169 = vmul.f32 %v2167, %v491
    %v2170 = vsub.f32 %v2160, %v2168
    %v2171 = vsub.f32 %v2161, %v2169
    %v2172 = vmul.f32 %v2170, %v2170
    %v2173 = vmul.f32 %v2171, %v2171
    %v2174 = vsel %vm119, %v2172, 0.0
    %2175 = vadd.xlane.f32.xlu0 %v2174
    %v2176 = vpop.xlane.xlu0 %2175
    %v2177 = vsel %vm119, %v2173, 0.0
    %2178 = vadd.xlane.f32.xlu0 %v2177
    %v2179 = vpop.xlane.xlu0 %2178
    %v2180 = vmul.f32 %v2176, %v491
    %v2181 = vmul.f32 %v2179, %v491
    %v2182 = vadd.f32 %v2180, 1e-05
    %v2183 = vadd.f32 %v2181, 1e-05
    %v2184 = vrsqrt.pop %v2182
    %v2185 = vmul.f32 %v2184, %v2182
    %v2186 = vmul.f32 %v2185, %v2184
    %v2187 = vmul.f32 0.5, %v2186
    %v2188 = vsub.f32 1.5, %v2187
    %v2189 = vmul.f32 %v2184, %v2188
    %vm2190 = vweird.f32 %v2182
    %vm2191 = vweird.f32 %v2184
    %vm2192 = vmor %vm2190, %vm2191
    %v2193 = vsel %vm2192, %v2184, %v2189
    %v2194 = vrsqrt.pop %v2183
    %v2195 = vmul.f32 %v2194, %v2183
    %v2196 = vmul.f32 %v2195, %v2194
    %v2197 = vmul.f32 0.5, %v2196
    %v2198 = vsub.f32 1.5, %v2197
    %v2199 = vmul.f32 %v2194, %v2198
    %vm2200 = vweird.f32 %v2183
    %vm2201 = vweird.f32 %v2194
    %vm2202 = vmor %vm2200, %vm2201
    %v2203 = vsel %vm2202, %v2194, %v2199
    %v2204 = vmul.f32 %v2170, %v2193
    %v2205 = vmul.f32 %v2171, %v2203
    %v2206 = vperm.slane %v1199, 7
    %v2207 = vmul.f32 %v2204, %v2206
    %v2208 = vmul.f32 %v2205, %v2206
    %v2209 = vperm.slane %v1200, 0
    %v2210 = vadd.f32 %v2207, %v2209
    %v2211 = vadd.f32 %v2208, %v2209
    %s2212 = scalar_lea.vmem %s16, 16
    %v2213 = vld [vmem:[%s2212] sm:$0xff]
    %v2214 = vld [vmem:[%s2212 + $0x8] sm:$0x1]
    %s2215 = scalar_lea.vmem %s17, 1
    %v2216 = vld [vmem:[%s2215] sm:$0x1]
    %s2217 = scalar_lea.vmem %s10, 128
    %v2218 = vld [vmem:[%s2217] sm:$0xff]
    %v2219 = vld [vmem:[%s2217 + $0x8] sm:$0xff]
    %v2220 = vld [vmem:[%s2217 + $0x10] sm:$0xff]
    %v2221 = vld [vmem:[%s2217 + $0x18] sm:$0xff]
    %v2222 = vld [vmem:[%s2217 + $0x20] sm:$0xff]
    %v2223 = vld [vmem:[%s2217 + $0x28] sm:$0xff]
    %v2224 = vld [vmem:[%s2217 + $0x30] sm:$0xff]
    %v2225 = vld [vmem:[%s2217 + $0x38] sm:$0xff]
    %v2226 = vld [vmem:[%s2217 + $0x40] sm:$0xff]
    %v2227 = vld [vmem:[%s2217 + $0x48] sm:$0xff]
    %v2228 = vld [vmem:[%s2217 + $0x50] sm:$0xff]
    %v2229 = vld [vmem:[%s2217 + $0x58] sm:$0xff]
    %v2230 = vld [vmem:[%s2217 + $0x60] sm:$0xff]
    %v2231 = vld [vmem:[%s2217 + $0x68] sm:$0xff]
    %v2232 = vld [vmem:[%s2217 + $0x70] sm:$0xff]
    %v2233 = vld [vmem:[%s2217 + $0x78] sm:$0xff]
    %v2234 = vpack.c.bf16 %v2211, %v2210
    %v2235 = vpack.c.bf16 %v2219, %v2218
    %v2236 = vpack.c.bf16 %v2221, %v2220
    %v2238 = vsel %vm119, %v2234, 0
    %2240 = vmatpush.bf16.msra.mxu0 0
    %2241 = vmatpush.bf16.msra.mxu0 0
    %2242 = vmatpush.bf16.msra.mxu0 0
    %2243 = vmatpush.bf16.msra.mxu0 0
    %2244 = vmatpush.bf16.msra.mxu0 0
    %2245 = vmatpush.bf16.msra.mxu0 0
    %2246 = vmatpush.bf16.msra.mxu0 %v2236
    %2247 = vmatpush.bf16.msra.mxu0 %v2235
    %2248 = vmatmul.bf16.gmra.mxu0 %v2238
    %v2249 = vpop.f32.mrf.mxu0
    %v2250 = vadd.f32 0.0, %v2249
    %v2251 = vpop.f32.mrf.mxu0
    %v2252 = vadd.f32 0.0, %v2251
    %2253 = vdwg.mxu0
    %v2254 = vpack.c.bf16 %v2223, %v2222
    %v2255 = vpack.c.bf16 %v2225, %v2224
    %2256 = vmatpush.bf16.msra.mxu0 0
    %2257 = vmatpush.bf16.msra.mxu0 0
    %2258 = vmatpush.bf16.msra.mxu0 0
    %2259 = vmatpush.bf16.msra.mxu0 0
    %2260 = vmatpush.bf16.msra.mxu0 0
    %2261 = vmatpush.bf16.msra.mxu0 0
    %2262 = vmatpush.bf16.msra.mxu0 %v2255
    %2263 = vmatpush.bf16.msra.mxu0 %v2254
    %2264 = vmatmul.bf16.gmra.mxu0 %v2238
    %v2265 = vpop.f32.mrf.mxu0
    %v2266 = vadd.f32 0.0, %v2265
    %v2267 = vpop.f32.mrf.mxu0
    %v2268 = vadd.f32 0.0, %v2267
    %2269 = vdwg.mxu0
    %v2270 = vpack.c.bf16 %v2227, %v2226
    %v2271 = vpack.c.bf16 %v2229, %v2228
    %2272 = vmatpush.bf16.msra.mxu0 0
    %2273 = vmatpush.bf16.msra.mxu0 0
    %2274 = vmatpush.bf16.msra.mxu0 0
    %2275 = vmatpush.bf16.msra.mxu0 0
    %2276 = vmatpush.bf16.msra.mxu0 0
    %2277 = vmatpush.bf16.msra.mxu0 0
    %2278 = vmatpush.bf16.msra.mxu0 %v2271
    %2279 = vmatpush.bf16.msra.mxu0 %v2270
    %2280 = vmatmul.bf16.gmra.mxu0 %v2238
    %v2281 = vpop.f32.mrf.mxu0
    %v2282 = vadd.f32 0.0, %v2281
    %v2283 = vpop.f32.mrf.mxu0
    %v2284 = vadd.f32 0.0, %v2283
    %2285 = vdwg.mxu0
    %v2286 = vpack.c.bf16 %v2231, %v2230
    %v2287 = vpack.c.bf16 %v2233, %v2232
    %2288 = vmatpush.bf16.msra.mxu0 0
    %2289 = vmatpush.bf16.msra.mxu0 0
    %2290 = vmatpush.bf16.msra.mxu0 0
    %2291 = vmatpush.bf16.msra.mxu0 0
    %2292 = vmatpush.bf16.msra.mxu0 0
    %2293 = vmatpush.bf16.msra.mxu0 0
    %2294 = vmatpush.bf16.msra.mxu0 %v2287
    %2295 = vmatpush.bf16.msra.mxu0 %v2286
    %2296 = vmatmul.bf16.gmra.mxu0 %v2238
    %v2297 = vpop.f32.mrf.mxu0
    %v2298 = vadd.f32 0.0, %v2297
    %v2299 = vpop.f32.mrf.mxu0
    %v2300 = vadd.f32 0.0, %v2299
    %2301 = vdwg.mxu0
    %v2302 = vpack.c.bf16 %v2252, %v2250
    %v2303 = vpack.c.bf16 %v2268, %v2266
    %v2304 = vpack.c.bf16 %v2284, %v2282
    %v2305 = vpack.c.bf16 %v2300, %v2298
    %v2307 = vsel %vm189, %v2302, 0
    %v2310 = vsel %vm189, %v2303, 0
    %v2313 = vsel %vm189, %v2304, 0
    %v2316 = vsel %vm189, %v2305, 0
    %2318 = vmatpush.bf16.xpose.msra.mxu0 0
    %2319 = vmatpush.bf16.xpose.msra.mxu0 0
    %2320 = vmatpush.bf16.xpose.msra.mxu0 0
    %2321 = vmatpush.bf16.xpose.msra.mxu0 0
    %2322 = vmatpush.bf16.xpose.msra.mxu0 %v2316
    %2323 = vmatpush.bf16.xpose.msra.mxu0 %v2313
    %2324 = vmatpush.bf16.xpose.msra.mxu0 %v2310
    %2325 = vmatpush.bf16.xpose.msra.mxu0 %v2307
    %2326 = vmatmul.bf16.gmra.mxu0 %v2307
    %v2327 = vpop.f32.mrf.mxu0
    %v2328 = vadd.f32 0.0, %v2327
    %v2329 = vpop.f32.mrf.mxu0
    %v2330 = vadd.f32 0.0, %v2329
    %2331 = vmatmul.bf16.gmra.mxu0 %v2310
    %v2332 = vpop.f32.mrf.mxu0
    %v2333 = vadd.f32 0.0, %v2332
    %v2334 = vpop.f32.mrf.mxu0
    %v2335 = vadd.f32 0.0, %v2334
    %2336 = vmatmul.bf16.gmra.mxu0 %v2313
    %v2337 = vpop.f32.mrf.mxu0
    %v2338 = vadd.f32 0.0, %v2337
    %v2339 = vpop.f32.mrf.mxu0
    %v2340 = vadd.f32 0.0, %v2339
    %2341 = vmatmul.bf16.gmra.mxu0 %v2316
    %v2342 = vpop.f32.mrf.mxu0
    %v2343 = vadd.f32 0.0, %v2342
    %v2344 = vpop.f32.mrf.mxu0
    %v2345 = vadd.f32 0.0, %v2344
    %2346 = vdwg.mxu0
    %v2347 = vmul.f32 %v2328, 0.35355338
    %v2348 = vmul.f32 %v2330, 0.35355338
    %v2349 = vmul.f32 %v2333, 0.35355338
    %v2350 = vmul.f32 %v2335, 0.35355338
    %v2351 = vmul.f32 %v2338, 0.35355338
    %v2352 = vmul.f32 %v2340, 0.35355338
    %v2353 = vmul.f32 %v2343, 0.35355338
    %v2354 = vmul.f32 %v2345, 0.35355338
    %v2355 = vadd.f32 %v2347, %v84
    %v2356 = vadd.f32 %v2348, %v85
    %v2357 = vadd.f32 %v2349, %v86
    %v2358 = vadd.f32 %v2350, %v87
    %v2359 = vadd.f32 %v2351, %v88
    %v2360 = vadd.f32 %v2352, %v89
    %v2361 = vadd.f32 %v2353, %v90
    %v2362 = vadd.f32 %v2354, %v91
    %v2363 = vsel %vm247, %v2355, -inf
    %2364 = vmax.xlane.f32.xlu0 %v2363
    %v2365 = vpop.xlane.xlu0 %2364
    %v2366 = vsel %vm247, %v2356, -inf
    %2367 = vmax.xlane.f32.xlu0 %v2366
    %v2368 = vpop.xlane.xlu0 %2367
    %v2369 = vsel %vm247, %v2357, -inf
    %2370 = vmax.xlane.f32.xlu0 %v2369
    %v2371 = vpop.xlane.xlu0 %2370
    %v2372 = vsel %vm247, %v2358, -inf
    %2373 = vmax.xlane.f32.xlu0 %v2372
    %v2374 = vpop.xlane.xlu0 %2373
    %v2375 = vsel %vm247, %v2359, -inf
    %2376 = vmax.xlane.f32.xlu0 %v2375
    %v2377 = vpop.xlane.xlu0 %2376
    %v2378 = vsel %vm247, %v2360, -inf
    %2379 = vmax.xlane.f32.xlu0 %v2378
    %v2380 = vpop.xlane.xlu0 %2379
    %v2381 = vsel %vm247, %v2361, -inf
    %2382 = vmax.xlane.f32.xlu0 %v2381
    %v2383 = vpop.xlane.xlu0 %2382
    %v2384 = vsel %vm247, %v2362, -inf
    %2385 = vmax.xlane.f32.xlu0 %v2384
    %v2386 = vpop.xlane.xlu0 %2385
    %v2387 = vsub.f32 %v2355, %v2365
    %v2388 = vsub.f32 %v2356, %v2368
    %v2389 = vsub.f32 %v2357, %v2371
    %v2390 = vsub.f32 %v2358, %v2374
    %v2391 = vsub.f32 %v2359, %v2377
    %v2392 = vsub.f32 %v2360, %v2380
    %v2393 = vsub.f32 %v2361, %v2383
    %v2394 = vsub.f32 %v2362, %v2386
    %v2395 = vmul.f32 %v2387, 1.442695
    %v2396 = vpow.pop %v2395
    %v2397 = vmul.f32 %v2388, 1.442695
    %v2398 = vpow.pop %v2397
    %v2399 = vmul.f32 %v2389, 1.442695
    %v2400 = vpow.pop %v2399
    %v2401 = vmul.f32 %v2390, 1.442695
    %v2402 = vpow.pop %v2401
    %v2403 = vmul.f32 %v2391, 1.442695
    %v2404 = vpow.pop %v2403
    %v2405 = vmul.f32 %v2392, 1.442695
    %v2406 = vpow.pop %v2405
    %v2407 = vmul.f32 %v2393, 1.442695
    %v2408 = vpow.pop %v2407
    %v2409 = vmul.f32 %v2394, 1.442695
    %v2410 = vpow.pop %v2409
    %v2411 = vsel %vm247, %v2396, 0.0
    %2412 = vadd.xlane.f32.xlu0 %v2411
    %v2413 = vpop.xlane.xlu0 %2412
    %v2414 = vsel %vm247, %v2398, 0.0
    %2415 = vadd.xlane.f32.xlu0 %v2414
    %v2416 = vpop.xlane.xlu0 %2415
    %v2417 = vsel %vm247, %v2400, 0.0
    %2418 = vadd.xlane.f32.xlu0 %v2417
    %v2419 = vpop.xlane.xlu0 %2418
    %v2420 = vsel %vm247, %v2402, 0.0
    %2421 = vadd.xlane.f32.xlu0 %v2420
    %v2422 = vpop.xlane.xlu0 %2421
    %v2423 = vsel %vm247, %v2404, 0.0
    %2424 = vadd.xlane.f32.xlu0 %v2423
    %v2425 = vpop.xlane.xlu0 %2424
    %v2426 = vsel %vm247, %v2406, 0.0
    %2427 = vadd.xlane.f32.xlu0 %v2426
    %v2428 = vpop.xlane.xlu0 %2427
    %v2429 = vsel %vm247, %v2408, 0.0
    %2430 = vadd.xlane.f32.xlu0 %v2429
    %v2431 = vpop.xlane.xlu0 %2430
    %v2432 = vsel %vm247, %v2410, 0.0
    %2433 = vadd.xlane.f32.xlu0 %v2432
    %v2434 = vpop.xlane.xlu0 %2433
    %v2435 = vrcp.pop %v2413
    %v2436 = vrcp.pop %v2416
    %v2437 = vrcp.pop %v2419
    %v2438 = vrcp.pop %v2422
    %v2439 = vrcp.pop %v2425
    %v2440 = vrcp.pop %v2428
    %v2441 = vrcp.pop %v2431
    %v2442 = vrcp.pop %v2434
    %v2443 = vmul.f32 %v2396, %v2435
    %v2444 = vmul.f32 %v2398, %v2436
    %v2445 = vmul.f32 %v2400, %v2437
    %v2446 = vmul.f32 %v2402, %v2438
    %v2447 = vmul.f32 %v2404, %v2439
    %v2448 = vmul.f32 %v2406, %v2440
    %v2449 = vmul.f32 %v2408, %v2441
    %v2450 = vmul.f32 %v2410, %v2442
    %v2451 = vpack.c.bf16 %v2444, %v2443
    %v2452 = vpack.c.bf16 %v2446, %v2445
    %v2453 = vpack.c.bf16 %v2448, %v2447
    %v2454 = vpack.c.bf16 %v2450, %v2449
    %v2456 = vsel %vm247, %v2451, 0
    %v2459 = vsel %vm247, %v2452, 0
    %v2462 = vsel %vm247, %v2453, 0
    %v2465 = vsel %vm247, %v2454, 0
    %2467 = vmatpush.bf16.msra.mxu0 0
    %2468 = vmatpush.bf16.msra.mxu0 0
    %2469 = vmatpush.bf16.msra.mxu0 0
    %2470 = vmatpush.bf16.msra.mxu0 0
    %2471 = vmatpush.bf16.msra.mxu0 %v2305
    %2472 = vmatpush.bf16.msra.mxu0 %v2304
    %2473 = vmatpush.bf16.msra.mxu0 %v2303
    %2474 = vmatpush.bf16.msra.mxu0 %v2302
    %2475 = vmatmul.bf16.gmra.mxu0 %v2456
    %v2476 = vpop.f32.mrf.mxu0
    %v2477 = vadd.f32 0.0, %v2476
    %v2478 = vpop.f32.mrf.mxu0
    %v2479 = vadd.f32 0.0, %v2478
    %2480 = vmatmul.bf16.gmra.mxu0 %v2459
    %v2481 = vpop.f32.mrf.mxu0
    %v2482 = vadd.f32 0.0, %v2481
    %v2483 = vpop.f32.mrf.mxu0
    %v2484 = vadd.f32 0.0, %v2483
    %2485 = vmatmul.bf16.gmra.mxu0 %v2462
    %v2486 = vpop.f32.mrf.mxu0
    %v2487 = vadd.f32 0.0, %v2486
    %v2488 = vpop.f32.mrf.mxu0
    %v2489 = vadd.f32 0.0, %v2488
    %2490 = vmatmul.bf16.gmra.mxu0 %v2465
    %v2491 = vpop.f32.mrf.mxu0
    %v2492 = vadd.f32 0.0, %v2491
    %v2493 = vpop.f32.mrf.mxu0
    %v2494 = vadd.f32 0.0, %v2493
    %2495 = vdwg.mxu0
    %s2496 = scalar_lea.vmem %s11, 32
    %v2497 = vld [vmem:[%s2496] sm:$0xff]
    %v2498 = vld [vmem:[%s2496 + $0x8] sm:$0xff]
    %v2499 = vld [vmem:[%s2496 + $0x10] sm:$0xff]
    %v2500 = vld [vmem:[%s2496 + $0x18] sm:$0xff]
    %v2501 = vpack.c.bf16 %v2479, %v2477
    %v2502 = vpack.c.bf16 %v2497, %v2497
    %v2503 = vpack.c.bf16 %v2484, %v2482
    %v2504 = vpack.c.bf16 %v2498, %v2498
    %v2506 = vsel %vm189, %v2503, 0
    %v2509 = vsel %vm388, %v2504, 0
    %2511 = vmatpush.bf16.msra.mxu0 0
    %2512 = vmatpush.bf16.msra.mxu0 0
    %2513 = vmatpush.bf16.msra.mxu0 0
    %2514 = vmatpush.bf16.msra.mxu0 0
    %2515 = vmatpush.bf16.msra.mxu0 0
    %2516 = vmatpush.bf16.msra.mxu0 0
    %2517 = vmatpush.bf16.msra.mxu0 0
    %2518 = vmatpush.bf16.msra.mxu0 %v2509
    %2519 = vmatmul.bf16.gmra.mxu0 %v2506
    %v2520 = vpop.f32.mrf.mxu0
    %v2521 = vadd.f32 0.0, %v2520
    %v2522 = vpop.f32.mrf.mxu0
    %v2523 = vadd.f32 0.0, %v2522
    %2524 = vdwg.mxu0
    %v2526 = vsel %vm189, %v2501, 0
    %v2529 = vsel %vm388, %v2502, 0
    %2531 = vmatpush.bf16.msra.mxu0 0
    %2532 = vmatpush.bf16.msra.mxu0 0
    %2533 = vmatpush.bf16.msra.mxu0 0
    %2534 = vmatpush.bf16.msra.mxu0 0
    %2535 = vmatpush.bf16.msra.mxu0 0
    %2536 = vmatpush.bf16.msra.mxu0 0
    %2537 = vmatpush.bf16.msra.mxu0 0
    %2538 = vmatpush.bf16.msra.mxu0 %v2529
    %2539 = vmatmul.bf16.gmra.mxu0 %v2526
    %v2540 = vpop.f32.mrf.mxu0
    %v2541 = vadd.f32 %v2521, %v2540
    %v2542 = vpop.f32.mrf.mxu0
    %v2543 = vadd.f32 %v2523, %v2542
    %2544 = vdwg.mxu0
    %v2545 = vpack.c.bf16 %v2489, %v2487
    %v2546 = vpack.c.bf16 %v2499, %v2499
    %v2548 = vsel %vm189, %v2545, 0
    %v2551 = vsel %vm388, %v2546, 0
    %2553 = vmatpush.bf16.msra.mxu0 0
    %2554 = vmatpush.bf16.msra.mxu0 0
    %2555 = vmatpush.bf16.msra.mxu0 0
    %2556 = vmatpush.bf16.msra.mxu0 0
    %2557 = vmatpush.bf16.msra.mxu0 0
    %2558 = vmatpush.bf16.msra.mxu0 0
    %2559 = vmatpush.bf16.msra.mxu0 0
    %2560 = vmatpush.bf16.msra.mxu0 %v2551
    %2561 = vmatmul.bf16.gmra.mxu0 %v2548
    %v2562 = vpop.f32.mrf.mxu0
    %v2563 = vadd.f32 0.0, %v2562
    %v2564 = vpop.f32.mrf.mxu0
    %v2565 = vadd.f32 0.0, %v2564
    %2566 = vdwg.mxu0
    %v2567 = vadd.f32 %v2541, %v2563
    %v2568 = vadd.f32 %v2543, %v2565
    %v2569 = vpack.c.bf16 %v2494, %v2492
    %v2570 = vpack.c.bf16 %v2500, %v2500
    %v2572 = vsel %vm189, %v2569, 0
    %v2575 = vsel %vm388, %v2570, 0
    %2577 = vmatpush.bf16.msra.mxu0 0
    %2578 = vmatpush.bf16.msra.mxu0 0
    %2579 = vmatpush.bf16.msra.mxu0 0
    %2580 = vmatpush.bf16.msra.mxu0 0
    %2581 = vmatpush.bf16.msra.mxu0 0
    %2582 = vmatpush.bf16.msra.mxu0 0
    %2583 = vmatpush.bf16.msra.mxu0 0
    %2584 = vmatpush.bf16.msra.mxu0 %v2575
    %2585 = vmatmul.bf16.gmra.mxu0 %v2572
    %v2586 = vpop.f32.mrf.mxu0
    %v2587 = vadd.f32 0.0, %v2586
    %v2588 = vpop.f32.mrf.mxu0
    %v2589 = vadd.f32 0.0, %v2588
    %2590 = vdwg.mxu0
    %v2591 = vadd.f32 %v2567, %v2587
    %v2592 = vadd.f32 %v2568, %v2589
    %v2593 = vperm.slane %v2213, 0
    %v2594 = vadd.f32 %v2591, %v2593
    %v2595 = vadd.f32 %v2592, %v2593
    %v2596 = vadd.f32 %v2594, %v2210
    %v2597 = vadd.f32 %v2595, %v2211
    %v2598 = vsel %vm119, %v2596, 0.0
    %2599 = vadd.xlane.f32.xlu0 %v2598
    %v2600 = vpop.xlane.xlu0 %2599
    %v2601 = vsel %vm119, %v2597, 0.0
    %2602 = vadd.xlane.f32.xlu0 %v2601
    %v2603 = vpop.xlane.xlu0 %2602
    %v2604 = vmul.f32 %v2600, %v491
    %v2605 = vmul.f32 %v2603, %v491
    %v2606 = vsub.f32 %v2596, %v2604
    %v2607 = vsub.f32 %v2597, %v2605
    %v2608 = vmul.f32 %v2606, %v2606
    %v2609 = vmul.f32 %v2607, %v2607
    %v2610 = vsel %vm119, %v2608, 0.0
    %2611 = vadd.xlane.f32.xlu0 %v2610
    %v2612 = vpop.xlane.xlu0 %2611
    %v2613 = vsel %vm119, %v2609, 0.0
    %2614 = vadd.xlane.f32.xlu0 %v2613
    %v2615 = vpop.xlane.xlu0 %2614
    %v2616 = vmul.f32 %v2612, %v491
    %v2617 = vmul.f32 %v2615, %v491
    %v2618 = vadd.f32 %v2616, 1e-05
    %v2619 = vadd.f32 %v2617, 1e-05
    %v2620 = vrsqrt.pop %v2618
    %v2621 = vmul.f32 %v2620, %v2618
    %v2622 = vmul.f32 %v2621, %v2620
    %v2623 = vmul.f32 0.5, %v2622
    %v2624 = vsub.f32 1.5, %v2623
    %v2625 = vmul.f32 %v2620, %v2624
    %vm2626 = vweird.f32 %v2618
    %vm2627 = vweird.f32 %v2620
    %vm2628 = vmor %vm2626, %vm2627
    %v2629 = vsel %vm2628, %v2620, %v2625
    %v2630 = vrsqrt.pop %v2619
    %v2631 = vmul.f32 %v2630, %v2619
    %v2632 = vmul.f32 %v2631, %v2630
    %v2633 = vmul.f32 0.5, %v2632
    %v2634 = vsub.f32 1.5, %v2633
    %v2635 = vmul.f32 %v2630, %v2634
    %vm2636 = vweird.f32 %v2619
    %vm2637 = vweird.f32 %v2630
    %vm2638 = vmor %vm2636, %vm2637
    %v2639 = vsel %vm2638, %v2630, %v2635
    %v2640 = vmul.f32 %v2606, %v2629
    %v2641 = vmul.f32 %v2607, %v2639
    %v2642 = vperm.slane %v2213, 1
    %v2643 = vmul.f32 %v2640, %v2642
    %v2644 = vmul.f32 %v2641, %v2642
    %v2645 = vperm.slane %v2213, 2
    %v2646 = vadd.f32 %v2643, %v2645
    %v2647 = vadd.f32 %v2644, %v2645
    %s2648 = scalar_lea.vmem %s12, 128
    %v2649 = vld [vmem:[%s2648] sm:$0xff]
    %v2650 = vld [vmem:[%s2648 + $0x8] sm:$0xff]
    %v2651 = vld [vmem:[%s2648 + $0x10] sm:$0xff]
    %v2652 = vld [vmem:[%s2648 + $0x18] sm:$0xff]
    %v2653 = vld [vmem:[%s2648 + $0x20] sm:$0xff]
    %v2654 = vld [vmem:[%s2648 + $0x28] sm:$0xff]
    %v2655 = vld [vmem:[%s2648 + $0x30] sm:$0xff]
    %v2656 = vld [vmem:[%s2648 + $0x38] sm:$0xff]
    %v2657 = vld [vmem:[%s2648 + $0x40] sm:$0xff]
    %v2658 = vld [vmem:[%s2648 + $0x48] sm:$0xff]
    %v2659 = vld [vmem:[%s2648 + $0x50] sm:$0xff]
    %v2660 = vld [vmem:[%s2648 + $0x58] sm:$0xff]
    %v2661 = vld [vmem:[%s2648 + $0x60] sm:$0xff]
    %v2662 = vld [vmem:[%s2648 + $0x68] sm:$0xff]
    %v2663 = vld [vmem:[%s2648 + $0x70] sm:$0xff]
    %v2664 = vld [vmem:[%s2648 + $0x78] sm:$0xff]
    %v2665 = vpack.c.bf16 %v2647, %v2646
    %v2666 = vpack.c.bf16 %v2650, %v2649
    %v2667 = vpack.c.bf16 %v2652, %v2651
    %v2669 = vsel %vm119, %v2665, 0
    %2671 = vmatpush.bf16.msra.mxu0 0
    %2672 = vmatpush.bf16.msra.mxu0 0
    %2673 = vmatpush.bf16.msra.mxu0 0
    %2674 = vmatpush.bf16.msra.mxu0 0
    %2675 = vmatpush.bf16.msra.mxu0 0
    %2676 = vmatpush.bf16.msra.mxu0 0
    %2677 = vmatpush.bf16.msra.mxu0 %v2667
    %2678 = vmatpush.bf16.msra.mxu0 %v2666
    %2679 = vmatmul.bf16.gmra.mxu0 %v2669
    %v2680 = vpop.f32.mrf.mxu0
    %v2681 = vadd.f32 0.0, %v2680
    %v2682 = vpop.f32.mrf.mxu0
    %v2683 = vadd.f32 0.0, %v2682
    %2684 = vmatmul.bf16.gmra.mxu0 %v1655
    %v2685 = vpop.f32.mrf.mxu0
    %v2686 = vadd.f32 0.0, %v2685
    %v2687 = vpop.f32.mrf.mxu0
    %v2688 = vadd.f32 0.0, %v2687
    %2689 = vdwg.mxu0
    %v2690 = vpack.c.bf16 %v2654, %v2653
    %v2691 = vpack.c.bf16 %v2656, %v2655
    %2692 = vmatpush.bf16.msra.mxu0 0
    %2693 = vmatpush.bf16.msra.mxu0 0
    %2694 = vmatpush.bf16.msra.mxu0 0
    %2695 = vmatpush.bf16.msra.mxu0 0
    %2696 = vmatpush.bf16.msra.mxu0 0
    %2697 = vmatpush.bf16.msra.mxu0 0
    %2698 = vmatpush.bf16.msra.mxu0 %v2691
    %2699 = vmatpush.bf16.msra.mxu0 %v2690
    %2700 = vmatmul.bf16.gmra.mxu0 %v2669
    %v2701 = vpop.f32.mrf.mxu0
    %v2702 = vadd.f32 0.0, %v2701
    %v2703 = vpop.f32.mrf.mxu0
    %v2704 = vadd.f32 0.0, %v2703
    %2705 = vmatmul.bf16.gmra.mxu0 %v1655
    %v2706 = vpop.f32.mrf.mxu0
    %v2707 = vadd.f32 0.0, %v2706
    %v2708 = vpop.f32.mrf.mxu0
    %v2709 = vadd.f32 0.0, %v2708
    %2710 = vdwg.mxu0
    %v2711 = vpack.c.bf16 %v2658, %v2657
    %v2712 = vpack.c.bf16 %v2660, %v2659
    %2713 = vmatpush.bf16.msra.mxu0 0
    %2714 = vmatpush.bf16.msra.mxu0 0
    %2715 = vmatpush.bf16.msra.mxu0 0
    %2716 = vmatpush.bf16.msra.mxu0 0
    %2717 = vmatpush.bf16.msra.mxu0 0
    %2718 = vmatpush.bf16.msra.mxu0 0
    %2719 = vmatpush.bf16.msra.mxu0 %v2712
    %2720 = vmatpush.bf16.msra.mxu0 %v2711
    %2721 = vmatmul.bf16.gmra.mxu0 %v2669
    %v2722 = vpop.f32.mrf.mxu0
    %v2723 = vadd.f32 0.0, %v2722
    %v2724 = vpop.f32.mrf.mxu0
    %v2725 = vadd.f32 0.0, %v2724
    %2726 = vmatmul.bf16.gmra.mxu0 %v1655
    %v2727 = vpop.f32.mrf.mxu0
    %v2728 = vadd.f32 0.0, %v2727
    %v2729 = vpop.f32.mrf.mxu0
    %v2730 = vadd.f32 0.0, %v2729
    %2731 = vdwg.mxu0
    %v2732 = vpack.c.bf16 %v2662, %v2661
    %v2733 = vpack.c.bf16 %v2664, %v2663
    %2734 = vmatpush.bf16.msra.mxu0 0
    %2735 = vmatpush.bf16.msra.mxu0 0
    %2736 = vmatpush.bf16.msra.mxu0 0
    %2737 = vmatpush.bf16.msra.mxu0 0
    %2738 = vmatpush.bf16.msra.mxu0 0
    %2739 = vmatpush.bf16.msra.mxu0 0
    %2740 = vmatpush.bf16.msra.mxu0 %v2733
    %2741 = vmatpush.bf16.msra.mxu0 %v2732
    %2742 = vmatmul.bf16.gmra.mxu0 %v2669
    %v2743 = vpop.f32.mrf.mxu0
    %v2744 = vadd.f32 0.0, %v2743
    %v2745 = vpop.f32.mrf.mxu0
    %v2746 = vadd.f32 0.0, %v2745
    %2747 = vmatmul.bf16.gmra.mxu0 %v1655
    %v2748 = vpop.f32.mrf.mxu0
    %v2749 = vadd.f32 0.0, %v2748
    %v2750 = vpop.f32.mrf.mxu0
    %v2751 = vadd.f32 0.0, %v2750
    %2752 = vdwg.mxu0
    %v2753 = vpack.c.bf16 %v2683, %v2681
    %v2754 = vpack.c.bf16 %v2704, %v2702
    %v2755 = vpack.c.bf16 %v2725, %v2723
    %v2756 = vpack.c.bf16 %v2746, %v2744
    %v2757 = vpack.c.bf16 %v2688, %v2686
    %v2758 = vpack.c.bf16 %v2709, %v2707
    %v2759 = vpack.c.bf16 %v2730, %v2728
    %v2760 = vpack.c.bf16 %v2751, %v2749
    %v2762 = vsel %vm189, %v2753, 0
    %v2765 = vsel %vm189, %v2754, 0
    %v2768 = vsel %vm189, %v2755, 0
    %v2771 = vsel %vm189, %v2756, 0
    %v2774 = vsel %vm189, %v2757, 0
    %v2777 = vsel %vm189, %v2758, 0
    %v2780 = vsel %vm189, %v2759, 0
    %v2783 = vsel %vm189, %v2760, 0
    %2785 = vmatpush.bf16.xpose.msra.mxu0 0
    %2786 = vmatpush.bf16.xpose.msra.mxu0 0
    %2787 = vmatpush.bf16.xpose.msra.mxu0 0
    %2788 = vmatpush.bf16.xpose.msra.mxu0 0
    %2789 = vmatpush.bf16.xpose.msra.mxu0 %v2783
    %2790 = vmatpush.bf16.xpose.msra.mxu0 %v2780
    %2791 = vmatpush.bf16.xpose.msra.mxu0 %v2777
    %2792 = vmatpush.bf16.xpose.msra.mxu0 %v2774
    %2793 = vmatmul.bf16.gmra.mxu0 %v2762
    %v2794 = vpop.f32.mrf.mxu0
    %v2795 = vadd.f32 0.0, %v2794
    %v2796 = vpop.f32.mrf.mxu0
    %v2797 = vadd.f32 0.0, %v2796
    %2798 = vmatmul.bf16.gmra.mxu0 %v2765
    %v2799 = vpop.f32.mrf.mxu0
    %v2800 = vadd.f32 0.0, %v2799
    %v2801 = vpop.f32.mrf.mxu0
    %v2802 = vadd.f32 0.0, %v2801
    %2803 = vmatmul.bf16.gmra.mxu0 %v2768
    %v2804 = vpop.f32.mrf.mxu0
    %v2805 = vadd.f32 0.0, %v2804
    %v2806 = vpop.f32.mrf.mxu0
    %v2807 = vadd.f32 0.0, %v2806
    %2808 = vmatmul.bf16.gmra.mxu0 %v2771
    %v2809 = vpop.f32.mrf.mxu0
    %v2810 = vadd.f32 0.0, %v2809
    %v2811 = vpop.f32.mrf.mxu0
    %v2812 = vadd.f32 0.0, %v2811
    %2813 = vdwg.mxu0
    %v2814 = vmul.f32 %v2795, 0.35355338
    %v2815 = vmul.f32 %v2797, 0.35355338
    %v2816 = vmul.f32 %v2800, 0.35355338
    %v2817 = vmul.f32 %v2802, 0.35355338
    %v2818 = vmul.f32 %v2805, 0.35355338
    %v2819 = vmul.f32 %v2807, 0.35355338
    %v2820 = vmul.f32 %v2810, 0.35355338
    %v2821 = vmul.f32 %v2812, 0.35355338
    %v2822 = vadd.f32 %v2814, %v76
    %v2823 = vadd.f32 %v2815, %v77
    %v2824 = vadd.f32 %v2816, %v78
    %v2825 = vadd.f32 %v2817, %v79
    %v2826 = vadd.f32 %v2818, %v80
    %v2827 = vadd.f32 %v2819, %v81
    %v2828 = vadd.f32 %v2820, %v82
    %v2829 = vadd.f32 %v2821, %v83
    %v2830 = vsel %vm247, %v2822, -inf
    %2831 = vmax.xlane.f32.xlu0 %v2830
    %v2832 = vpop.xlane.xlu0 %2831
    %v2833 = vsel %vm247, %v2823, -inf
    %2834 = vmax.xlane.f32.xlu0 %v2833
    %v2835 = vpop.xlane.xlu0 %2834
    %v2836 = vsel %vm247, %v2824, -inf
    %2837 = vmax.xlane.f32.xlu0 %v2836
    %v2838 = vpop.xlane.xlu0 %2837
    %v2839 = vsel %vm247, %v2825, -inf
    %2840 = vmax.xlane.f32.xlu0 %v2839
    %v2841 = vpop.xlane.xlu0 %2840
    %v2842 = vsel %vm247, %v2826, -inf
    %2843 = vmax.xlane.f32.xlu0 %v2842
    %v2844 = vpop.xlane.xlu0 %2843
    %v2845 = vsel %vm247, %v2827, -inf
    %2846 = vmax.xlane.f32.xlu0 %v2845
    %v2847 = vpop.xlane.xlu0 %2846
    %v2848 = vsel %vm247, %v2828, -inf
    %2849 = vmax.xlane.f32.xlu0 %v2848
    %v2850 = vpop.xlane.xlu0 %2849
    %v2851 = vsel %vm247, %v2829, -inf
    %2852 = vmax.xlane.f32.xlu0 %v2851
    %v2853 = vpop.xlane.xlu0 %2852
    %v2854 = vsub.f32 %v2822, %v2832
    %v2855 = vsub.f32 %v2823, %v2835
    %v2856 = vsub.f32 %v2824, %v2838
    %v2857 = vsub.f32 %v2825, %v2841
    %v2858 = vsub.f32 %v2826, %v2844
    %v2859 = vsub.f32 %v2827, %v2847
    %v2860 = vsub.f32 %v2828, %v2850
    %v2861 = vsub.f32 %v2829, %v2853
    %v2862 = vmul.f32 %v2854, 1.442695
    %v2863 = vpow.pop %v2862
    %v2864 = vmul.f32 %v2855, 1.442695
    %v2865 = vpow.pop %v2864
    %v2866 = vmul.f32 %v2856, 1.442695
    %v2867 = vpow.pop %v2866
    %v2868 = vmul.f32 %v2857, 1.442695
    %v2869 = vpow.pop %v2868
    %v2870 = vmul.f32 %v2858, 1.442695
    %v2871 = vpow.pop %v2870
    %v2872 = vmul.f32 %v2859, 1.442695
    %v2873 = vpow.pop %v2872
    %v2874 = vmul.f32 %v2860, 1.442695
    %v2875 = vpow.pop %v2874
    %v2876 = vmul.f32 %v2861, 1.442695
    %v2877 = vpow.pop %v2876
    %v2878 = vsel %vm247, %v2863, 0.0
    %2879 = vadd.xlane.f32.xlu0 %v2878
    %v2880 = vpop.xlane.xlu0 %2879
    %v2881 = vsel %vm247, %v2865, 0.0
    %2882 = vadd.xlane.f32.xlu0 %v2881
    %v2883 = vpop.xlane.xlu0 %2882
    %v2884 = vsel %vm247, %v2867, 0.0
    %2885 = vadd.xlane.f32.xlu0 %v2884
    %v2886 = vpop.xlane.xlu0 %2885
    %v2887 = vsel %vm247, %v2869, 0.0
    %2888 = vadd.xlane.f32.xlu0 %v2887
    %v2889 = vpop.xlane.xlu0 %2888
    %v2890 = vsel %vm247, %v2871, 0.0
    %2891 = vadd.xlane.f32.xlu0 %v2890
    %v2892 = vpop.xlane.xlu0 %2891
    %v2893 = vsel %vm247, %v2873, 0.0
    %2894 = vadd.xlane.f32.xlu0 %v2893
    %v2895 = vpop.xlane.xlu0 %2894
    %v2896 = vsel %vm247, %v2875, 0.0
    %2897 = vadd.xlane.f32.xlu0 %v2896
    %v2898 = vpop.xlane.xlu0 %2897
    %v2899 = vsel %vm247, %v2877, 0.0
    %2900 = vadd.xlane.f32.xlu0 %v2899
    %v2901 = vpop.xlane.xlu0 %2900
    %v2902 = vrcp.pop %v2880
    %v2903 = vrcp.pop %v2883
    %v2904 = vrcp.pop %v2886
    %v2905 = vrcp.pop %v2889
    %v2906 = vrcp.pop %v2892
    %v2907 = vrcp.pop %v2895
    %v2908 = vrcp.pop %v2898
    %v2909 = vrcp.pop %v2901
    %v2910 = vmul.f32 %v2863, %v2902
    %v2911 = vmul.f32 %v2865, %v2903
    %v2912 = vmul.f32 %v2867, %v2904
    %v2913 = vmul.f32 %v2869, %v2905
    %v2914 = vmul.f32 %v2871, %v2906
    %v2915 = vmul.f32 %v2873, %v2907
    %v2916 = vmul.f32 %v2875, %v2908
    %v2917 = vmul.f32 %v2877, %v2909
    %v2918 = vpack.c.bf16 %v2911, %v2910
    %v2919 = vpack.c.bf16 %v2913, %v2912
    %v2920 = vpack.c.bf16 %v2915, %v2914
    %v2921 = vpack.c.bf16 %v2917, %v2916
    %v2923 = vsel %vm247, %v2918, 0
    %v2926 = vsel %vm247, %v2919, 0
    %v2929 = vsel %vm247, %v2920, 0
    %v2932 = vsel %vm247, %v2921, 0
    %2934 = vmatpush.bf16.msra.mxu0 0
    %2935 = vmatpush.bf16.msra.mxu0 0
    %2936 = vmatpush.bf16.msra.mxu0 0
    %2937 = vmatpush.bf16.msra.mxu0 0
    %2938 = vmatpush.bf16.msra.mxu0 %v2760
    %2939 = vmatpush.bf16.msra.mxu0 %v2759
    %2940 = vmatpush.bf16.msra.mxu0 %v2758
    %2941 = vmatpush.bf16.msra.mxu0 %v2757
    %2942 = vmatmul.bf16.gmra.mxu0 %v2923
    %v2943 = vpop.f32.mrf.mxu0
    %v2944 = vadd.f32 0.0, %v2943
    %v2945 = vpop.f32.mrf.mxu0
    %v2946 = vadd.f32 0.0, %v2945
    %2947 = vmatmul.bf16.gmra.mxu0 %v2926
    %v2948 = vpop.f32.mrf.mxu0
    %v2949 = vadd.f32 0.0, %v2948
    %v2950 = vpop.f32.mrf.mxu0
    %v2951 = vadd.f32 0.0, %v2950
    %2952 = vmatmul.bf16.gmra.mxu0 %v2929
    %v2953 = vpop.f32.mrf.mxu0
    %v2954 = vadd.f32 0.0, %v2953
    %v2955 = vpop.f32.mrf.mxu0
    %v2956 = vadd.f32 0.0, %v2955
    %2957 = vmatmul.bf16.gmra.mxu0 %v2932
    %v2958 = vpop.f32.mrf.mxu0
    %v2959 = vadd.f32 0.0, %v2958
    %v2960 = vpop.f32.mrf.mxu0
    %v2961 = vadd.f32 0.0, %v2960
    %2962 = vdwg.mxu0
    %s2963 = scalar_lea.vmem %s13, 32
    %v2964 = vld [vmem:[%s2963] sm:$0xff]
    %v2965 = vld [vmem:[%s2963 + $0x8] sm:$0xff]
    %v2966 = vld [vmem:[%s2963 + $0x10] sm:$0xff]
    %v2967 = vld [vmem:[%s2963 + $0x18] sm:$0xff]
    %v2968 = vpack.c.bf16 %v2946, %v2944
    %v2969 = vpack.c.bf16 %v2964, %v2964
    %v2970 = vpack.c.bf16 %v2951, %v2949
    %v2971 = vpack.c.bf16 %v2965, %v2965
    %v2973 = vsel %vm189, %v2970, 0
    %v2976 = vsel %vm388, %v2971, 0
    %2978 = vmatpush.bf16.msra.mxu0 0
    %2979 = vmatpush.bf16.msra.mxu0 0
    %2980 = vmatpush.bf16.msra.mxu0 0
    %2981 = vmatpush.bf16.msra.mxu0 0
    %2982 = vmatpush.bf16.msra.mxu0 0
    %2983 = vmatpush.bf16.msra.mxu0 0
    %2984 = vmatpush.bf16.msra.mxu0 0
    %2985 = vmatpush.bf16.msra.mxu0 %v2976
    %2986 = vmatmul.bf16.gmra.mxu0 %v2973
    %v2987 = vpop.f32.mrf.mxu0
    %v2988 = vadd.f32 0.0, %v2987
    %v2989 = vpop.f32.mrf.mxu0
    %v2990 = vadd.f32 0.0, %v2989
    %2991 = vdwg.mxu0
    %v2993 = vsel %vm189, %v2968, 0
    %v2996 = vsel %vm388, %v2969, 0
    %2998 = vmatpush.bf16.msra.mxu0 0
    %2999 = vmatpush.bf16.msra.mxu0 0
    %3000 = vmatpush.bf16.msra.mxu0 0
    %3001 = vmatpush.bf16.msra.mxu0 0
    %3002 = vmatpush.bf16.msra.mxu0 0
    %3003 = vmatpush.bf16.msra.mxu0 0
    %3004 = vmatpush.bf16.msra.mxu0 0
    %3005 = vmatpush.bf16.msra.mxu0 %v2996
    %3006 = vmatmul.bf16.gmra.mxu0 %v2993
    %v3007 = vpop.f32.mrf.mxu0
    %v3008 = vadd.f32 %v2988, %v3007
    %v3009 = vpop.f32.mrf.mxu0
    %v3010 = vadd.f32 %v2990, %v3009
    %3011 = vdwg.mxu0
    %v3012 = vpack.c.bf16 %v2956, %v2954
    %v3013 = vpack.c.bf16 %v2966, %v2966
    %v3015 = vsel %vm189, %v3012, 0
    %v3018 = vsel %vm388, %v3013, 0
    %3020 = vmatpush.bf16.msra.mxu0 0
    %3021 = vmatpush.bf16.msra.mxu0 0
    %3022 = vmatpush.bf16.msra.mxu0 0
    %3023 = vmatpush.bf16.msra.mxu0 0
    %3024 = vmatpush.bf16.msra.mxu0 0
    %3025 = vmatpush.bf16.msra.mxu0 0
    %3026 = vmatpush.bf16.msra.mxu0 0
    %3027 = vmatpush.bf16.msra.mxu0 %v3018
    %3028 = vmatmul.bf16.gmra.mxu0 %v3015
    %v3029 = vpop.f32.mrf.mxu0
    %v3030 = vadd.f32 0.0, %v3029
    %v3031 = vpop.f32.mrf.mxu0
    %v3032 = vadd.f32 0.0, %v3031
    %3033 = vdwg.mxu0
    %v3034 = vadd.f32 %v3008, %v3030
    %v3035 = vadd.f32 %v3010, %v3032
    %v3036 = vpack.c.bf16 %v2961, %v2959
    %v3037 = vpack.c.bf16 %v2967, %v2967
    %v3039 = vsel %vm189, %v3036, 0
    %v3042 = vsel %vm388, %v3037, 0
    %3044 = vmatpush.bf16.msra.mxu0 0
    %3045 = vmatpush.bf16.msra.mxu0 0
    %3046 = vmatpush.bf16.msra.mxu0 0
    %3047 = vmatpush.bf16.msra.mxu0 0
    %3048 = vmatpush.bf16.msra.mxu0 0
    %3049 = vmatpush.bf16.msra.mxu0 0
    %3050 = vmatpush.bf16.msra.mxu0 0
    %3051 = vmatpush.bf16.msra.mxu0 %v3042
    %3052 = vmatmul.bf16.gmra.mxu0 %v3039
    %v3053 = vpop.f32.mrf.mxu0
    %v3054 = vadd.f32 0.0, %v3053
    %v3055 = vpop.f32.mrf.mxu0
    %v3056 = vadd.f32 0.0, %v3055
    %3057 = vdwg.mxu0
    %v3058 = vadd.f32 %v3034, %v3054
    %v3059 = vadd.f32 %v3035, %v3056
    %v3060 = vperm.slane %v2213, 3
    %v3061 = vadd.f32 %v3058, %v3060
    %v3062 = vadd.f32 %v3059, %v3060
    %v3063 = vadd.f32 %v3061, %v2646
    %v3064 = vadd.f32 %v3062, %v2647
    %v3065 = vsel %vm119, %v3063, 0.0
    %3066 = vadd.xlane.f32.xlu0 %v3065
    %v3067 = vpop.xlane.xlu0 %3066
    %v3068 = vsel %vm119, %v3064, 0.0
    %3069 = vadd.xlane.f32.xlu0 %v3068
    %v3070 = vpop.xlane.xlu0 %3069
    %v3071 = vmul.f32 %v3067, %v491
    %v3072 = vmul.f32 %v3070, %v491
    %v3073 = vsub.f32 %v3063, %v3071
    %v3074 = vsub.f32 %v3064, %v3072
    %v3075 = vmul.f32 %v3073, %v3073
    %v3076 = vmul.f32 %v3074, %v3074
    %v3077 = vsel %vm119, %v3075, 0.0
    %3078 = vadd.xlane.f32.xlu0 %v3077
    %v3079 = vpop.xlane.xlu0 %3078
    %v3080 = vsel %vm119, %v3076, 0.0
    %3081 = vadd.xlane.f32.xlu0 %v3080
    %v3082 = vpop.xlane.xlu0 %3081
    %v3083 = vmul.f32 %v3079, %v491
    %v3084 = vmul.f32 %v3082, %v491
    %v3085 = vadd.f32 %v3083, 1e-05
    %v3086 = vadd.f32 %v3084, 1e-05
    %v3087 = vrsqrt.pop %v3085
    %v3088 = vmul.f32 %v3087, %v3085
    %v3089 = vmul.f32 %v3088, %v3087
    %v3090 = vmul.f32 0.5, %v3089
    %v3091 = vsub.f32 1.5, %v3090
    %v3092 = vmul.f32 %v3087, %v3091
    %vm3093 = vweird.f32 %v3085
    %vm3094 = vweird.f32 %v3087
    %vm3095 = vmor %vm3093, %vm3094
    %v3096 = vsel %vm3095, %v3087, %v3092
    %v3097 = vrsqrt.pop %v3086
    %v3098 = vmul.f32 %v3097, %v3086
    %v3099 = vmul.f32 %v3098, %v3097
    %v3100 = vmul.f32 0.5, %v3099
    %v3101 = vsub.f32 1.5, %v3100
    %v3102 = vmul.f32 %v3097, %v3101
    %vm3103 = vweird.f32 %v3086
    %vm3104 = vweird.f32 %v3097
    %vm3105 = vmor %vm3103, %vm3104
    %v3106 = vsel %vm3105, %v3097, %v3102
    %v3107 = vmul.f32 %v3073, %v3096
    %v3108 = vmul.f32 %v3074, %v3106
    %v3109 = vperm.slane %v2213, 4
    %v3110 = vmul.f32 %v3107, %v3109
    %v3111 = vmul.f32 %v3108, %v3109
    %v3112 = vperm.slane %v2213, 5
    %v3113 = vadd.f32 %v3110, %v3112
    %v3114 = vadd.f32 %v3111, %v3112
    %s3115 = scalar_lea.vmem %s14, 32
    %v3116 = vld [vmem:[%s3115] sm:$0xff]
    %v3117 = vld [vmem:[%s3115 + $0x8] sm:$0xff]
    %v3118 = vld [vmem:[%s3115 + $0x10] sm:$0xff]
    %v3119 = vld [vmem:[%s3115 + $0x18] sm:$0xff]
    %s3120 = scalar_lea.vmem %s15, 64
    %v3121 = vld [vmem:[%s3120] sm:$0xff]
    %v3122 = vld [vmem:[%s3120 + $0x8] sm:$0xff]
    %v3123 = vld [vmem:[%s3120 + $0x10] sm:$0xff]
    %v3124 = vld [vmem:[%s3120 + $0x18] sm:$0xff]
    %v3125 = vld [vmem:[%s3120 + $0x20] sm:$0xff]
    %v3126 = vld [vmem:[%s3120 + $0x28] sm:$0xff]
    %v3127 = vld [vmem:[%s3120 + $0x30] sm:$0xff]
    %v3128 = vld [vmem:[%s3120 + $0x38] sm:$0xff]
    %v3129 = vpack.c.bf16 %v3114, %v3113
    %v3130 = vpack.c.bf16 %v3117, %v3116
    %v3131 = vpack.c.bf16 %v3119, %v3118
    %v3133 = vperm.slane %v2216, 0
    %v3136 = vsel %vm119, %v3129, 0
    %3138 = vmatpush.bf16.msra.mxu0 0
    %3139 = vmatpush.bf16.msra.mxu0 0
    %3140 = vmatpush.bf16.msra.mxu0 0
    %3141 = vmatpush.bf16.msra.mxu0 0
    %3142 = vmatpush.bf16.msra.mxu0 0
    %3143 = vmatpush.bf16.msra.mxu0 0
    %3144 = vmatpush.bf16.msra.mxu0 %v3131
    %3145 = vmatpush.bf16.msra.mxu0 %v3130
    %3146 = vmatmul.bf16.gmra.mxu0 %v3136
    %v3147 = vpop.f32.mrf.mxu0
    %v3148 = vadd.f32 %v3133, %v3147
    %v3149 = vpop.f32.mrf.mxu0
    %v3150 = vadd.f32 %v3133, %v3149
    %3151 = vdwg.mxu0
    %v3152 = vmax.f32 %v3148, 0.0
    %v3153 = vmax.f32 %v3150, 0.0
    %v3154 = vpack.c.bf16 %v3153, %v3152
    %v3155 = vpack.c.bf16 %v3122, %v3121
    %v3156 = vpack.c.bf16 %v3124, %v3123
    %v3157 = vpack.c.bf16 %v3126, %v3125
    %v3158 = vpack.c.bf16 %v3128, %v3127
    %v3159 = vperm.slane %v2213, 6
    %v3161 = vsel %vm247, %v3154, 0
    %3163 = vmatpush.bf16.msra.mxu0 0
    %3164 = vmatpush.bf16.msra.mxu0 0
    %3165 = vmatpush.bf16.msra.mxu0 0
    %3166 = vmatpush.bf16.msra.mxu0 0
    %3167 = vmatpush.bf16.msra.mxu0 %v3158
    %3168 = vmatpush.bf16.msra.mxu0 %v3157
    %3169 = vmatpush.bf16.msra.mxu0 %v3156
    %3170 = vmatpush.bf16.msra.mxu0 %v3155
    %3171 = vmatmul.bf16.gmra.mxu0 %v3161
    %v3172 = vpop.f32.mrf.mxu0
    %v3173 = vadd.f32 %v3159, %v3172
    %v3174 = vpop.f32.mrf.mxu0
    %v3175 = vadd.f32 %v3159, %v3174
    %3176 = vdwg.mxu0
    %v3177 = vadd.f32 %v3173, %v3113
    %v3178 = vadd.f32 %v3175, %v3114
    %v3179 = vsel %vm119, %v3177, 0.0
    %3180 = vadd.xlane.f32.xlu0 %v3179
    %v3181 = vpop.xlane.xlu0 %3180
    %v3182 = vsel %vm119, %v3178, 0.0
    %3183 = vadd.xlane.f32.xlu0 %v3182
    %v3184 = vpop.xlane.xlu0 %3183
    %v3185 = vmul.f32 %v3181, %v491
    %v3186 = vmul.f32 %v3184, %v491
    %v3187 = vsub.f32 %v3177, %v3185
    %v3188 = vsub.f32 %v3178, %v3186
    %v3189 = vmul.f32 %v3187, %v3187
    %v3190 = vmul.f32 %v3188, %v3188
    %v3191 = vsel %vm119, %v3189, 0.0
    %3192 = vadd.xlane.f32.xlu0 %v3191
    %v3193 = vpop.xlane.xlu0 %3192
    %v3194 = vsel %vm119, %v3190, 0.0
    %3195 = vadd.xlane.f32.xlu0 %v3194
    %v3196 = vpop.xlane.xlu0 %3195
    %v3197 = vmul.f32 %v3193, %v491
    %v3198 = vmul.f32 %v3196, %v491
    %v3199 = vadd.f32 %v3197, 1e-05
    %v3200 = vadd.f32 %v3198, 1e-05
    %v3201 = vrsqrt.pop %v3199
    %v3202 = vmul.f32 %v3201, %v3199
    %v3203 = vmul.f32 %v3202, %v3201
    %v3204 = vmul.f32 0.5, %v3203
    %v3205 = vsub.f32 1.5, %v3204
    %v3206 = vmul.f32 %v3201, %v3205
    %vm3207 = vweird.f32 %v3199
    %vm3208 = vweird.f32 %v3201
    %vm3209 = vmor %vm3207, %vm3208
    %v3210 = vsel %vm3209, %v3201, %v3206
    %v3211 = vrsqrt.pop %v3200
    %v3212 = vmul.f32 %v3211, %v3200
    %v3213 = vmul.f32 %v3212, %v3211
    %v3214 = vmul.f32 0.5, %v3213
    %v3215 = vsub.f32 1.5, %v3214
    %v3216 = vmul.f32 %v3211, %v3215
    %vm3217 = vweird.f32 %v3200
    %vm3218 = vweird.f32 %v3211
    %vm3219 = vmor %vm3217, %vm3218
    %v3220 = vsel %vm3219, %v3211, %v3216
    %v3221 = vmul.f32 %v3187, %v3210
    %v3222 = vmul.f32 %v3188, %v3220
    %v3223 = vperm.slane %v2213, 7
    %v3224 = vmul.f32 %v3221, %v3223
    %v3225 = vmul.f32 %v3222, %v3223
    %v3226 = vperm.slane %v2214, 0
    %v3227 = vadd.f32 %v3224, %v3226
    %v3228 = vadd.f32 %v3225, %v3226
    %v3229 = vld [vmem:[%s18] sm:$0xff]
    %v3230 = vld [vmem:[%s18 + $0x8] sm:$0xff]
    %v3231 = vld [vmem:[%s18 + $0x10] sm:$0xff]
    %v3232 = vld [vmem:[%s18 + $0x18] sm:$0xff]
    %v3233 = vld [vmem:[%s18 + $0x20] sm:$0xff]
    %v3234 = vld [vmem:[%s18 + $0x28] sm:$0xff]
    %v3235 = vld [vmem:[%s18 + $0x30] sm:$0xff]
    %v3236 = vld [vmem:[%s18 + $0x38] sm:$0xff]
    %v3237 = vld [vmem:[%s18 + $0x40] sm:$0xff]
    %v3238 = vld [vmem:[%s18 + $0x48] sm:$0xff]
    %v3239 = vld [vmem:[%s18 + $0x50] sm:$0xff]
    %v3240 = vld [vmem:[%s18 + $0x58] sm:$0xff]
    %v3241 = vpack.c.bf16 %v3228, %v3227
    %v3242 = vpack.c.bf16 %v3232, %v3229
    %v3243 = vpack.c.bf16 %v3233, %v3230
    %v3244 = vpack.c.bf16 %v3234, %v3231
    %v3245 = vpack.c.bf16 %v3238, %v3235
    %v3246 = vpack.c.bf16 %v3239, %v3236
    %v3247 = vpack.c.bf16 %v3240, %v3237
    %v3249 = vsel %vm119, %v3241, 0
    %3251 = vmatpush.bf16.msra.mxu0 0
    %3252 = vmatpush.bf16.msra.mxu0 0
    %3253 = vmatpush.bf16.msra.mxu0 0
    %3254 = vmatpush.bf16.msra.mxu0 0
    %3255 = vmatpush.bf16.msra.mxu0 0
    %3256 = vmatpush.bf16.msra.mxu0 0
    %3257 = vmatpush.bf16.msra.mxu0 %v3245
    %3258 = vmatpush.bf16.msra.mxu0 %v3242
    %3259 = vmatmul.bf16.gmra.mxu0 %v3249
    %v3260 = vpop.f32.mrf.mxu0
    %v3261 = vadd.f32 0.0, %v3260
    %v3262 = vpop.f32.mrf.mxu0
    %v3263 = vadd.f32 0.0, %v3262
    %3264 = vdwg.mxu0
    %3265 = vmatpush.bf16.msra.mxu0 0
    %3266 = vmatpush.bf16.msra.mxu0 0
    %3267 = vmatpush.bf16.msra.mxu0 0
    %3268 = vmatpush.bf16.msra.mxu0 0
    %3269 = vmatpush.bf16.msra.mxu0 0
    %3270 = vmatpush.bf16.msra.mxu0 0
    %3271 = vmatpush.bf16.msra.mxu0 %v3246
    %3272 = vmatpush.bf16.msra.mxu0 %v3243
    %3273 = vmatmul.bf16.gmra.mxu0 %v3249
    %v3274 = vpop.f32.mrf.mxu0
    %v3275 = vadd.f32 0.0, %v3274
    %v3276 = vpop.f32.mrf.mxu0
    %v3277 = vadd.f32 0.0, %v3276
    %3278 = vdwg.mxu0
    %3279 = vmatpush.bf16.msra.mxu0 0
    %3280 = vmatpush.bf16.msra.mxu0 0
    %3281 = vmatpush.bf16.msra.mxu0 0
    %3282 = vmatpush.bf16.msra.mxu0 0
    %3283 = vmatpush.bf16.msra.mxu0 0
    %3284 = vmatpush.bf16.msra.mxu0 0
    %3285 = vmatpush.bf16.msra.mxu0 %v3247
    %3286 = vmatpush.bf16.msra.mxu0 %v3244
    %3287 = vmatmul.bf16.gmra.mxu0 %v3249
    %v3288 = vpop.f32.mrf.mxu0
    %v3289 = vadd.f32 0.0, %v3288
    %v3290 = vpop.f32.mrf.mxu0
    %v3291 = vadd.f32 0.0, %v3290
    %3292 = vdwg.mxu0
    %v3293 = vld [vmem:[%s19] sm:$0xff]
    %v3294 = vld [vmem:[%s19 + $0x8] sm:$0xff]
    %v3295 = vld [vmem:[%s19 + $0x10] sm:$0xff]
    %v3296 = vld [vmem:[%s19 + $0x18] sm:$0xff]
    %v3297 = vld [vmem:[%s19 + $0x20] sm:$0xff]
    %v3298 = vld [vmem:[%s19 + $0x28] sm:$0xff]
    %v3299 = vmul.f32 %v3261, %v3293
    %v3300 = vmul.f32 %v3275, %v3294
    %v3301 = vmul.f32 %v3289, %v3295
    %v3302 = vmul.f32 %v3263, %v3296
    %v3303 = vmul.f32 %v3277, %v3297
    %v3304 = vmul.f32 %v3291, %v3298
    %v3305 = vld [vmem:[%s20] sm:$0xff]
    %v3306 = vld [vmem:[%s20 + $0x8] sm:$0xff]
    %v3307 = vld [vmem:[%s20 + $0x10] sm:$0xff]
    %v3308 = vld [vmem:[%s20 + $0x18] sm:$0xff]
    %v3309 = vld [vmem:[%s20 + $0x20] sm:$0xff]
    %v3310 = vld [vmem:[%s20 + $0x28] sm:$0xff]
    %v3311 = vld [vmem:[%s20 + $0x30] sm:$0xff]
    %v3312 = vld [vmem:[%s20 + $0x38] sm:$0xff]
    %v3313 = vld [vmem:[%s20 + $0x40] sm:$0xff]
    %v3314 = vld [vmem:[%s20 + $0x48] sm:$0xff]
    %v3315 = vld [vmem:[%s20 + $0x50] sm:$0xff]
    %v3316 = vld [vmem:[%s20 + $0x58] sm:$0xff]
    %v3317 = vld [vmem:[%s20 + $0x60] sm:$0xff]
    %v3318 = vld [vmem:[%s20 + $0x68] sm:$0xff]
    %v3319 = vld [vmem:[%s20 + $0x70] sm:$0xff]
    %v3320 = vld [vmem:[%s20 + $0x78] sm:$0xff]
    %v3321 = vld [vmem:[%s20 + $0x80] sm:$0xff]
    %v3322 = vld [vmem:[%s20 + $0x88] sm:$0xff]
    %v3323 = vld [vmem:[%s20 + $0x90] sm:$0xff]
    %v3324 = vld [vmem:[%s20 + $0x98] sm:$0xff]
    %v3325 = vld [vmem:[%s20 + $0xa0] sm:$0xff]
    %v3326 = vld [vmem:[%s20 + $0xa8] sm:$0xff]
    %v3327 = vld [vmem:[%s20 + $0xb0] sm:$0xff]
    %v3328 = vld [vmem:[%s20 + $0xb8] sm:$0xff]
    %v3329 = vld [vmem:[%s20 + $0xc0] sm:$0xff]
    %v3330 = vld [vmem:[%s20 + $0xc8] sm:$0xff]
    %v3331 = vld [vmem:[%s20 + $0xd0] sm:$0xff]
    %v3332 = vld [vmem:[%s20 + $0xd8] sm:$0xff]
    %v3333 = vld [vmem:[%s20 + $0xe0] sm:$0xff]
    %v3334 = vld [vmem:[%s20 + $0xe8] sm:$0xff]
    %v3335 = vld [vmem:[%s20 + $0xf0] sm:$0xff]
    %v3336 = vld [vmem:[%s20 + $0xf8] sm:$0xff]
    %v3337 = vld [vmem:[%s20 + $0x100] sm:$0xff]
    %v3338 = vld [vmem:[%s20 + $0x108] sm:$0xff]
    %v3339 = vld [vmem:[%s20 + $0x110] sm:$0xff]
    %v3340 = vld [vmem:[%s20 + $0x118] sm:$0xff]
    %v3341 = vld [vmem:[%s20 + $0x120] sm:$0xff]
    %v3342 = vld [vmem:[%s20 + $0x128] sm:$0xff]
    %v3343 = vld [vmem:[%s20 + $0x130] sm:$0xff]
    %v3344 = vld [vmem:[%s20 + $0x138] sm:$0xff]
    %v3345 = vpack.c.bf16 %v3302, %v3299
    %v3346 = vpack.c.bf16 %v3303, %v3300
    %v3347 = vpack.c.bf16 %v3304, %v3301
    %v3348 = vpack.c.bf16 %v3306, %v3305
    %v3349 = vpack.c.bf16 %v3308, %v3307
    %v3350 = vpack.c.bf16 %v3310, %v3309
    %v3351 = vpack.c.bf16 %v3312, %v3311
    %v3352 = vpack.c.bf16 %v3314, %v3313
    %v3353 = vpack.c.bf16 %v3316, %v3315
    %v3354 = vpack.c.bf16 %v3318, %v3317
    %v3355 = vpack.c.bf16 %v3320, %v3319
    %v3356 = vpack.c.bf16 %v3322, %v3321
    %v3357 = vpack.c.bf16 %v3324, %v3323
    %v3358 = vpack.c.bf16 %v3326, %v3325
    %v3359 = vpack.c.bf16 %v3328, %v3327
    %v3360 = vpack.c.bf16 %v3330, %v3329
    %v3361 = vpack.c.bf16 %v3332, %v3331
    %v3362 = vpack.c.bf16 %v3334, %v3333
    %v3363 = vpack.c.bf16 %v3336, %v3335
    %v3364 = vpack.c.bf16 %v3338, %v3337
    %v3365 = vpack.c.bf16 %v3340, %v3339
    %v3366 = vpack.c.bf16 %v3342, %v3341
    %v3367 = vpack.c.bf16 %v3344, %v3343
    %v3369 = vsel %vm247, %v3347, 0
    %3371 = vmatpush.bf16.msra.mxu0 %v3355
    %3372 = vmatpush.bf16.msra.mxu0 %v3354
    %3373 = vmatpush.bf16.msra.mxu0 %v3353
    %3374 = vmatpush.bf16.msra.mxu0 %v3352
    %3375 = vmatpush.bf16.msra.mxu0 %v3351
    %3376 = vmatpush.bf16.msra.mxu0 %v3350
    %3377 = vmatpush.bf16.msra.mxu0 %v3349
    %3378 = vmatpush.bf16.msra.mxu0 %v3348
    %3379 = vmatmul.bf16.gmra.mxu0 %v3345
    %v3380 = vpop.f32.mrf.mxu0
    %v3381 = vadd.f32 0.0, %v3380
    %v3382 = vpop.f32.mrf.mxu0
    %v3383 = vadd.f32 0.0, %v3382
    %3384 = vdwg.mxu0
    %3385 = vmatpush.bf16.msra.mxu0 %v3363
    %3386 = vmatpush.bf16.msra.mxu0 %v3362
    %3387 = vmatpush.bf16.msra.mxu0 %v3361
    %3388 = vmatpush.bf16.msra.mxu0 %v3360
    %3389 = vmatpush.bf16.msra.mxu0 %v3359
    %3390 = vmatpush.bf16.msra.mxu0 %v3358
    %3391 = vmatpush.bf16.msra.mxu0 %v3357
    %3392 = vmatpush.bf16.msra.mxu0 %v3356
    %3393 = vmatmul.bf16.gmra.mxu0 %v3346
    %v3394 = vpop.f32.mrf.mxu0
    %v3395 = vadd.f32 %v3381, %v3394
    %v3396 = vpop.f32.mrf.mxu0
    %v3397 = vadd.f32 %v3383, %v3396
    %3398 = vdwg.mxu0
    %3399 = vmatpush.bf16.msra.mxu0 0
    %3400 = vmatpush.bf16.msra.mxu0 0
    %3401 = vmatpush.bf16.msra.mxu0 0
    %3402 = vmatpush.bf16.msra.mxu0 0
    %3403 = vmatpush.bf16.msra.mxu0 %v3367
    %3404 = vmatpush.bf16.msra.mxu0 %v3366
    %3405 = vmatpush.bf16.msra.mxu0 %v3365
    %3406 = vmatpush.bf16.msra.mxu0 %v3364
    %3407 = vmatmul.bf16.gmra.mxu0 %v3369
    %v3408 = vpop.f32.mrf.mxu0
    %v3409 = vadd.f32 %v3395, %v3408
    %v3410 = vpop.f32.mrf.mxu0
    %v3411 = vadd.f32 %v3397, %v3410
    %3412 = vdwg.mxu0
    %v3413 = vld [vmem:[%s21] sm:$0x3]
    %v3414 = vpack.c.bf16 %v3413, %v3413
    %v3415 = vpack.c.bf16 %v3411, %v3409
    %v3416 = vld [vmem:[%s22] sm:$0x1]
    %v3418 = vperm.slane %v3416, 0
    %vm3420 = vcmask 130048
    %v3422 = vsel %vm3420, %v3414, 0
    %3424 = vmatpush.bf16.msra.mxu0 0
    %3425 = vmatpush.bf16.msra.mxu0 0
    %3426 = vmatpush.bf16.msra.mxu0 0
    %3427 = vmatpush.bf16.msra.mxu0 0
    %3428 = vmatpush.bf16.msra.mxu0 0
    %3429 = vmatpush.bf16.msra.mxu0 0
    %3430 = vmatpush.bf16.msra.mxu0 0
    %3431 = vmatpush.bf16.msra.mxu0 %v3415
    %3432 = vmatmul.bf16.gmra.mxu0 %v3422
    %v3433 = vpop.f32.mrf.mxu0
    %v3434 = vadd.f32 %v3418, %v3433
    %v3435 = vpop.f32.mrf.mxu0
    %3436 = vdwg.mxu0
    %vm3437 = vcmask 320512
    %3438 = vst.msk [vmem:[#allocation2] sm:$0x3] %vm3437, %v3434
    // Predicated region
    $region94: #{attentive_translator.1} parent=1 // pred_check
      _
    $region95: #{attentive_translator.1} parent=1 // pred_check_branch
      %3440 = sbr.rel (0) target = $region97
    $region96: #{attentive_translator.1} parent=1 // pred_region
      %3442 = vsyncadd [#allocation3], 0
      %s3444 = sshll.u32 [#allocation2], 4
      %s3445 = int_to_ptr.vmem [resolvable:$true] %s3444
      %s3446 = sshll.u32 %s23, 4
      %s3447 = int_to_ptr.hbm [resolvable:$true] %s3446
      %3449 = dma.vmem_to_hbm [thread:$0]  %s3445, 32, %s3447, [#allocation3]
    $region97: #{attentive_translator.1} parent=1 // pred_fallthru
      _
    // Predicated region
    $region98: #{attentive_translator.1} parent=1 // pred_check
      _
    $region99: #{attentive_translator.1} parent=1 // pred_check_branch
      %3451 = sbr.rel (0) target = $region101
    $region100: #{attentive_translator.1} parent=1 // pred_region
      %3453 = dma.done [#allocation3], 32
    $region101: #{attentive_translator.1} parent=1 // pred_fallthru
      _
    %3454 = vsyncpa [#allocation3], 1

</llo_original>
